<compile_context>
chip_gen: v7x
topology: tpu7x:2x2x1
jax: 0.10.0
libtpu: 0.0.40
codegen_flags: <defaults>
</compile_context>

<pallas_src>
import jax
import jax.numpy as jnp
from jax.experimental import pallas as pl
from jax.experimental.pallas import tpu as pltpu

K = 7          # conv kernel size (7 -> padding 3, module default)
PAD = 3
_CH_CHUNK = 8  # channel planes reduced per accumulation step


def _spatial_attn_kernel(w_ref, x_ref, o_ref, pad_ref):
    # w_ref  : SMEM (2*K*K,) f32   -- conv weights [c, ki, kj]; 1/C already
    #                                 folded into the c==0 (avg) weights.
    # x_ref  : VMEM (B, C, H, W)   -- block of batch elements (native dtype)
    # o_ref  : VMEM (B, 1, H, W)
    # pad_ref: VMEM (B, 2, H+6, W+6) f32 scratch (zero halo + sum/max interior)
    B, C, H, W = x_ref.shape
    Hp, Wp = H + 2 * PAD, W + 2 * PAD

    # ---- channel reduction: running sum + running max, chunked over C ------
    cc0 = min(_CH_CHUNK, C)
    x0 = x_ref[:, 0:cc0].astype(jnp.float32)               # (B, cc0, H, W)
    sum_acc = jnp.sum(x0, axis=1)                           # (B, H, W)
    max_acc = jnp.max(x0, axis=1)
    c0 = cc0
    while c0 < C:                                           # static, unrolled
        cc = min(_CH_CHUNK, C - c0)
        xc = x_ref[:, c0:c0 + cc].astype(jnp.float32)
        sum_acc = sum_acc + jnp.sum(xc, axis=1)
        max_acc = jnp.maximum(max_acc, jnp.max(xc, axis=1))
        c0 += cc

    # ---- build the zero-padded 2-channel feature map in scratch ------------
    # Interior is fully rewritten every step; only the 3-wide halo is zeroed.
    pad_ref[:, :, :PAD, :] = jnp.zeros((B, 2, PAD, Wp), jnp.float32)
    pad_ref[:, :, PAD + H:, :] = jnp.zeros((B, 2, PAD, Wp), jnp.float32)
    pad_ref[:, :, PAD:PAD + H, :PAD] = jnp.zeros((B, 2, H, PAD), jnp.float32)
    pad_ref[:, :, PAD:PAD + H, PAD + W:] = jnp.zeros((B, 2, H, PAD), jnp.float32)
    pad_ref[:, 0, PAD:PAD + H, PAD:PAD + W] = sum_acc       # "avg" (scale in w)
    pad_ref[:, 1, PAD:PAD + H, PAD:PAD + W] = max_acc

    # ---- 7x7 conv, 2 -> 1 channels: unrolled shift-and-accumulate ----------
    wvals = [w_ref[i] for i in range(2 * K * K)]            # hoist SMEM reads
    acc = jnp.zeros((B, H, W), jnp.float32)
    for c in range(2):
        pc = pad_ref[:, c]                                  # (B, Hp, Wp) value
        for i in range(K):
            for j in range(K):
                w = wvals[c * K * K + i * K + j]
                acc = acc + w * pc[:, i:i + H, j:j + W]

    o_ref[:, 0] = jax.nn.sigmoid(acc).astype(o_ref.dtype)


def _vmem_limit_bytes():
    """Scoped VMEM limit with per-generation headroom (v7x has 64 MiB total)."""
    try:
        cap = int(pltpu.get_tpu_info().vmem_capacity_bytes)
        if cap <= 0:
            raise ValueError
    except Exception:
        cap = 64 * 1024 * 1024      # conservative (v7x-sized) fallback
    return min(cap * 3 // 4, 64 * 1024 * 1024)


def _pick_batch_block(N, C, H, W, in_itemsize, out_itemsize, limit_bytes):
    """Largest batch block whose per-step VMEM footprint fits the budget."""
    Hp, Wp = H + 2 * PAD, W + 2 * PAD
    per_b = (
        2 * C * H * W * in_itemsize        # input block, double-buffered
        + 2 * H * W * out_itemsize         # output block, double-buffered
        + 2 * Hp * Wp * 4                  # padded scratch
        + (4 * H * W + 2 * Hp * Wp) * 4    # live f32 values (sum/max/acc/plane)
    )
    budget = limit_bytes // 3              # headroom for spills / compiler use
    return int(max(1, min(N, budget // max(per_b, 1))))


def spatial_attention(x, conv_w):
    """x: (N, C, H, W); conv_w: (1, 2, K, K) -> (N, 1, H, W) attention map."""
    N, C, H, W = x.shape
    assert conv_w.shape == (1, 2, K, K)

    # Fold the 1/C of the channel mean into the avg-channel weights so the
    # kernel only needs a channel sum.
    w = conv_w.astype(jnp.float32)
    w = w.at[:, 0].multiply(1.0 / C)
    w_flat = w.reshape(-1)                                  # [c, ki, kj] order

    limit_bytes = _vmem_limit_bytes()
    b_blk = _pick_batch_block(N, C, H, W, x.dtype.itemsize,
                              x.dtype.itemsize, limit_bytes)
    grid = (pl.cdiv(N, b_blk),)

    return pl.pallas_call(
        _spatial_attn_kernel,
        out_shape=jax.ShapeDtypeStruct((N, 1, H, W), x.dtype),
        grid_spec=pltpu.PrefetchScalarGridSpec(
            num_scalar_prefetch=0,
            grid=grid,
            in_specs=[
                pl.BlockSpec(memory_space=pltpu.MemorySpace.SMEM),      # weights
                pl.BlockSpec((b_blk, C, H, W), lambda b: (b, 0, 0, 0)),  # x
            ],
            out_specs=pl.BlockSpec((b_blk, 1, H, W), lambda b: (b, 0, 0, 0)),
            scratch_shapes=[
                pltpu.VMEM((b_blk, 2, H + 2 * PAD, W + 2 * PAD), jnp.float32)],
        ),
        compiler_params=pltpu.CompilerParams(
            dimension_semantics=("parallel",),   # batch elements are independent
            vmem_limit_bytes=limit_bytes,
        ),
    )(w_flat, x)


def _reference(x, conv_w):
    """Pure-JAX reference of the PyTorch forward pass (for validation)."""
    avg = jnp.mean(x, axis=1, keepdims=True)
    mx = jnp.max(x, axis=1, keepdims=True)
    feat = jnp.concatenate([avg, mx], axis=1)               # (N, 2, H, W)
    y = jax.lax.conv_general_dilated(
        feat, conv_w, window_strides=(1, 1), padding=((PAD, PAD), (PAD, PAD)),
        dimension_numbers=("NCHW", "OIHW", "NCHW"))
    return jax.nn.sigmoid(y)


if __name__ == "__main__":
    key = jax.random.PRNGKey(0)
    kx, kw = jax.random.split(key)

    N, C, H, W = 2, 4, 16, 16
    x = jax.random.normal(kx, (N, C, H, W), dtype=jnp.float32)

    # Deterministic init mimicking PyTorch's default kaiming-uniform bound:
    # bound = 1/sqrt(fan_in), fan_in = 2 * K * K.
    fan_in = 2 * K * K
    bound = 1.0 / float(fan_in) ** 0.5
    conv_w = jax.random.uniform(kw, (1, 2, K, K), dtype=jnp.float32,
                                minval=-bound, maxval=bound)

    out = spatial_attention(x, conv_w)
    out = jax.block_until_ready(out)

    ref = _reference(x, conv_w)
    assert out.shape == (N, 1, H, W)
    assert jnp.allclose(out, ref, atol=2e-5, rtol=2e-5), (
        float(jnp.max(jnp.abs(out - ref))))

    print("KERNEL_OK")
</pallas_src>

<mosaic_0001>
module attributes {stable_mosaic.version = 11 : i64} {
  func.func @_spatial_attn_kernel(%arg0: i32, %arg1: memref<98xf32, #tpu.memory_space<smem>>, %arg2: memref<2x4x16x16xf32, #tpu.memory_space<vmem>>, %arg3: memref<2x1x16x16xf32, #tpu.memory_space<vmem>>, %arg4: memref<2x2x22x22xf32, #tpu.memory_space<vmem>>) attributes {dimension_semantics = [#tpu.dimension_semantics<parallel>], iteration_bounds = array<i64: 1>, scalar_prefetch = 0 : i64, scratch_operands = 1 : i64, tpu.core_type = #tpu.core_type<tc>, window_params = [{transform_indices = @transform_0, window_bounds = array<i64: 98>}, {transform_indices = @transform_1, window_bounds = array<i64: 2, 4, 16, 16>}, {transform_indices = @transform_2, window_bounds = array<i64: 2, 1, 16, 16>}]} {
    %c0 = arith.constant 0 : index
    %c0_0 = arith.constant 0 : index
    %c0_1 = arith.constant 0 : index
    %c0_2 = arith.constant 0 : index
    %0 = vector.load %arg2[%c0, %c0_0, %c0_1, %c0_2] : memref<2x4x16x16xf32, #tpu.memory_space<vmem>>, vector<2x4x16x16xf32>
    %cst = arith.constant dense<0.000000e+00> : vector<2x16x16xf32>
    %1 = vector.multi_reduction <add>, %0, %cst [1] : vector<2x4x16x16xf32> to vector<2x16x16xf32>
    %cst_3 = arith.constant dense<0xFF800000> : vector<2x16x16xf32>
    %2 = vector.multi_reduction <maximumf>, %0, %cst_3 [1] : vector<2x4x16x16xf32> to vector<2x16x16xf32>
    %cst_4 = arith.constant 0.000000e+00 : f32
    %3 = vector.broadcast %cst_4 : f32 to vector<2x2x3x22xf32>
    %c0_5 = arith.constant 0 : index
    %c0_6 = arith.constant 0 : index
    %c0_7 = arith.constant 0 : index
    %c0_8 = arith.constant 0 : index
    %4 = vector.load %arg4[%c0_5, %c0_6, %c0_7, %c0_8] : memref<2x2x22x22xf32, #tpu.memory_space<vmem>>, vector<2x2x3x22xf32>
    tpu.vector_store %arg4[%c0_5, %c0_6, %c0_7, %c0_8], %3 {strides = array<i32>} : memref<2x2x22x22xf32, #tpu.memory_space<vmem>>, vector<2x2x3x22xf32>,
    %cst_9 = arith.constant 0.000000e+00 : f32
    %5 = vector.broadcast %cst_9 : f32 to vector<2x2x3x22xf32>
    %c0_10 = arith.constant 0 : index
    %c0_11 = arith.constant 0 : index
    %c19 = arith.constant 19 : index
    %c0_12 = arith.constant 0 : index
    %6 = vector.load %arg4[%c0_10, %c0_11, %c19, %c0_12] : memref<2x2x22x22xf32, #tpu.memory_space<vmem>>, vector<2x2x3x22xf32>
    tpu.vector_store %arg4[%c0_10, %c0_11, %c19, %c0_12], %5 {strides = array<i32>} : memref<2x2x22x22xf32, #tpu.memory_space<vmem>>, vector<2x2x3x22xf32>,
    %cst_13 = arith.constant 0.000000e+00 : f32
    %7 = vector.broadcast %cst_13 : f32 to vector<2x2x16x3xf32>
    %c0_14 = arith.constant 0 : index
    %c0_15 = arith.constant 0 : index
    %c3 = arith.constant 3 : index
    %c0_16 = arith.constant 0 : index
    %8 = vector.load %arg4[%c0_14, %c0_15, %c3, %c0_16] : memref<2x2x22x22xf32, #tpu.memory_space<vmem>>, vector<2x2x16x3xf32>
    tpu.vector_store %arg4[%c0_14, %c0_15, %c3, %c0_16], %7 {strides = array<i32>} : memref<2x2x22x22xf32, #tpu.memory_space<vmem>>, vector<2x2x16x3xf32>,
    %cst_17 = arith.constant 0.000000e+00 : f32
    %9 = vector.broadcast %cst_17 : f32 to vector<2x2x16x3xf32>
    %c0_18 = arith.constant 0 : index
    %c0_19 = arith.constant 0 : index
    %c3_20 = arith.constant 3 : index
    %c19_21 = arith.constant 19 : index
    %10 = vector.load %arg4[%c0_18, %c0_19, %c3_20, %c19_21] : memref<2x2x22x22xf32, #tpu.memory_space<vmem>>, vector<2x2x16x3xf32>
    tpu.vector_store %arg4[%c0_18, %c0_19, %c3_20, %c19_21], %9 {strides = array<i32>} : memref<2x2x22x22xf32, #tpu.memory_space<vmem>>, vector<2x2x16x3xf32>,
    %c0_22 = arith.constant 0 : index
    %c0_23 = arith.constant 0 : index
    %c3_24 = arith.constant 3 : index
    %c3_25 = arith.constant 3 : index
    %11 = vector.load %arg4[%c0_22, %c0_23, %c3_24, %c3_25] : memref<2x2x22x22xf32, #tpu.memory_space<vmem>>, vector<2x1x16x16xf32>
    %12 = vector.shape_cast %11 : vector<2x1x16x16xf32> to vector<2x16x16xf32>
    %13 = vector.shape_cast %1 : vector<2x16x16xf32> to vector<2x1x16x16xf32>
    tpu.vector_store %arg4[%c0_22, %c0_23, %c3_24, %c3_25], %13 {strides = array<i32>} : memref<2x2x22x22xf32, #tpu.memory_space<vmem>>, vector<2x1x16x16xf32>,
    %c0_26 = arith.constant 0 : index
    %c1 = arith.constant 1 : index
    %c3_27 = arith.constant 3 : index
    %c3_28 = arith.constant 3 : index
    %14 = vector.load %arg4[%c0_26, %c1, %c3_27, %c3_28] : memref<2x2x22x22xf32, #tpu.memory_space<vmem>>, vector<2x1x16x16xf32>
    %15 = vector.shape_cast %14 : vector<2x1x16x16xf32> to vector<2x16x16xf32>
    %16 = vector.shape_cast %2 : vector<2x16x16xf32> to vector<2x1x16x16xf32>
    tpu.vector_store %arg4[%c0_26, %c1, %c3_27, %c3_28], %16 {strides = array<i32>} : memref<2x2x22x22xf32, #tpu.memory_space<vmem>>, vector<2x1x16x16xf32>,
    %c0_29 = arith.constant 0 : index
    %17 = memref.load %arg1[%c0_29] : memref<98xf32, #tpu.memory_space<smem>>
    %c1_30 = arith.constant 1 : index
    %18 = memref.load %arg1[%c1_30] : memref<98xf32, #tpu.memory_space<smem>>
    %c2 = arith.constant 2 : index
    %19 = memref.load %arg1[%c2] : memref<98xf32, #tpu.memory_space<smem>>
    %c3_31 = arith.constant 3 : index
    %20 = memref.load %arg1[%c3_31] : memref<98xf32, #tpu.memory_space<smem>>
    %c4 = arith.constant 4 : index
    %21 = memref.load %arg1[%c4] : memref<98xf32, #tpu.memory_space<smem>>
    %c5 = arith.constant 5 : index
    %22 = memref.load %arg1[%c5] : memref<98xf32, #tpu.memory_space<smem>>
    %c6 = arith.constant 6 : index
    %23 = memref.load %arg1[%c6] : memref<98xf32, #tpu.memory_space<smem>>
    %c7 = arith.constant 7 : index
    %24 = memref.load %arg1[%c7] : memref<98xf32, #tpu.memory_space<smem>>
    %c8 = arith.constant 8 : index
    %25 = memref.load %arg1[%c8] : memref<98xf32, #tpu.memory_space<smem>>
    %c9 = arith.constant 9 : index
    %26 = memref.load %arg1[%c9] : memref<98xf32, #tpu.memory_space<smem>>
    %c10 = arith.constant 10 : index
    %27 = memref.load %arg1[%c10] : memref<98xf32, #tpu.memory_space<smem>>
    %c11 = arith.constant 11 : index
    %28 = memref.load %arg1[%c11] : memref<98xf32, #tpu.memory_space<smem>>
    %c12 = arith.constant 12 : index
    %29 = memref.load %arg1[%c12] : memref<98xf32, #tpu.memory_space<smem>>
    %c13 = arith.constant 13 : index
    %30 = memref.load %arg1[%c13] : memref<98xf32, #tpu.memory_space<smem>>
    %c14 = arith.constant 14 : index
    %31 = memref.load %arg1[%c14] : memref<98xf32, #tpu.memory_space<smem>>
    %c15 = arith.constant 15 : index
    %32 = memref.load %arg1[%c15] : memref<98xf32, #tpu.memory_space<smem>>
    %c16 = arith.constant 16 : index
    %33 = memref.load %arg1[%c16] : memref<98xf32, #tpu.memory_space<smem>>
    %c17 = arith.constant 17 : index
    %34 = memref.load %arg1[%c17] : memref<98xf32, #tpu.memory_space<smem>>
    %c18 = arith.constant 18 : index
    %35 = memref.load %arg1[%c18] : memref<98xf32, #tpu.memory_space<smem>>
    %c19_32 = arith.constant 19 : index
    %36 = memref.load %arg1[%c19_32] : memref<98xf32, #tpu.memory_space<smem>>
    %c20 = arith.constant 20 : index
    %37 = memref.load %arg1[%c20] : memref<98xf32, #tpu.memory_space<smem>>
    %c21 = arith.constant 21 : index
    %38 = memref.load %arg1[%c21] : memref<98xf32, #tpu.memory_space<smem>>
    %c22 = arith.constant 22 : index
    %39 = memref.load %arg1[%c22] : memref<98xf32, #tpu.memory_space<smem>>
    %c23 = arith.constant 23 : index
    %40 = memref.load %arg1[%c23] : memref<98xf32, #tpu.memory_space<smem>>
    %c24 = arith.constant 24 : index
    %41 = memref.load %arg1[%c24] : memref<98xf32, #tpu.memory_space<smem>>
    %c25 = arith.constant 25 : index
    %42 = memref.load %arg1[%c25] : memref<98xf32, #tpu.memory_space<smem>>
    %c26 = arith.constant 26 : index
    %43 = memref.load %arg1[%c26] : memref<98xf32, #tpu.memory_space<smem>>
    %c27 = arith.constant 27 : index
    %44 = memref.load %arg1[%c27] : memref<98xf32, #tpu.memory_space<smem>>
    %c28 = arith.constant 28 : index
    %45 = memref.load %arg1[%c28] : memref<98xf32, #tpu.memory_space<smem>>
    %c29 = arith.constant 29 : index
    %46 = memref.load %arg1[%c29] : memref<98xf32, #tpu.memory_space<smem>>
    %c30 = arith.constant 30 : index
    %47 = memref.load %arg1[%c30] : memref<98xf32, #tpu.memory_space<smem>>
    %c31 = arith.constant 31 : index
    %48 = memref.load %arg1[%c31] : memref<98xf32, #tpu.memory_space<smem>>
    %c32 = arith.constant 32 : index
    %49 = memref.load %arg1[%c32] : memref<98xf32, #tpu.memory_space<smem>>
    %c33 = arith.constant 33 : index
    %50 = memref.load %arg1[%c33] : memref<98xf32, #tpu.memory_space<smem>>
    %c34 = arith.constant 34 : index
    %51 = memref.load %arg1[%c34] : memref<98xf32, #tpu.memory_space<smem>>
    %c35 = arith.constant 35 : index
    %52 = memref.load %arg1[%c35] : memref<98xf32, #tpu.memory_space<smem>>
    %c36 = arith.constant 36 : index
    %53 = memref.load %arg1[%c36] : memref<98xf32, #tpu.memory_space<smem>>
    %c37 = arith.constant 37 : index
    %54 = memref.load %arg1[%c37] : memref<98xf32, #tpu.memory_space<smem>>
    %c38 = arith.constant 38 : index
    %55 = memref.load %arg1[%c38] : memref<98xf32, #tpu.memory_space<smem>>
    %c39 = arith.constant 39 : index
    %56 = memref.load %arg1[%c39] : memref<98xf32, #tpu.memory_space<smem>>
    %c40 = arith.constant 40 : index
    %57 = memref.load %arg1[%c40] : memref<98xf32, #tpu.memory_space<smem>>
    %c41 = arith.constant 41 : index
    %58 = memref.load %arg1[%c41] : memref<98xf32, #tpu.memory_space<smem>>
    %c42 = arith.constant 42 : index
    %59 = memref.load %arg1[%c42] : memref<98xf32, #tpu.memory_space<smem>>
    %c43 = arith.constant 43 : index
    %60 = memref.load %arg1[%c43] : memref<98xf32, #tpu.memory_space<smem>>
    %c44 = arith.constant 44 : index
    %61 = memref.load %arg1[%c44] : memref<98xf32, #tpu.memory_space<smem>>
    %c45 = arith.constant 45 : index
    %62 = memref.load %arg1[%c45] : memref<98xf32, #tpu.memory_space<smem>>
    %c46 = arith.constant 46 : index
    %63 = memref.load %arg1[%c46] : memref<98xf32, #tpu.memory_space<smem>>
    %c47 = arith.constant 47 : index
    %64 = memref.load %arg1[%c47] : memref<98xf32, #tpu.memory_space<smem>>
    %c48 = arith.constant 48 : index
    %65 = memref.load %arg1[%c48] : memref<98xf32, #tpu.memory_space<smem>>
    %c49 = arith.constant 49 : index
    %66 = memref.load %arg1[%c49] : memref<98xf32, #tpu.memory_space<smem>>
    %c50 = arith.constant 50 : index
    %67 = memref.load %arg1[%c50] : memref<98xf32, #tpu.memory_space<smem>>
    %c51 = arith.constant 51 : index
    %68 = memref.load %arg1[%c51] : memref<98xf32, #tpu.memory_space<smem>>
    %c52 = arith.constant 52 : index
    %69 = memref.load %arg1[%c52] : memref<98xf32, #tpu.memory_space<smem>>
    %c53 = arith.constant 53 : index
    %70 = memref.load %arg1[%c53] : memref<98xf32, #tpu.memory_space<smem>>
    %c54 = arith.constant 54 : index
    %71 = memref.load %arg1[%c54] : memref<98xf32, #tpu.memory_space<smem>>
    %c55 = arith.constant 55 : index
    %72 = memref.load %arg1[%c55] : memref<98xf32, #tpu.memory_space<smem>>
    %c56 = arith.constant 56 : index
    %73 = memref.load %arg1[%c56] : memref<98xf32, #tpu.memory_space<smem>>
    %c57 = arith.constant 57 : index
    %74 = memref.load %arg1[%c57] : memref<98xf32, #tpu.memory_space<smem>>
    %c58 = arith.constant 58 : index
    %75 = memref.load %arg1[%c58] : memref<98xf32, #tpu.memory_space<smem>>
    %c59 = arith.constant 59 : index
    %76 = memref.load %arg1[%c59] : memref<98xf32, #tpu.memory_space<smem>>
    %c60 = arith.constant 60 : index
    %77 = memref.load %arg1[%c60] : memref<98xf32, #tpu.memory_space<smem>>
    %c61 = arith.constant 61 : index
    %78 = memref.load %arg1[%c61] : memref<98xf32, #tpu.memory_space<smem>>
    %c62 = arith.constant 62 : index
    %79 = memref.load %arg1[%c62] : memref<98xf32, #tpu.memory_space<smem>>
    %c63 = arith.constant 63 : index
    %80 = memref.load %arg1[%c63] : memref<98xf32, #tpu.memory_space<smem>>
    %c64 = arith.constant 64 : index
    %81 = memref.load %arg1[%c64] : memref<98xf32, #tpu.memory_space<smem>>
    %c65 = arith.constant 65 : index
    %82 = memref.load %arg1[%c65] : memref<98xf32, #tpu.memory_space<smem>>
    %c66 = arith.constant 66 : index
    %83 = memref.load %arg1[%c66] : memref<98xf32, #tpu.memory_space<smem>>
    %c67 = arith.constant 67 : index
    %84 = memref.load %arg1[%c67] : memref<98xf32, #tpu.memory_space<smem>>
    %c68 = arith.constant 68 : index
    %85 = memref.load %arg1[%c68] : memref<98xf32, #tpu.memory_space<smem>>
    %c69 = arith.constant 69 : index
    %86 = memref.load %arg1[%c69] : memref<98xf32, #tpu.memory_space<smem>>
    %c70 = arith.constant 70 : index
    %87 = memref.load %arg1[%c70] : memref<98xf32, #tpu.memory_space<smem>>
    %c71 = arith.constant 71 : index
    %88 = memref.load %arg1[%c71] : memref<98xf32, #tpu.memory_space<smem>>
    %c72 = arith.constant 72 : index
    %89 = memref.load %arg1[%c72] : memref<98xf32, #tpu.memory_space<smem>>
    %c73 = arith.constant 73 : index
    %90 = memref.load %arg1[%c73] : memref<98xf32, #tpu.memory_space<smem>>
    %c74 = arith.constant 74 : index
    %91 = memref.load %arg1[%c74] : memref<98xf32, #tpu.memory_space<smem>>
    %c75 = arith.constant 75 : index
    %92 = memref.load %arg1[%c75] : memref<98xf32, #tpu.memory_space<smem>>
    %c76 = arith.constant 76 : index
    %93 = memref.load %arg1[%c76] : memref<98xf32, #tpu.memory_space<smem>>
    %c77 = arith.constant 77 : index
    %94 = memref.load %arg1[%c77] : memref<98xf32, #tpu.memory_space<smem>>
    %c78 = arith.constant 78 : index
    %95 = memref.load %arg1[%c78] : memref<98xf32, #tpu.memory_space<smem>>
    %c79 = arith.constant 79 : index
    %96 = memref.load %arg1[%c79] : memref<98xf32, #tpu.memory_space<smem>>
    %c80 = arith.constant 80 : index
    %97 = memref.load %arg1[%c80] : memref<98xf32, #tpu.memory_space<smem>>
    %c81 = arith.constant 81 : index
    %98 = memref.load %arg1[%c81] : memref<98xf32, #tpu.memory_space<smem>>
    %c82 = arith.constant 82 : index
    %99 = memref.load %arg1[%c82] : memref<98xf32, #tpu.memory_space<smem>>
    %c83 = arith.constant 83 : index
    %100 = memref.load %arg1[%c83] : memref<98xf32, #tpu.memory_space<smem>>
    %c84 = arith.constant 84 : index
    %101 = memref.load %arg1[%c84] : memref<98xf32, #tpu.memory_space<smem>>
    %c85 = arith.constant 85 : index
    %102 = memref.load %arg1[%c85] : memref<98xf32, #tpu.memory_space<smem>>
    %c86 = arith.constant 86 : index
    %103 = memref.load %arg1[%c86] : memref<98xf32, #tpu.memory_space<smem>>
    %c87 = arith.constant 87 : index
    %104 = memref.load %arg1[%c87] : memref<98xf32, #tpu.memory_space<smem>>
    %c88 = arith.constant 88 : index
    %105 = memref.load %arg1[%c88] : memref<98xf32, #tpu.memory_space<smem>>
    %c89 = arith.constant 89 : index
    %106 = memref.load %arg1[%c89] : memref<98xf32, #tpu.memory_space<smem>>
    %c90 = arith.constant 90 : index
    %107 = memref.load %arg1[%c90] : memref<98xf32, #tpu.memory_space<smem>>
    %c91 = arith.constant 91 : index
    %108 = memref.load %arg1[%c91] : memref<98xf32, #tpu.memory_space<smem>>
    %c92 = arith.constant 92 : index
    %109 = memref.load %arg1[%c92] : memref<98xf32, #tpu.memory_space<smem>>
    %c93 = arith.constant 93 : index
    %110 = memref.load %arg1[%c93] : memref<98xf32, #tpu.memory_space<smem>>
    %c94 = arith.constant 94 : index
    %111 = memref.load %arg1[%c94] : memref<98xf32, #tpu.memory_space<smem>>
    %c95 = arith.constant 95 : index
    %112 = memref.load %arg1[%c95] : memref<98xf32, #tpu.memory_space<smem>>
    %c96 = arith.constant 96 : index
    %113 = memref.load %arg1[%c96] : memref<98xf32, #tpu.memory_space<smem>>
    %c97 = arith.constant 97 : index
    %114 = memref.load %arg1[%c97] : memref<98xf32, #tpu.memory_space<smem>>
    %cst_33 = arith.constant 0.000000e+00 : f32
    %115 = vector.broadcast %cst_33 : f32 to vector<2x16x16xf32>
    %c0_34 = arith.constant 0 : index
    %c0_35 = arith.constant 0 : index
    %c0_36 = arith.constant 0 : index
    %c0_37 = arith.constant 0 : index
    %116 = vector.load %arg4[%c0_34, %c0_35, %c0_36, %c0_37] : memref<2x2x22x22xf32, #tpu.memory_space<vmem>>, vector<2x1x22x22xf32>
    %117 = vector.shape_cast %116 : vector<2x1x22x22xf32> to vector<2x22x22xf32>
    %118 = vector.extract_strided_slice %117 {offsets = [0, 0, 0], sizes = [2, 16, 16], strides = [1, 1, 1]} : vector<2x22x22xf32> to vector<2x16x16xf32>
    %119 = vector.broadcast %17 : f32 to vector<2x16x16xf32>
    %120 = arith.mulf %119, %118 : vector<2x16x16xf32>
    %121 = arith.addf %115, %120 : vector<2x16x16xf32>
    %122 = vector.extract_strided_slice %117 {offsets = [0, 0, 1], sizes = [2, 16, 16], strides = [1, 1, 1]} : vector<2x22x22xf32> to vector<2x16x16xf32>
    %123 = vector.broadcast %18 : f32 to vector<2x16x16xf32>
    %124 = arith.mulf %123, %122 : vector<2x16x16xf32>
    %125 = arith.addf %121, %124 : vector<2x16x16xf32>
    %126 = vector.extract_strided_slice %117 {offsets = [0, 0, 2], sizes = [2, 16, 16], strides = [1, 1, 1]} : vector<2x22x22xf32> to vector<2x16x16xf32>
    %127 = vector.broadcast %19 : f32 to vector<2x16x16xf32>
    %128 = arith.mulf %127, %126 : vector<2x16x16xf32>
    %129 = arith.addf %125, %128 : vector<2x16x16xf32>
    %130 = vector.extract_strided_slice %117 {offsets = [0, 0, 3], sizes = [2, 16, 16], strides = [1, 1, 1]} : vector<2x22x22xf32> to vector<2x16x16xf32>
    %131 = vector.broadcast %20 : f32 to vector<2x16x16xf32>
    %132 = arith.mulf %131, %130 : vector<2x16x16xf32>
    %133 = arith.addf %129, %132 : vector<2x16x16xf32>
    %134 = vector.extract_strided_slice %117 {offsets = [0, 0, 4], sizes = [2, 16, 16], strides = [1, 1, 1]} : vector<2x22x22xf32> to vector<2x16x16xf32>
    %135 = vector.broadcast %21 : f32 to vector<2x16x16xf32>
    %136 = arith.mulf %135, %134 : vector<2x16x16xf32>
    %137 = arith.addf %133, %136 : vector<2x16x16xf32>
    %138 = vector.extract_strided_slice %117 {offsets = [0, 0, 5], sizes = [2, 16, 16], strides = [1, 1, 1]} : vector<2x22x22xf32> to vector<2x16x16xf32>
    %139 = vector.broadcast %22 : f32 to vector<2x16x16xf32>
    %140 = arith.mulf %139, %138 : vector<2x16x16xf32>
    %141 = arith.addf %137, %140 : vector<2x16x16xf32>
    %142 = vector.extract_strided_slice %117 {offsets = [0, 0, 6], sizes = [2, 16, 16], strides = [1, 1, 1]} : vector<2x22x22xf32> to vector<2x16x16xf32>
    %143 = vector.broadcast %23 : f32 to vector<2x16x16xf32>
    %144 = arith.mulf %143, %142 : vector<2x16x16xf32>
    %145 = arith.addf %141, %144 : vector<2x16x16xf32>
    %146 = vector.extract_strided_slice %117 {offsets = [0, 1, 0], sizes = [2, 16, 16], strides = [1, 1, 1]} : vector<2x22x22xf32> to vector<2x16x16xf32>
    %147 = vector.broadcast %24 : f32 to vector<2x16x16xf32>
    %148 = arith.mulf %147, %146 : vector<2x16x16xf32>
    %149 = arith.addf %145, %148 : vector<2x16x16xf32>
    %150 = vector.extract_strided_slice %117 {offsets = [0, 1, 1], sizes = [2, 16, 16], strides = [1, 1, 1]} : vector<2x22x22xf32> to vector<2x16x16xf32>
    %151 = vector.broadcast %25 : f32 to vector<2x16x16xf32>
    %152 = arith.mulf %151, %150 : vector<2x16x16xf32>
    %153 = arith.addf %149, %152 : vector<2x16x16xf32>
    %154 = vector.extract_strided_slice %117 {offsets = [0, 1, 2], sizes = [2, 16, 16], strides = [1, 1, 1]} : vector<2x22x22xf32> to vector<2x16x16xf32>
    %155 = vector.broadcast %26 : f32 to vector<2x16x16xf32>
    %156 = arith.mulf %155, %154 : vector<2x16x16xf32>
    %157 = arith.addf %153, %156 : vector<2x16x16xf32>
    %158 = vector.extract_strided_slice %117 {offsets = [0, 1, 3], sizes = [2, 16, 16], strides = [1, 1, 1]} : vector<2x22x22xf32> to vector<2x16x16xf32>
    %159 = vector.broadcast %27 : f32 to vector<2x16x16xf32>
    %160 = arith.mulf %159, %158 : vector<2x16x16xf32>
    %161 = arith.addf %157, %160 : vector<2x16x16xf32>
    %162 = vector.extract_strided_slice %117 {offsets = [0, 1, 4], sizes = [2, 16, 16], strides = [1, 1, 1]} : vector<2x22x22xf32> to vector<2x16x16xf32>
    %163 = vector.broadcast %28 : f32 to vector<2x16x16xf32>
    %164 = arith.mulf %163, %162 : vector<2x16x16xf32>
    %165 = arith.addf %161, %164 : vector<2x16x16xf32>
    %166 = vector.extract_strided_slice %117 {offsets = [0, 1, 5], sizes = [2, 16, 16], strides = [1, 1, 1]} : vector<2x22x22xf32> to vector<2x16x16xf32>
    %167 = vector.broadcast %29 : f32 to vector<2x16x16xf32>
    %168 = arith.mulf %167, %166 : vector<2x16x16xf32>
    %169 = arith.addf %165, %168 : vector<2x16x16xf32>
    %170 = vector.extract_strided_slice %117 {offsets = [0, 1, 6], sizes = [2, 16, 16], strides = [1, 1, 1]} : vector<2x22x22xf32> to vector<2x16x16xf32>
    %171 = vector.broadcast %30 : f32 to vector<2x16x16xf32>
    %172 = arith.mulf %171, %170 : vector<2x16x16xf32>
    %173 = arith.addf %169, %172 : vector<2x16x16xf32>
    %174 = vector.extract_strided_slice %117 {offsets = [0, 2, 0], sizes = [2, 16, 16], strides = [1, 1, 1]} : vector<2x22x22xf32> to vector<2x16x16xf32>
    %175 = vector.broadcast %31 : f32 to vector<2x16x16xf32>
    %176 = arith.mulf %175, %174 : vector<2x16x16xf32>
    %177 = arith.addf %173, %176 : vector<2x16x16xf32>
    %178 = vector.extract_strided_slice %117 {offsets = [0, 2, 1], sizes = [2, 16, 16], strides = [1, 1, 1]} : vector<2x22x22xf32> to vector<2x16x16xf32>
    %179 = vector.broadcast %32 : f32 to vector<2x16x16xf32>
    %180 = arith.mulf %179, %178 : vector<2x16x16xf32>
    %181 = arith.addf %177, %180 : vector<2x16x16xf32>
    %182 = vector.extract_strided_slice %117 {offsets = [0, 2, 2], sizes = [2, 16, 16], strides = [1, 1, 1]} : vector<2x22x22xf32> to vector<2x16x16xf32>
    %183 = vector.broadcast %33 : f32 to vector<2x16x16xf32>
    %184 = arith.mulf %183, %182 : vector<2x16x16xf32>
    %185 = arith.addf %181, %184 : vector<2x16x16xf32>
    %186 = vector.extract_strided_slice %117 {offsets = [0, 2, 3], sizes = [2, 16, 16], strides = [1, 1, 1]} : vector<2x22x22xf32> to vector<2x16x16xf32>
    %187 = vector.broadcast %34 : f32 to vector<2x16x16xf32>
    %188 = arith.mulf %187, %186 : vector<2x16x16xf32>
    %189 = arith.addf %185, %188 : vector<2x16x16xf32>
    %190 = vector.extract_strided_slice %117 {offsets = [0, 2, 4], sizes = [2, 16, 16], strides = [1, 1, 1]} : vector<2x22x22xf32> to vector<2x16x16xf32>
    %191 = vector.broadcast %35 : f32 to vector<2x16x16xf32>
    %192 = arith.mulf %191, %190 : vector<2x16x16xf32>
    %193 = arith.addf %189, %192 : vector<2x16x16xf32>
    %194 = vector.extract_strided_slice %117 {offsets = [0, 2, 5], sizes = [2, 16, 16], strides = [1, 1, 1]} : vector<2x22x22xf32> to vector<2x16x16xf32>
    %195 = vector.broadcast %36 : f32 to vector<2x16x16xf32>
    %196 = arith.mulf %195, %194 : vector<2x16x16xf32>
    %197 = arith.addf %193, %196 : vector<2x16x16xf32>
    %198 = vector.extract_strided_slice %117 {offsets = [0, 2, 6], sizes = [2, 16, 16], strides = [1, 1, 1]} : vector<2x22x22xf32> to vector<2x16x16xf32>
    %199 = vector.broadcast %37 : f32 to vector<2x16x16xf32>
    %200 = arith.mulf %199, %198 : vector<2x16x16xf32>
    %201 = arith.addf %197, %200 : vector<2x16x16xf32>
    %202 = vector.extract_strided_slice %117 {offsets = [0, 3, 0], sizes = [2, 16, 16], strides = [1, 1, 1]} : vector<2x22x22xf32> to vector<2x16x16xf32>
    %203 = vector.broadcast %38 : f32 to vector<2x16x16xf32>
    %204 = arith.mulf %203, %202 : vector<2x16x16xf32>
    %205 = arith.addf %201, %204 : vector<2x16x16xf32>
    %206 = vector.extract_strided_slice %117 {offsets = [0, 3, 1], sizes = [2, 16, 16], strides = [1, 1, 1]} : vector<2x22x22xf32> to vector<2x16x16xf32>
    %207 = vector.broadcast %39 : f32 to vector<2x16x16xf32>
    %208 = arith.mulf %207, %206 : vector<2x16x16xf32>
    %209 = arith.addf %205, %208 : vector<2x16x16xf32>
    %210 = vector.extract_strided_slice %117 {offsets = [0, 3, 2], sizes = [2, 16, 16], strides = [1, 1, 1]} : vector<2x22x22xf32> to vector<2x16x16xf32>
    %211 = vector.broadcast %40 : f32 to vector<2x16x16xf32>
    %212 = arith.mulf %211, %210 : vector<2x16x16xf32>
    %213 = arith.addf %209, %212 : vector<2x16x16xf32>
    %214 = vector.extract_strided_slice %117 {offsets = [0, 3, 3], sizes = [2, 16, 16], strides = [1, 1, 1]} : vector<2x22x22xf32> to vector<2x16x16xf32>
    %215 = vector.broadcast %41 : f32 to vector<2x16x16xf32>
    %216 = arith.mulf %215, %214 : vector<2x16x16xf32>
    %217 = arith.addf %213, %216 : vector<2x16x16xf32>
    %218 = vector.extract_strided_slice %117 {offsets = [0, 3, 4], sizes = [2, 16, 16], strides = [1, 1, 1]} : vector<2x22x22xf32> to vector<2x16x16xf32>
    %219 = vector.broadcast %42 : f32 to vector<2x16x16xf32>
    %220 = arith.mulf %219, %218 : vector<2x16x16xf32>
    %221 = arith.addf %217, %220 : vector<2x16x16xf32>
    %222 = vector.extract_strided_slice %117 {offsets = [0, 3, 5], sizes = [2, 16, 16], strides = [1, 1, 1]} : vector<2x22x22xf32> to vector<2x16x16xf32>
    %223 = vector.broadcast %43 : f32 to vector<2x16x16xf32>
    %224 = arith.mulf %223, %222 : vector<2x16x16xf32>
    %225 = arith.addf %221, %224 : vector<2x16x16xf32>
    %226 = vector.extract_strided_slice %117 {offsets = [0, 3, 6], sizes = [2, 16, 16], strides = [1, 1, 1]} : vector<2x22x22xf32> to vector<2x16x16xf32>
    %227 = vector.broadcast %44 : f32 to vector<2x16x16xf32>
    %228 = arith.mulf %227, %226 : vector<2x16x16xf32>
    %229 = arith.addf %225, %228 : vector<2x16x16xf32>
    %230 = vector.extract_strided_slice %117 {offsets = [0, 4, 0], sizes = [2, 16, 16], strides = [1, 1, 1]} : vector<2x22x22xf32> to vector<2x16x16xf32>
    %231 = vector.broadcast %45 : f32 to vector<2x16x16xf32>
    %232 = arith.mulf %231, %230 : vector<2x16x16xf32>
    %233 = arith.addf %229, %232 : vector<2x16x16xf32>
    %234 = vector.extract_strided_slice %117 {offsets = [0, 4, 1], sizes = [2, 16, 16], strides = [1, 1, 1]} : vector<2x22x22xf32> to vector<2x16x16xf32>
    %235 = vector.broadcast %46 : f32 to vector<2x16x16xf32>
    %236 = arith.mulf %235, %234 : vector<2x16x16xf32>
    %237 = arith.addf %233, %236 : vector<2x16x16xf32>
    %238 = vector.extract_strided_slice %117 {offsets = [0, 4, 2], sizes = [2, 16, 16], strides = [1, 1, 1]} : vector<2x22x22xf32> to vector<2x16x16xf32>
    %239 = vector.broadcast %47 : f32 to vector<2x16x16xf32>
    %240 = arith.mulf %239, %238 : vector<2x16x16xf32>
    %241 = arith.addf %237, %240 : vector<2x16x16xf32>
    %242 = vector.extract_strided_slice %117 {offsets = [0, 4, 3], sizes = [2, 16, 16], strides = [1, 1, 1]} : vector<2x22x22xf32> to vector<2x16x16xf32>
    %243 = vector.broadcast %48 : f32 to vector<2x16x16xf32>
    %244 = arith.mulf %243, %242 : vector<2x16x16xf32>
    %245 = arith.addf %241, %244 : vector<2x16x16xf32>
    %246 = vector.extract_strided_slice %117 {offsets = [0, 4, 4], sizes = [2, 16, 16], strides = [1, 1, 1]} : vector<2x22x22xf32> to vector<2x16x16xf32>
    %247 = vector.broadcast %49 : f32 to vector<2x16x16xf32>
    %248 = arith.mulf %247, %246 : vector<2x16x16xf32>
    %249 = arith.addf %245, %248 : vector<2x16x16xf32>
    %250 = vector.extract_strided_slice %117 {offsets = [0, 4, 5], sizes = [2, 16, 16], strides = [1, 1, 1]} : vector<2x22x22xf32> to vector<2x16x16xf32>
    %251 = vector.broadcast %50 : f32 to vector<2x16x16xf32>
    %252 = arith.mulf %251, %250 : vector<2x16x16xf32>
    %253 = arith.addf %249, %252 : vector<2x16x16xf32>
    %254 = vector.extract_strided_slice %117 {offsets = [0, 4, 6], sizes = [2, 16, 16], strides = [1, 1, 1]} : vector<2x22x22xf32> to vector<2x16x16xf32>
    %255 = vector.broadcast %51 : f32 to vector<2x16x16xf32>
    %256 = arith.mulf %255, %254 : vector<2x16x16xf32>
    %257 = arith.addf %253, %256 : vector<2x16x16xf32>
    %258 = vector.extract_strided_slice %117 {offsets = [0, 5, 0], sizes = [2, 16, 16], strides = [1, 1, 1]} : vector<2x22x22xf32> to vector<2x16x16xf32>
    %259 = vector.broadcast %52 : f32 to vector<2x16x16xf32>
    %260 = arith.mulf %259, %258 : vector<2x16x16xf32>
    %261 = arith.addf %257, %260 : vector<2x16x16xf32>
    %262 = vector.extract_strided_slice %117 {offsets = [0, 5, 1], sizes = [2, 16, 16], strides = [1, 1, 1]} : vector<2x22x22xf32> to vector<2x16x16xf32>
    %263 = vector.broadcast %53 : f32 to vector<2x16x16xf32>
    %264 = arith.mulf %263, %262 : vector<2x16x16xf32>
    %265 = arith.addf %261, %264 : vector<2x16x16xf32>
    %266 = vector.extract_strided_slice %117 {offsets = [0, 5, 2], sizes = [2, 16, 16], strides = [1, 1, 1]} : vector<2x22x22xf32> to vector<2x16x16xf32>
    %267 = vector.broadcast %54 : f32 to vector<2x16x16xf32>
    %268 = arith.mulf %267, %266 : vector<2x16x16xf32>
    %269 = arith.addf %265, %268 : vector<2x16x16xf32>
    %270 = vector.extract_strided_slice %117 {offsets = [0, 5, 3], sizes = [2, 16, 16], strides = [1, 1, 1]} : vector<2x22x22xf32> to vector<2x16x16xf32>
    %271 = vector.broadcast %55 : f32 to vector<2x16x16xf32>
    %272 = arith.mulf %271, %270 : vector<2x16x16xf32>
    %273 = arith.addf %269, %272 : vector<2x16x16xf32>
    %274 = vector.extract_strided_slice %117 {offsets = [0, 5, 4], sizes = [2, 16, 16], strides = [1, 1, 1]} : vector<2x22x22xf32> to vector<2x16x16xf32>
    %275 = vector.broadcast %56 : f32 to vector<2x16x16xf32>
    %276 = arith.mulf %275, %274 : vector<2x16x16xf32>
    %277 = arith.addf %273, %276 : vector<2x16x16xf32>
    %278 = vector.extract_strided_slice %117 {offsets = [0, 5, 5], sizes = [2, 16, 16], strides = [1, 1, 1]} : vector<2x22x22xf32> to vector<2x16x16xf32>
    %279 = vector.broadcast %57 : f32 to vector<2x16x16xf32>
    %280 = arith.mulf %279, %278 : vector<2x16x16xf32>
    %281 = arith.addf %277, %280 : vector<2x16x16xf32>
    %282 = vector.extract_strided_slice %117 {offsets = [0, 5, 6], sizes = [2, 16, 16], strides = [1, 1, 1]} : vector<2x22x22xf32> to vector<2x16x16xf32>
    %283 = vector.broadcast %58 : f32 to vector<2x16x16xf32>
    %284 = arith.mulf %283, %282 : vector<2x16x16xf32>
    %285 = arith.addf %281, %284 : vector<2x16x16xf32>
    %286 = vector.extract_strided_slice %117 {offsets = [0, 6, 0], sizes = [2, 16, 16], strides = [1, 1, 1]} : vector<2x22x22xf32> to vector<2x16x16xf32>
    %287 = vector.broadcast %59 : f32 to vector<2x16x16xf32>
    %288 = arith.mulf %287, %286 : vector<2x16x16xf32>
    %289 = arith.addf %285, %288 : vector<2x16x16xf32>
    %290 = vector.extract_strided_slice %117 {offsets = [0, 6, 1], sizes = [2, 16, 16], strides = [1, 1, 1]} : vector<2x22x22xf32> to vector<2x16x16xf32>
    %291 = vector.broadcast %60 : f32 to vector<2x16x16xf32>
    %292 = arith.mulf %291, %290 : vector<2x16x16xf32>
    %293 = arith.addf %289, %292 : vector<2x16x16xf32>
    %294 = vector.extract_strided_slice %117 {offsets = [0, 6, 2], sizes = [2, 16, 16], strides = [1, 1, 1]} : vector<2x22x22xf32> to vector<2x16x16xf32>
    %295 = vector.broadcast %61 : f32 to vector<2x16x16xf32>
    %296 = arith.mulf %295, %294 : vector<2x16x16xf32>
    %297 = arith.addf %293, %296 : vector<2x16x16xf32>
    %298 = vector.extract_strided_slice %117 {offsets = [0, 6, 3], sizes = [2, 16, 16], strides = [1, 1, 1]} : vector<2x22x22xf32> to vector<2x16x16xf32>
    %299 = vector.broadcast %62 : f32 to vector<2x16x16xf32>
    %300 = arith.mulf %299, %298 : vector<2x16x16xf32>
    %301 = arith.addf %297, %300 : vector<2x16x16xf32>
    %302 = vector.extract_strided_slice %117 {offsets = [0, 6, 4], sizes = [2, 16, 16], strides = [1, 1, 1]} : vector<2x22x22xf32> to vector<2x16x16xf32>
    %303 = vector.broadcast %63 : f32 to vector<2x16x16xf32>
    %304 = arith.mulf %303, %302 : vector<2x16x16xf32>
    %305 = arith.addf %301, %304 : vector<2x16x16xf32>
    %306 = vector.extract_strided_slice %117 {offsets = [0, 6, 5], sizes = [2, 16, 16], strides = [1, 1, 1]} : vector<2x22x22xf32> to vector<2x16x16xf32>
    %307 = vector.broadcast %64 : f32 to vector<2x16x16xf32>
    %308 = arith.mulf %307, %306 : vector<2x16x16xf32>
    %309 = arith.addf %305, %308 : vector<2x16x16xf32>
    %310 = vector.extract_strided_slice %117 {offsets = [0, 6, 6], sizes = [2, 16, 16], strides = [1, 1, 1]} : vector<2x22x22xf32> to vector<2x16x16xf32>
    %311 = vector.broadcast %65 : f32 to vector<2x16x16xf32>
    %312 = arith.mulf %311, %310 : vector<2x16x16xf32>
    %313 = arith.addf %309, %312 : vector<2x16x16xf32>
    %c0_38 = arith.constant 0 : index
    %c1_39 = arith.constant 1 : index
    %c0_40 = arith.constant 0 : index
    %c0_41 = arith.constant 0 : index
    %314 = vector.load %arg4[%c0_38, %c1_39, %c0_40, %c0_41] : memref<2x2x22x22xf32, #tpu.memory_space<vmem>>, vector<2x1x22x22xf32>
    %315 = vector.shape_cast %314 : vector<2x1x22x22xf32> to vector<2x22x22xf32>
    %316 = vector.extract_strided_slice %315 {offsets = [0, 0, 0], sizes = [2, 16, 16], strides = [1, 1, 1]} : vector<2x22x22xf32> to vector<2x16x16xf32>
    %317 = vector.broadcast %66 : f32 to vector<2x16x16xf32>
    %318 = arith.mulf %317, %316 : vector<2x16x16xf32>
    %319 = arith.addf %313, %318 : vector<2x16x16xf32>
    %320 = vector.extract_strided_slice %315 {offsets = [0, 0, 1], sizes = [2, 16, 16], strides = [1, 1, 1]} : vector<2x22x22xf32> to vector<2x16x16xf32>
    %321 = vector.broadcast %67 : f32 to vector<2x16x16xf32>
    %322 = arith.mulf %321, %320 : vector<2x16x16xf32>
    %323 = arith.addf %319, %322 : vector<2x16x16xf32>
    %324 = vector.extract_strided_slice %315 {offsets = [0, 0, 2], sizes = [2, 16, 16], strides = [1, 1, 1]} : vector<2x22x22xf32> to vector<2x16x16xf32>
    %325 = vector.broadcast %68 : f32 to vector<2x16x16xf32>
    %326 = arith.mulf %325, %324 : vector<2x16x16xf32>
    %327 = arith.addf %323, %326 : vector<2x16x16xf32>
    %328 = vector.extract_strided_slice %315 {offsets = [0, 0, 3], sizes = [2, 16, 16], strides = [1, 1, 1]} : vector<2x22x22xf32> to vector<2x16x16xf32>
    %329 = vector.broadcast %69 : f32 to vector<2x16x16xf32>
    %330 = arith.mulf %329, %328 : vector<2x16x16xf32>
    %331 = arith.addf %327, %330 : vector<2x16x16xf32>
    %332 = vector.extract_strided_slice %315 {offsets = [0, 0, 4], sizes = [2, 16, 16], strides = [1, 1, 1]} : vector<2x22x22xf32> to vector<2x16x16xf32>
    %333 = vector.broadcast %70 : f32 to vector<2x16x16xf32>
    %334 = arith.mulf %333, %332 : vector<2x16x16xf32>
    %335 = arith.addf %331, %334 : vector<2x16x16xf32>
    %336 = vector.extract_strided_slice %315 {offsets = [0, 0, 5], sizes = [2, 16, 16], strides = [1, 1, 1]} : vector<2x22x22xf32> to vector<2x16x16xf32>
    %337 = vector.broadcast %71 : f32 to vector<2x16x16xf32>
    %338 = arith.mulf %337, %336 : vector<2x16x16xf32>
    %339 = arith.addf %335, %338 : vector<2x16x16xf32>
    %340 = vector.extract_strided_slice %315 {offsets = [0, 0, 6], sizes = [2, 16, 16], strides = [1, 1, 1]} : vector<2x22x22xf32> to vector<2x16x16xf32>
    %341 = vector.broadcast %72 : f32 to vector<2x16x16xf32>
    %342 = arith.mulf %341, %340 : vector<2x16x16xf32>
    %343 = arith.addf %339, %342 : vector<2x16x16xf32>
    %344 = vector.extract_strided_slice %315 {offsets = [0, 1, 0], sizes = [2, 16, 16], strides = [1, 1, 1]} : vector<2x22x22xf32> to vector<2x16x16xf32>
    %345 = vector.broadcast %73 : f32 to vector<2x16x16xf32>
    %346 = arith.mulf %345, %344 : vector<2x16x16xf32>
    %347 = arith.addf %343, %346 : vector<2x16x16xf32>
    %348 = vector.extract_strided_slice %315 {offsets = [0, 1, 1], sizes = [2, 16, 16], strides = [1, 1, 1]} : vector<2x22x22xf32> to vector<2x16x16xf32>
    %349 = vector.broadcast %74 : f32 to vector<2x16x16xf32>
    %350 = arith.mulf %349, %348 : vector<2x16x16xf32>
    %351 = arith.addf %347, %350 : vector<2x16x16xf32>
    %352 = vector.extract_strided_slice %315 {offsets = [0, 1, 2], sizes = [2, 16, 16], strides = [1, 1, 1]} : vector<2x22x22xf32> to vector<2x16x16xf32>
    %353 = vector.broadcast %75 : f32 to vector<2x16x16xf32>
    %354 = arith.mulf %353, %352 : vector<2x16x16xf32>
    %355 = arith.addf %351, %354 : vector<2x16x16xf32>
    %356 = vector.extract_strided_slice %315 {offsets = [0, 1, 3], sizes = [2, 16, 16], strides = [1, 1, 1]} : vector<2x22x22xf32> to vector<2x16x16xf32>
    %357 = vector.broadcast %76 : f32 to vector<2x16x16xf32>
    %358 = arith.mulf %357, %356 : vector<2x16x16xf32>
    %359 = arith.addf %355, %358 : vector<2x16x16xf32>
    %360 = vector.extract_strided_slice %315 {offsets = [0, 1, 4], sizes = [2, 16, 16], strides = [1, 1, 1]} : vector<2x22x22xf32> to vector<2x16x16xf32>
    %361 = vector.broadcast %77 : f32 to vector<2x16x16xf32>
    %362 = arith.mulf %361, %360 : vector<2x16x16xf32>
    %363 = arith.addf %359, %362 : vector<2x16x16xf32>
    %364 = vector.extract_strided_slice %315 {offsets = [0, 1, 5], sizes = [2, 16, 16], strides = [1, 1, 1]} : vector<2x22x22xf32> to vector<2x16x16xf32>
    %365 = vector.broadcast %78 : f32 to vector<2x16x16xf32>
    %366 = arith.mulf %365, %364 : vector<2x16x16xf32>
    %367 = arith.addf %363, %366 : vector<2x16x16xf32>
    %368 = vector.extract_strided_slice %315 {offsets = [0, 1, 6], sizes = [2, 16, 16], strides = [1, 1, 1]} : vector<2x22x22xf32> to vector<2x16x16xf32>
    %369 = vector.broadcast %79 : f32 to vector<2x16x16xf32>
    %370 = arith.mulf %369, %368 : vector<2x16x16xf32>
    %371 = arith.addf %367, %370 : vector<2x16x16xf32>
    %372 = vector.extract_strided_slice %315 {offsets = [0, 2, 0], sizes = [2, 16, 16], strides = [1, 1, 1]} : vector<2x22x22xf32> to vector<2x16x16xf32>
    %373 = vector.broadcast %80 : f32 to vector<2x16x16xf32>
    %374 = arith.mulf %373, %372 : vector<2x16x16xf32>
    %375 = arith.addf %371, %374 : vector<2x16x16xf32>
    %376 = vector.extract_strided_slice %315 {offsets = [0, 2, 1], sizes = [2, 16, 16], strides = [1, 1, 1]} : vector<2x22x22xf32> to vector<2x16x16xf32>
    %377 = vector.broadcast %81 : f32 to vector<2x16x16xf32>
    %378 = arith.mulf %377, %376 : vector<2x16x16xf32>
    %379 = arith.addf %375, %378 : vector<2x16x16xf32>
    %380 = vector.extract_strided_slice %315 {offsets = [0, 2, 2], sizes = [2, 16, 16], strides = [1, 1, 1]} : vector<2x22x22xf32> to vector<2x16x16xf32>
    %381 = vector.broadcast %82 : f32 to vector<2x16x16xf32>
    %382 = arith.mulf %381, %380 : vector<2x16x16xf32>
    %383 = arith.addf %379, %382 : vector<2x16x16xf32>
    %384 = vector.extract_strided_slice %315 {offsets = [0, 2, 3], sizes = [2, 16, 16], strides = [1, 1, 1]} : vector<2x22x22xf32> to vector<2x16x16xf32>
    %385 = vector.broadcast %83 : f32 to vector<2x16x16xf32>
    %386 = arith.mulf %385, %384 : vector<2x16x16xf32>
    %387 = arith.addf %383, %386 : vector<2x16x16xf32>
    %388 = vector.extract_strided_slice %315 {offsets = [0, 2, 4], sizes = [2, 16, 16], strides = [1, 1, 1]} : vector<2x22x22xf32> to vector<2x16x16xf32>
    %389 = vector.broadcast %84 : f32 to vector<2x16x16xf32>
    %390 = arith.mulf %389, %388 : vector<2x16x16xf32>
    %391 = arith.addf %387, %390 : vector<2x16x16xf32>
    %392 = vector.extract_strided_slice %315 {offsets = [0, 2, 5], sizes = [2, 16, 16], strides = [1, 1, 1]} : vector<2x22x22xf32> to vector<2x16x16xf32>
    %393 = vector.broadcast %85 : f32 to vector<2x16x16xf32>
    %394 = arith.mulf %393, %392 : vector<2x16x16xf32>
    %395 = arith.addf %391, %394 : vector<2x16x16xf32>
    %396 = vector.extract_strided_slice %315 {offsets = [0, 2, 6], sizes = [2, 16, 16], strides = [1, 1, 1]} : vector<2x22x22xf32> to vector<2x16x16xf32>
    %397 = vector.broadcast %86 : f32 to vector<2x16x16xf32>
    %398 = arith.mulf %397, %396 : vector<2x16x16xf32>
    %399 = arith.addf %395, %398 : vector<2x16x16xf32>
    %400 = vector.extract_strided_slice %315 {offsets = [0, 3, 0], sizes = [2, 16, 16], strides = [1, 1, 1]} : vector<2x22x22xf32> to vector<2x16x16xf32>
    %401 = vector.broadcast %87 : f32 to vector<2x16x16xf32>
    %402 = arith.mulf %401, %400 : vector<2x16x16xf32>
    %403 = arith.addf %399, %402 : vector<2x16x16xf32>
    %404 = vector.extract_strided_slice %315 {offsets = [0, 3, 1], sizes = [2, 16, 16], strides = [1, 1, 1]} : vector<2x22x22xf32> to vector<2x16x16xf32>
    %405 = vector.broadcast %88 : f32 to vector<2x16x16xf32>
    %406 = arith.mulf %405, %404 : vector<2x16x16xf32>
    %407 = arith.addf %403, %406 : vector<2x16x16xf32>
    %408 = vector.extract_strided_slice %315 {offsets = [0, 3, 2], sizes = [2, 16, 16], strides = [1, 1, 1]} : vector<2x22x22xf32> to vector<2x16x16xf32>
    %409 = vector.broadcast %89 : f32 to vector<2x16x16xf32>
    %410 = arith.mulf %409, %408 : vector<2x16x16xf32>
    %411 = arith.addf %407, %410 : vector<2x16x16xf32>
    %412 = vector.extract_strided_slice %315 {offsets = [0, 3, 3], sizes = [2, 16, 16], strides = [1, 1, 1]} : vector<2x22x22xf32> to vector<2x16x16xf32>
    %413 = vector.broadcast %90 : f32 to vector<2x16x16xf32>
    %414 = arith.mulf %413, %412 : vector<2x16x16xf32>
    %415 = arith.addf %411, %414 : vector<2x16x16xf32>
    %416 = vector.extract_strided_slice %315 {offsets = [0, 3, 4], sizes = [2, 16, 16], strides = [1, 1, 1]} : vector<2x22x22xf32> to vector<2x16x16xf32>
    %417 = vector.broadcast %91 : f32 to vector<2x16x16xf32>
    %418 = arith.mulf %417, %416 : vector<2x16x16xf32>
    %419 = arith.addf %415, %418 : vector<2x16x16xf32>
    %420 = vector.extract_strided_slice %315 {offsets = [0, 3, 5], sizes = [2, 16, 16], strides = [1, 1, 1]} : vector<2x22x22xf32> to vector<2x16x16xf32>
    %421 = vector.broadcast %92 : f32 to vector<2x16x16xf32>
    %422 = arith.mulf %421, %420 : vector<2x16x16xf32>
    %423 = arith.addf %419, %422 : vector<2x16x16xf32>
    %424 = vector.extract_strided_slice %315 {offsets = [0, 3, 6], sizes = [2, 16, 16], strides = [1, 1, 1]} : vector<2x22x22xf32> to vector<2x16x16xf32>
    %425 = vector.broadcast %93 : f32 to vector<2x16x16xf32>
    %426 = arith.mulf %425, %424 : vector<2x16x16xf32>
    %427 = arith.addf %423, %426 : vector<2x16x16xf32>
    %428 = vector.extract_strided_slice %315 {offsets = [0, 4, 0], sizes = [2, 16, 16], strides = [1, 1, 1]} : vector<2x22x22xf32> to vector<2x16x16xf32>
    %429 = vector.broadcast %94 : f32 to vector<2x16x16xf32>
    %430 = arith.mulf %429, %428 : vector<2x16x16xf32>
    %431 = arith.addf %427, %430 : vector<2x16x16xf32>
    %432 = vector.extract_strided_slice %315 {offsets = [0, 4, 1], sizes = [2, 16, 16], strides = [1, 1, 1]} : vector<2x22x22xf32> to vector<2x16x16xf32>
    %433 = vector.broadcast %95 : f32 to vector<2x16x16xf32>
    %434 = arith.mulf %433, %432 : vector<2x16x16xf32>
    %435 = arith.addf %431, %434 : vector<2x16x16xf32>
    %436 = vector.extract_strided_slice %315 {offsets = [0, 4, 2], sizes = [2, 16, 16], strides = [1, 1, 1]} : vector<2x22x22xf32> to vector<2x16x16xf32>
    %437 = vector.broadcast %96 : f32 to vector<2x16x16xf32>
    %438 = arith.mulf %437, %436 : vector<2x16x16xf32>
    %439 = arith.addf %435, %438 : vector<2x16x16xf32>
    %440 = vector.extract_strided_slice %315 {offsets = [0, 4, 3], sizes = [2, 16, 16], strides = [1, 1, 1]} : vector<2x22x22xf32> to vector<2x16x16xf32>
    %441 = vector.broadcast %97 : f32 to vector<2x16x16xf32>
    %442 = arith.mulf %441, %440 : vector<2x16x16xf32>
    %443 = arith.addf %439, %442 : vector<2x16x16xf32>
    %444 = vector.extract_strided_slice %315 {offsets = [0, 4, 4], sizes = [2, 16, 16], strides = [1, 1, 1]} : vector<2x22x22xf32> to vector<2x16x16xf32>
    %445 = vector.broadcast %98 : f32 to vector<2x16x16xf32>
    %446 = arith.mulf %445, %444 : vector<2x16x16xf32>
    %447 = arith.addf %443, %446 : vector<2x16x16xf32>
    %448 = vector.extract_strided_slice %315 {offsets = [0, 4, 5], sizes = [2, 16, 16], strides = [1, 1, 1]} : vector<2x22x22xf32> to vector<2x16x16xf32>
    %449 = vector.broadcast %99 : f32 to vector<2x16x16xf32>
    %450 = arith.mulf %449, %448 : vector<2x16x16xf32>
    %451 = arith.addf %447, %450 : vector<2x16x16xf32>
    %452 = vector.extract_strided_slice %315 {offsets = [0, 4, 6], sizes = [2, 16, 16], strides = [1, 1, 1]} : vector<2x22x22xf32> to vector<2x16x16xf32>
    %453 = vector.broadcast %100 : f32 to vector<2x16x16xf32>
    %454 = arith.mulf %453, %452 : vector<2x16x16xf32>
    %455 = arith.addf %451, %454 : vector<2x16x16xf32>
    %456 = vector.extract_strided_slice %315 {offsets = [0, 5, 0], sizes = [2, 16, 16], strides = [1, 1, 1]} : vector<2x22x22xf32> to vector<2x16x16xf32>
    %457 = vector.broadcast %101 : f32 to vector<2x16x16xf32>
    %458 = arith.mulf %457, %456 : vector<2x16x16xf32>
    %459 = arith.addf %455, %458 : vector<2x16x16xf32>
    %460 = vector.extract_strided_slice %315 {offsets = [0, 5, 1], sizes = [2, 16, 16], strides = [1, 1, 1]} : vector<2x22x22xf32> to vector<2x16x16xf32>
    %461 = vector.broadcast %102 : f32 to vector<2x16x16xf32>
    %462 = arith.mulf %461, %460 : vector<2x16x16xf32>
    %463 = arith.addf %459, %462 : vector<2x16x16xf32>
    %464 = vector.extract_strided_slice %315 {offsets = [0, 5, 2], sizes = [2, 16, 16], strides = [1, 1, 1]} : vector<2x22x22xf32> to vector<2x16x16xf32>
    %465 = vector.broadcast %103 : f32 to vector<2x16x16xf32>
    %466 = arith.mulf %465, %464 : vector<2x16x16xf32>
    %467 = arith.addf %463, %466 : vector<2x16x16xf32>
    %468 = vector.extract_strided_slice %315 {offsets = [0, 5, 3], sizes = [2, 16, 16], strides = [1, 1, 1]} : vector<2x22x22xf32> to vector<2x16x16xf32>
    %469 = vector.broadcast %104 : f32 to vector<2x16x16xf32>
    %470 = arith.mulf %469, %468 : vector<2x16x16xf32>
    %471 = arith.addf %467, %470 : vector<2x16x16xf32>
    %472 = vector.extract_strided_slice %315 {offsets = [0, 5, 4], sizes = [2, 16, 16], strides = [1, 1, 1]} : vector<2x22x22xf32> to vector<2x16x16xf32>
    %473 = vector.broadcast %105 : f32 to vector<2x16x16xf32>
    %474 = arith.mulf %473, %472 : vector<2x16x16xf32>
    %475 = arith.addf %471, %474 : vector<2x16x16xf32>
    %476 = vector.extract_strided_slice %315 {offsets = [0, 5, 5], sizes = [2, 16, 16], strides = [1, 1, 1]} : vector<2x22x22xf32> to vector<2x16x16xf32>
    %477 = vector.broadcast %106 : f32 to vector<2x16x16xf32>
    %478 = arith.mulf %477, %476 : vector<2x16x16xf32>
    %479 = arith.addf %475, %478 : vector<2x16x16xf32>
    %480 = vector.extract_strided_slice %315 {offsets = [0, 5, 6], sizes = [2, 16, 16], strides = [1, 1, 1]} : vector<2x22x22xf32> to vector<2x16x16xf32>
    %481 = vector.broadcast %107 : f32 to vector<2x16x16xf32>
    %482 = arith.mulf %481, %480 : vector<2x16x16xf32>
    %483 = arith.addf %479, %482 : vector<2x16x16xf32>
    %484 = vector.extract_strided_slice %315 {offsets = [0, 6, 0], sizes = [2, 16, 16], strides = [1, 1, 1]} : vector<2x22x22xf32> to vector<2x16x16xf32>
    %485 = vector.broadcast %108 : f32 to vector<2x16x16xf32>
    %486 = arith.mulf %485, %484 : vector<2x16x16xf32>
    %487 = arith.addf %483, %486 : vector<2x16x16xf32>
    %488 = vector.extract_strided_slice %315 {offsets = [0, 6, 1], sizes = [2, 16, 16], strides = [1, 1, 1]} : vector<2x22x22xf32> to vector<2x16x16xf32>
    %489 = vector.broadcast %109 : f32 to vector<2x16x16xf32>
    %490 = arith.mulf %489, %488 : vector<2x16x16xf32>
    %491 = arith.addf %487, %490 : vector<2x16x16xf32>
    %492 = vector.extract_strided_slice %315 {offsets = [0, 6, 2], sizes = [2, 16, 16], strides = [1, 1, 1]} : vector<2x22x22xf32> to vector<2x16x16xf32>
    %493 = vector.broadcast %110 : f32 to vector<2x16x16xf32>
    %494 = arith.mulf %493, %492 : vector<2x16x16xf32>
    %495 = arith.addf %491, %494 : vector<2x16x16xf32>
    %496 = vector.extract_strided_slice %315 {offsets = [0, 6, 3], sizes = [2, 16, 16], strides = [1, 1, 1]} : vector<2x22x22xf32> to vector<2x16x16xf32>
    %497 = vector.broadcast %111 : f32 to vector<2x16x16xf32>
    %498 = arith.mulf %497, %496 : vector<2x16x16xf32>
    %499 = arith.addf %495, %498 : vector<2x16x16xf32>
    %500 = vector.extract_strided_slice %315 {offsets = [0, 6, 4], sizes = [2, 16, 16], strides = [1, 1, 1]} : vector<2x22x22xf32> to vector<2x16x16xf32>
    %501 = vector.broadcast %112 : f32 to vector<2x16x16xf32>
    %502 = arith.mulf %501, %500 : vector<2x16x16xf32>
    %503 = arith.addf %499, %502 : vector<2x16x16xf32>
    %504 = vector.extract_strided_slice %315 {offsets = [0, 6, 5], sizes = [2, 16, 16], strides = [1, 1, 1]} : vector<2x22x22xf32> to vector<2x16x16xf32>
    %505 = vector.broadcast %113 : f32 to vector<2x16x16xf32>
    %506 = arith.mulf %505, %504 : vector<2x16x16xf32>
    %507 = arith.addf %503, %506 : vector<2x16x16xf32>
    %508 = vector.extract_strided_slice %315 {offsets = [0, 6, 6], sizes = [2, 16, 16], strides = [1, 1, 1]} : vector<2x22x22xf32> to vector<2x16x16xf32>
    %509 = vector.broadcast %114 : f32 to vector<2x16x16xf32>
    %510 = arith.mulf %509, %508 : vector<2x16x16xf32>
    %511 = arith.addf %507, %510 : vector<2x16x16xf32>
    %512 = arith.negf %511 : vector<2x16x16xf32>
    %513 = math.exp %512 : vector<2x16x16xf32>
    %cst_42 = arith.constant 1.000000e+00 : f32
    %514 = vector.broadcast %cst_42 : f32 to vector<2x16x16xf32>
    %515 = arith.addf %514, %513 : vector<2x16x16xf32>
    %516 = arith.divf %514, %515 : vector<2x16x16xf32>
    %c0_43 = arith.constant 0 : index
    %c0_44 = arith.constant 0 : index
    %c0_45 = arith.constant 0 : index
    %c0_46 = arith.constant 0 : index
    %517 = vector.load %arg3[%c0_43, %c0_44, %c0_45, %c0_46] : memref<2x1x16x16xf32, #tpu.memory_space<vmem>>, vector<2x1x16x16xf32>
    %518 = vector.shape_cast %517 : vector<2x1x16x16xf32> to vector<2x16x16xf32>
    %519 = vector.shape_cast %516 : vector<2x16x16xf32> to vector<2x1x16x16xf32>
    tpu.vector_store %arg3[%c0_43, %c0_44, %c0_45, %c0_46], %519 {strides = array<i32>} : memref<2x1x16x16xf32, #tpu.memory_space<vmem>>, vector<2x1x16x16xf32>,
    return
  }
  func.func @transform_0(%arg0: i32) -> i32 {
    %c0_i32 = arith.constant 0 : i32
    %c0_i32_0 = arith.constant 0 : i32
    return %c0_i32 : i32
  }
  func.func @transform_1(%arg0: i32) -> (i32, i32, i32, i32) {
    %c0_i32 = arith.constant 0 : i32
    %c0_i32_0 = arith.constant 0 : i32
    %c0_i32_1 = arith.constant 0 : i32
    %c0_i32_2 = arith.constant 0 : i32
    return %arg0, %c0_i32, %c0_i32_0, %c0_i32_1 : i32, i32, i32, i32
  }
  func.func @transform_2(%arg0: i32) -> (i32, i32, i32, i32) {
    %c0_i32 = arith.constant 0 : i32
    %c0_i32_0 = arith.constant 0 : i32
    %c0_i32_1 = arith.constant 0 : i32
    %c0_i32_2 = arith.constant 0 : i32
    return %arg0, %c0_i32, %c0_i32_0, %c0_i32_1 : i32, i32, i32, i32
  }
}

</mosaic_0001>

<llo_original>
// kernel: tpu_custom_call.1
$region0: #{tpu_custom_call.1}
  #allocation0 [shape = 'u32[]', space=smem, size = 0x4, offset = 0x4, fixed_abs, tag = 'smem constant byte address 0x4 - core index']
  #allocation1 [shape = 'u32[144,128]{1,0:T(1,128)}', space=vmem, size = 0x12000, scoped, tag = 'internal scratch']
  #allocation2 [shape = 'f32[2,2,22,22]{3,2,1,0:T(8,128)}', space=vmem, size = 0xc000, scoped, tag = 'scratch operand']
  %s0 = inlined_call_operand.hbm [shape: f32[98], index: 0, kind: input, shape index: {}]
  %s1 = inlined_call_operand.hbm [shape: f32[2,4,16,16], index: 1, kind: input, shape index: {}]
  %s2 = inlined_call_operand.hbm [shape: f32[2,1,16,16], index: 2, kind: output, shape index: {}]
  %s3 = sld [smem:[#allocation0]]
  $region26: #{tpu_custom_call.1} parent=0
    _
  %s5 = ssub.s32 1, %s3
  %s6 = scalar_select 0, %s5, %s3
  $region1: #{tpu_custom_call.1} parent=0
    #allocation3 [shape = 'u8[512]{0}', space=smem, size = 0x200, scoped, tag = 'input window, operand 0, single buffered']
    #allocation4 [shape = 's32[1]{0}', space=sflag, size = 0x4, scoped, tag = 'scoped memory for tpu_custom_call.1']
    #allocation5 [shape = 's32[1]{0}', space=sflag, size = 0x4, scoped, tag = 'scoped memory for tpu_custom_call.1']
    #allocation6 [shape = 's32[1]{0}', space=sflag, size = 0x4, scoped, tag = 'scoped memory for tpu_custom_call.1']
    #allocation7 [shape = 'u8[65536]{0}', space=vmem, size = 0x10000, scoped, tag = 'input window, operand 1, single buffered']
    #allocation8 [shape = 'u8[16384]{0}', space=vmem, size = 0x4000, scoped, tag = 'output window, operand 0, single buffered']
    %7 = vsyncpa [#allocation6], 0
    %8 = vsyncpa [#allocation4], 0
    %9 = vsyncpa [#allocation5], 0
    // Predicated region
    $region2: #{tpu_custom_call.1} parent=1 // pred_check
      _
    $region3: #{tpu_custom_call.1} parent=1 // pred_check_branch
      %11 = sbr.rel (0) target = $region5
    $region4: #{tpu_custom_call.1} parent=1 // pred_region
      %s13 = ssub.s32 16, 16
      %14 = vsyncadd [#allocation6], %s13
      %17 = dma.hbm_to_smem %s0, 16, [#allocation3], [#allocation6]
    $region5: #{tpu_custom_call.1} parent=1 // pred_fallthru
      _
    // Predicated region
    $region6: #{tpu_custom_call.1} parent=1 // pred_check
      _
    $region7: #{tpu_custom_call.1} parent=1 // pred_check_branch
      %19 = sbr.rel (0) target = $region9
    $region8: #{tpu_custom_call.1} parent=1 // pred_region
      %s21 = ssub.s32 2048, 2048
      %22 = vsyncadd [#allocation4], %s21
      %s23 = sshll.u32 [#allocation7], 4
      %s24 = int_to_ptr.vmem [resolvable:$true] %s23
      %29 = dma.hbm_to_vmem [thread:$0]  %s1, 2048, %s24, [#allocation4], 128, 128, 8
    $region9: #{tpu_custom_call.1} parent=1 // pred_fallthru
      _
    // Predicated region
    $region10: #{tpu_custom_call.1} parent=1 // pred_check
      _
    $region11: #{tpu_custom_call.1} parent=1 // pred_check_branch
      %31 = sbr.rel (0) target = $region13
    $region12: #{tpu_custom_call.1} parent=1 // pred_region
      %32 = dma.done [#allocation6], 16
    $region13: #{tpu_custom_call.1} parent=1 // pred_fallthru
      _
    // Predicated region
    $region14: #{tpu_custom_call.1} parent=1 // pred_check
      _
    $region15: #{tpu_custom_call.1} parent=1 // pred_check_branch
      %34 = sbr.rel (0) target = $region17
    $region16: #{tpu_custom_call.1} parent=1 // pred_region
      %35 = dma.done [#allocation4], 2048
    $region17: #{tpu_custom_call.1} parent=1 // pred_fallthru
      _
    %36 = sfence
    %v37 = vld [vmem:[#allocation7] sm:$0xff]
    %v38 = vld [vmem:[#allocation7 + $0x8] sm:$0xff]
    %v39 = vld [vmem:[#allocation7 + $0x10] sm:$0xff]
    %v40 = vld [vmem:[#allocation7 + $0x18] sm:$0xff]
    %v41 = vld [vmem:[#allocation7 + $0x20] sm:$0xff]
    %v42 = vld [vmem:[#allocation7 + $0x28] sm:$0xff]
    %v43 = vld [vmem:[#allocation7 + $0x30] sm:$0xff]
    %v44 = vld [vmem:[#allocation7 + $0x38] sm:$0xff]
    %v45 = vld [vmem:[#allocation7 + $0x40] sm:$0xff]
    %v46 = vld [vmem:[#allocation7 + $0x48] sm:$0xff]
    %v47 = vld [vmem:[#allocation7 + $0x50] sm:$0xff]
    %v48 = vld [vmem:[#allocation7 + $0x58] sm:$0xff]
    %v49 = vld [vmem:[#allocation7 + $0x60] sm:$0xff]
    %v50 = vld [vmem:[#allocation7 + $0x68] sm:$0xff]
    %v51 = vld [vmem:[#allocation7 + $0x70] sm:$0xff]
    %v52 = vld [vmem:[#allocation7 + $0x78] sm:$0xff]
    %vm53 = vcmask 130048
    %v54 = vsel %vm53, %v37, 0.0
    %v55 = vsel %vm53, %v39, 0.0
    %v56 = vadd.f32 %v54, %v55
    %v57 = vsel %vm53, %v41, 0.0
    %v58 = vadd.f32 %v56, %v57
    %v59 = vsel %vm53, %v43, 0.0
    %v60 = vadd.f32 %v58, %v59
    %v61 = vsel %vm53, %v38, 0.0
    %v62 = vsel %vm53, %v40, 0.0
    %v63 = vadd.f32 %v61, %v62
    %v64 = vsel %vm53, %v42, 0.0
    %v65 = vadd.f32 %v63, %v64
    %v66 = vsel %vm53, %v44, 0.0
    %v67 = vadd.f32 %v65, %v66
    %v68 = vsel %vm53, %v45, 0.0
    %v69 = vsel %vm53, %v47, 0.0
    %v70 = vadd.f32 %v68, %v69
    %v71 = vsel %vm53, %v49, 0.0
    %v72 = vadd.f32 %v70, %v71
    %v73 = vsel %vm53, %v51, 0.0
    %v74 = vadd.f32 %v72, %v73
    %v75 = vsel %vm53, %v46, 0.0
    %v76 = vsel %vm53, %v48, 0.0
    %v77 = vadd.f32 %v75, %v76
    %v78 = vsel %vm53, %v50, 0.0
    %v79 = vadd.f32 %v77, %v78
    %v80 = vsel %vm53, %v52, 0.0
    %v81 = vadd.f32 %v79, %v80
    %v82 = vsel %vm53, %v37, -inf
    %v83 = vsel %vm53, %v39, -inf
    %v84 = vmax.f32 %v82, %v83
    %v85 = vsel %vm53, %v41, -inf
    %v86 = vmax.f32 %v84, %v85
    %v87 = vsel %vm53, %v43, -inf
    %v88 = vmax.f32 %v86, %v87
    %v89 = vsel %vm53, %v38, -inf
    %v90 = vsel %vm53, %v40, -inf
    %v91 = vmax.f32 %v89, %v90
    %v92 = vsel %vm53, %v42, -inf
    %v93 = vmax.f32 %v91, %v92
    %v94 = vsel %vm53, %v44, -inf
    %v95 = vmax.f32 %v93, %v94
    %v96 = vsel %vm53, %v45, -inf
    %v97 = vsel %vm53, %v47, -inf
    %v98 = vmax.f32 %v96, %v97
    %v99 = vsel %vm53, %v49, -inf
    %v100 = vmax.f32 %v98, %v99
    %v101 = vsel %vm53, %v51, -inf
    %v102 = vmax.f32 %v100, %v101
    %v103 = vsel %vm53, %v46, -inf
    %v104 = vsel %vm53, %v48, -inf
    %v105 = vmax.f32 %v103, %v104
    %v106 = vsel %vm53, %v50, -inf
    %v107 = vmax.f32 %v105, %v106
    %v108 = vsel %vm53, %v52, -inf
    %v109 = vmax.f32 %v107, %v108
    %vm110 = vcmask 174080
    %111 = vst.msk [vmem:[#allocation2] sm:$0x7] %vm110, 0.0
    %112 = vst.msk [vmem:[#allocation2 + $0x18] sm:$0x7] %vm110, 0.0
    %113 = vst.msk [vmem:[#allocation2 + $0x30] sm:$0x7] %vm110, 0.0
    %114 = vst.msk [vmem:[#allocation2 + $0x48] sm:$0x7] %vm110, 0.0
    %115 = vst.msk [vmem:[#allocation2 + $0x13] sm:$0x7] %vm110, 0.0
    %116 = vst.msk [vmem:[#allocation2 + $0x2b] sm:$0x7] %vm110, 0.0
    %117 = vst.msk [vmem:[#allocation2 + $0x43] sm:$0x7] %vm110, 0.0
    %118 = vst.msk [vmem:[#allocation2 + $0x5b] sm:$0x7] %vm110, 0.0
    %vm119 = vcmask 23552
    %120 = vst.msk [vmem:[#allocation2 + $0x3] sm:$0xff] %vm119, 0.0
    %121 = vst.msk [vmem:[#allocation2 + $0xb] sm:$0xff] %vm119, 0.0
    %122 = vst.msk [vmem:[#allocation2 + $0x1b] sm:$0xff] %vm119, 0.0
    %123 = vst.msk [vmem:[#allocation2 + $0x23] sm:$0xff] %vm119, 0.0
    %124 = vst.msk [vmem:[#allocation2 + $0x33] sm:$0xff] %vm119, 0.0
    %125 = vst.msk [vmem:[#allocation2 + $0x3b] sm:$0xff] %vm119, 0.0
    %126 = vst.msk [vmem:[#allocation2 + $0x4b] sm:$0xff] %vm119, 0.0
    %127 = vst.msk [vmem:[#allocation2 + $0x53] sm:$0xff] %vm119, 0.0
    %vm128 = vcmask 179352
    %129 = vst.msk [vmem:[#allocation2 + $0x3] sm:$0xff] %vm128, 0.0
    %130 = vst.msk [vmem:[#allocation2 + $0xb] sm:$0xff] %vm128, 0.0
    %131 = vst.msk [vmem:[#allocation2 + $0x1b] sm:$0xff] %vm128, 0.0
    %132 = vst.msk [vmem:[#allocation2 + $0x23] sm:$0xff] %vm128, 0.0
    %133 = vst.msk [vmem:[#allocation2 + $0x33] sm:$0xff] %vm128, 0.0
    %134 = vst.msk [vmem:[#allocation2 + $0x3b] sm:$0xff] %vm128, 0.0
    %135 = vst.msk [vmem:[#allocation2 + $0x4b] sm:$0xff] %vm128, 0.0
    %136 = vst.msk [vmem:[#allocation2 + $0x53] sm:$0xff] %vm128, 0.0
    %141 = vrot.lane.b32.xlu0 %v60, 3
    %v142 = vpop.permute.xlu0 %141
    %143 = vrot.lane.b32.xlu0 %v67, 3
    %v144 = vpop.permute.xlu0 %143
    %145 = vrot.lane.b32.xlu0 %v74, 3
    %v146 = vpop.permute.xlu0 %145
    %147 = vrot.lane.b32.xlu0 %v81, 3
    %v148 = vpop.permute.xlu0 %147
    %vm153 = vcmask 154648
    %154 = vst.msk [vmem:[#allocation2 + $0x3] sm:$0xff] %vm153, %v142
    %155 = vst.msk [vmem:[#allocation2 + $0xb] sm:$0xff] %vm153, %v144
    %156 = vst.msk [vmem:[#allocation2 + $0x33] sm:$0xff] %vm153, %v146
    %157 = vst.msk [vmem:[#allocation2 + $0x3b] sm:$0xff] %vm153, %v148
    %162 = vrot.lane.b32.xlu0 %v88, 3
    %v163 = vpop.permute.xlu0 %162
    %164 = vrot.lane.b32.xlu0 %v95, 3
    %v165 = vpop.permute.xlu0 %164
    %166 = vrot.lane.b32.xlu0 %v102, 3
    %v167 = vpop.permute.xlu0 %166
    %168 = vrot.lane.b32.xlu0 %v109, 3
    %v169 = vpop.permute.xlu0 %168
    %s174 = scalar_lea.vmem [#allocation2], 24
    %175 = vst.msk [vmem:[%s174 + $0x3] sm:$0xff] %vm153, %v163
    %176 = vst.msk [vmem:[%s174 + $0xb] sm:$0xff] %vm153, %v165
    %177 = vst.msk [vmem:[%s174 + $0x33] sm:$0xff] %vm153, %v167
    %178 = vst.msk [vmem:[%s174 + $0x3b] sm:$0xff] %vm153, %v169
    %s179 = sld [smem:[#allocation3]]
    %s180 = sld [smem:[#allocation3 + $0x1]]
    %s181 = sld [smem:[#allocation3 + $0x2]]
    %s182 = sld [smem:[#allocation3 + $0x3]]
    %s183 = sld [smem:[#allocation3 + $0x4]]
    %s184 = sld [smem:[#allocation3 + $0x5]]
    %s185 = sld [smem:[#allocation3 + $0x6]]
    %s186 = sld [smem:[#allocation3 + $0x7]]
    %s187 = sld [smem:[#allocation3 + $0x8]]
    %s188 = sld [smem:[#allocation3 + $0x9]]
    %s189 = sld [smem:[#allocation3 + $0xa]]
    %s190 = sld [smem:[#allocation3 + $0xb]]
    %s191 = sld [smem:[#allocation3 + $0xc]]
    %s192 = sld [smem:[#allocation3 + $0xd]]
    %s193 = sld [smem:[#allocation3 + $0xe]]
    %s194 = sld [smem:[#allocation3 + $0xf]]
    %s195 = sld [smem:[#allocation3 + $0x10]]
    %s196 = sld [smem:[#allocation3 + $0x11]]
    %s197 = sld [smem:[#allocation3 + $0x12]]
    %s198 = sld [smem:[#allocation3 + $0x13]]
    %s199 = sld [smem:[#allocation3 + $0x14]]
    %s200 = sld [smem:[#allocation3 + $0x15]]
    %s201 = sld [smem:[#allocation3 + $0x16]]
    %s202 = sld [smem:[#allocation3 + $0x17]]
    %s203 = sld [smem:[#allocation3 + $0x18]]
    %s204 = sld [smem:[#allocation3 + $0x19]]
    %s205 = sld [smem:[#allocation3 + $0x1a]]
    %s206 = sld [smem:[#allocation3 + $0x1b]]
    %s207 = sld [smem:[#allocation3 + $0x1c]]
    %s208 = sld [smem:[#allocation3 + $0x1d]]
    %s209 = sld [smem:[#allocation3 + $0x1e]]
    %s210 = sld [smem:[#allocation3 + $0x1f]]
    %s211 = sld [smem:[#allocation3 + $0x20]]
    %s212 = sld [smem:[#allocation3 + $0x21]]
    %s213 = sld [smem:[#allocation3 + $0x22]]
    %s214 = sld [smem:[#allocation3 + $0x23]]
    %s215 = sld [smem:[#allocation3 + $0x24]]
    %s216 = sld [smem:[#allocation3 + $0x25]]
    %s217 = sld [smem:[#allocation3 + $0x26]]
    %s218 = sld [smem:[#allocation3 + $0x27]]
    %s219 = sld [smem:[#allocation3 + $0x28]]
    %s220 = sld [smem:[#allocation3 + $0x29]]
    %s221 = sld [smem:[#allocation3 + $0x2a]]
    %s222 = sld [smem:[#allocation3 + $0x2b]]
    %s223 = sld [smem:[#allocation3 + $0x2c]]
    %s224 = sld [smem:[#allocation3 + $0x2d]]
    %s225 = sld [smem:[#allocation3 + $0x2e]]
    %s226 = sld [smem:[#allocation3 + $0x2f]]
    %s227 = sld [smem:[#allocation3 + $0x30]]
    %s228 = sld [smem:[#allocation3 + $0x31]]
    %s229 = sld [smem:[#allocation3 + $0x32]]
    %s230 = sld [smem:[#allocation3 + $0x33]]
    %s231 = sld [smem:[#allocation3 + $0x34]]
    %s232 = sld [smem:[#allocation3 + $0x35]]
    %s233 = sld [smem:[#allocation3 + $0x36]]
    %s234 = sld [smem:[#allocation3 + $0x37]]
    %s235 = sld [smem:[#allocation3 + $0x38]]
    %s236 = sld [smem:[#allocation3 + $0x39]]
    %s237 = sld [smem:[#allocation3 + $0x3a]]
    %s238 = sld [smem:[#allocation3 + $0x3b]]
    %s239 = sld [smem:[#allocation3 + $0x3c]]
    %s240 = sld [smem:[#allocation3 + $0x3d]]
    %s241 = sld [smem:[#allocation3 + $0x3e]]
    %s242 = sld [smem:[#allocation3 + $0x3f]]
    %s243 = sld [smem:[#allocation3 + $0x40]]
    %s244 = sld [smem:[#allocation3 + $0x41]]
    %s245 = sld [smem:[#allocation3 + $0x42]]
    %s246 = sld [smem:[#allocation3 + $0x43]]
    %s247 = sld [smem:[#allocation3 + $0x44]]
    %s248 = sld [smem:[#allocation3 + $0x45]]
    %s249 = sld [smem:[#allocation3 + $0x46]]
    %s250 = sld [smem:[#allocation3 + $0x47]]
    %s251 = sld [smem:[#allocation3 + $0x48]]
    %s252 = sld [smem:[#allocation3 + $0x49]]
    %s253 = sld [smem:[#allocation3 + $0x4a]]
    %s254 = sld [smem:[#allocation3 + $0x4b]]
    %s255 = sld [smem:[#allocation3 + $0x4c]]
    %s256 = sld [smem:[#allocation3 + $0x4d]]
    %s257 = sld [smem:[#allocation3 + $0x4e]]
    %s258 = sld [smem:[#allocation3 + $0x4f]]
    %s259 = sld [smem:[#allocation3 + $0x50]]
    %s260 = sld [smem:[#allocation3 + $0x51]]
    %s261 = sld [smem:[#allocation3 + $0x52]]
    %s262 = sld [smem:[#allocation3 + $0x53]]
    %s263 = sld [smem:[#allocation3 + $0x54]]
    %s264 = sld [smem:[#allocation3 + $0x55]]
    %s265 = sld [smem:[#allocation3 + $0x56]]
    %s266 = sld [smem:[#allocation3 + $0x57]]
    %s267 = sld [smem:[#allocation3 + $0x58]]
    %s268 = sld [smem:[#allocation3 + $0x59]]
    %s269 = sld [smem:[#allocation3 + $0x5a]]
    %s270 = sld [smem:[#allocation3 + $0x5b]]
    %s271 = sld [smem:[#allocation3 + $0x5c]]
    %s272 = sld [smem:[#allocation3 + $0x5d]]
    %s273 = sld [smem:[#allocation3 + $0x5e]]
    %s274 = sld [smem:[#allocation3 + $0x5f]]
    %s275 = sld [smem:[#allocation3 + $0x60]]
    %s276 = sld [smem:[#allocation3 + $0x61]]
    %v277 = vld [vmem:[#allocation2] sm:$0xff]
    %v278 = vld [vmem:[#allocation2 + $0x8] sm:$0xff]
    %v279 = vld [vmem:[#allocation2 + $0x10] sm:$0x3f]
    %v280 = vld [vmem:[#allocation2 + $0x30] sm:$0xff]
    %v281 = vld [vmem:[#allocation2 + $0x38] sm:$0xff]
    %v282 = vld [vmem:[#allocation2 + $0x40] sm:$0x3f]
    %v283 = vstv %s179
    %v284 = vmul.f32 %v283, %v277
    %v285 = vmul.f32 %v283, %v278
    %v286 = vmul.f32 %v283, %v280
    %v287 = vmul.f32 %v283, %v281
    %v288 = vadd.f32 %v284, 0.0
    %v289 = vadd.f32 %v285, 0.0
    %v290 = vadd.f32 %v286, 0.0
    %v291 = vadd.f32 %v287, 0.0
    %v292 = vstv %s180
    %v293 = vmul.f32 %v292, %v277
    %v294 = vmul.f32 %v292, %v278
    %v295 = vmul.f32 %v292, %v280
    %v296 = vmul.f32 %v292, %v281
    %301 = vrot.lane.b32.xlu0 %v293, 127
    %v302 = vpop.permute.xlu0 %301
    %303 = vrot.lane.b32.xlu0 %v294, 127
    %v304 = vpop.permute.xlu0 %303
    %305 = vrot.lane.b32.xlu0 %v295, 127
    %v306 = vpop.permute.xlu0 %305
    %307 = vrot.lane.b32.xlu0 %v296, 127
    %v308 = vpop.permute.xlu0 %307
    %v313 = vadd.f32 %v288, %v302
    %v314 = vadd.f32 %v289, %v304
    %v315 = vadd.f32 %v290, %v306
    %v316 = vadd.f32 %v291, %v308
    %v317 = vstv %s181
    %v318 = vmul.f32 %v317, %v277
    %v319 = vmul.f32 %v317, %v278
    %v320 = vmul.f32 %v317, %v280
    %v321 = vmul.f32 %v317, %v281
    %326 = vrot.lane.b32.xlu0 %v318, 126
    %v327 = vpop.permute.xlu0 %326
    %328 = vrot.lane.b32.xlu0 %v319, 126
    %v329 = vpop.permute.xlu0 %328
    %330 = vrot.lane.b32.xlu0 %v320, 126
    %v331 = vpop.permute.xlu0 %330
    %332 = vrot.lane.b32.xlu0 %v321, 126
    %v333 = vpop.permute.xlu0 %332
    %v338 = vadd.f32 %v313, %v327
    %v339 = vadd.f32 %v314, %v329
    %v340 = vadd.f32 %v315, %v331
    %v341 = vadd.f32 %v316, %v333
    %v342 = vstv %s182
    %v343 = vmul.f32 %v342, %v277
    %v344 = vmul.f32 %v342, %v278
    %v345 = vmul.f32 %v342, %v280
    %v346 = vmul.f32 %v342, %v281
    %351 = vrot.lane.b32.xlu0 %v343, 125
    %v352 = vpop.permute.xlu0 %351
    %353 = vrot.lane.b32.xlu0 %v344, 125
    %v354 = vpop.permute.xlu0 %353
    %355 = vrot.lane.b32.xlu0 %v345, 125
    %v356 = vpop.permute.xlu0 %355
    %357 = vrot.lane.b32.xlu0 %v346, 125
    %v358 = vpop.permute.xlu0 %357
    %v363 = vadd.f32 %v338, %v352
    %v364 = vadd.f32 %v339, %v354
    %v365 = vadd.f32 %v340, %v356
    %v366 = vadd.f32 %v341, %v358
    %v367 = vstv %s183
    %v368 = vmul.f32 %v367, %v277
    %v369 = vmul.f32 %v367, %v278
    %v370 = vmul.f32 %v367, %v280
    %v371 = vmul.f32 %v367, %v281
    %376 = vrot.lane.b32.xlu0 %v368, 124
    %v377 = vpop.permute.xlu0 %376
    %378 = vrot.lane.b32.xlu0 %v369, 124
    %v379 = vpop.permute.xlu0 %378
    %380 = vrot.lane.b32.xlu0 %v370, 124
    %v381 = vpop.permute.xlu0 %380
    %382 = vrot.lane.b32.xlu0 %v371, 124
    %v383 = vpop.permute.xlu0 %382
    %v388 = vadd.f32 %v363, %v377
    %v389 = vadd.f32 %v364, %v379
    %v390 = vadd.f32 %v365, %v381
    %v391 = vadd.f32 %v366, %v383
    %v392 = vstv %s184
    %v393 = vmul.f32 %v392, %v277
    %v394 = vmul.f32 %v392, %v278
    %v395 = vmul.f32 %v392, %v280
    %v396 = vmul.f32 %v392, %v281
    %401 = vrot.lane.b32.xlu0 %v393, 123
    %v402 = vpop.permute.xlu0 %401
    %403 = vrot.lane.b32.xlu0 %v394, 123
    %v404 = vpop.permute.xlu0 %403
    %405 = vrot.lane.b32.xlu0 %v395, 123
    %v406 = vpop.permute.xlu0 %405
    %407 = vrot.lane.b32.xlu0 %v396, 123
    %v408 = vpop.permute.xlu0 %407
    %v413 = vadd.f32 %v388, %v402
    %v414 = vadd.f32 %v389, %v404
    %v415 = vadd.f32 %v390, %v406
    %v416 = vadd.f32 %v391, %v408
    %v417 = vstv %s185
    %v418 = vmul.f32 %v417, %v277
    %v419 = vmul.f32 %v417, %v278
    %v420 = vmul.f32 %v417, %v280
    %v421 = vmul.f32 %v417, %v281
    %426 = vrot.lane.b32.xlu0 %v418, 122
    %v427 = vpop.permute.xlu0 %426
    %428 = vrot.lane.b32.xlu0 %v419, 122
    %v429 = vpop.permute.xlu0 %428
    %430 = vrot.lane.b32.xlu0 %v420, 122
    %v431 = vpop.permute.xlu0 %430
    %432 = vrot.lane.b32.xlu0 %v421, 122
    %v433 = vpop.permute.xlu0 %432
    %v438 = vadd.f32 %v413, %v427
    %v439 = vadd.f32 %v414, %v429
    %v440 = vadd.f32 %v415, %v431
    %v441 = vadd.f32 %v416, %v433
    %v442 = vstv %s186
    %v443 = vmul.f32 %v442, %v277
    %v444 = vmul.f32 %v442, %v278
    %v445 = vmul.f32 %v442, %v279
    %v446 = vmul.f32 %v442, %v280
    %v447 = vmul.f32 %v442, %v281
    %v448 = vmul.f32 %v442, %v282
    %vm455 = vcmask 1046528
    %v456 = vrot.slane %v443, 1
    %v457 = vrot.slane %v444, 1
    %v458 = vsel %vm455, %v456, %v457
    %v459 = vrot.slane %v445, 1
    %v460 = vsel %vm455, %v457, %v459
    %v461 = vrot.slane %v446, 1
    %v462 = vrot.slane %v447, 1
    %v463 = vsel %vm455, %v461, %v462
    %v464 = vrot.slane %v448, 1
    %v465 = vsel %vm455, %v462, %v464
    %v470 = vadd.f32 %v438, %v458
    %v471 = vadd.f32 %v439, %v460
    %v472 = vadd.f32 %v440, %v463
    %v473 = vadd.f32 %v441, %v465
    %v474 = vstv %s187
    %v475 = vmul.f32 %v474, %v277
    %v476 = vmul.f32 %v474, %v278
    %v477 = vmul.f32 %v474, %v279
    %v478 = vmul.f32 %v474, %v280
    %v479 = vmul.f32 %v474, %v281
    %v480 = vmul.f32 %v474, %v282
    %v487 = vrot.slane %v475, 1
    %v488 = vrot.slane %v476, 1
    %v489 = vsel %vm455, %v487, %v488
    %v490 = vrot.slane %v477, 1
    %v491 = vsel %vm455, %v488, %v490
    %v492 = vrot.slane %v478, 1
    %v493 = vrot.slane %v479, 1
    %v494 = vsel %vm455, %v492, %v493
    %v495 = vrot.slane %v480, 1
    %v496 = vsel %vm455, %v493, %v495
    %497 = vrot.lane.b32.xlu0 %v489, 127
    %v498 = vpop.permute.xlu0 %497
    %499 = vrot.lane.b32.xlu0 %v491, 127
    %v500 = vpop.permute.xlu0 %499
    %501 = vrot.lane.b32.xlu0 %v494, 127
    %v502 = vpop.permute.xlu0 %501
    %503 = vrot.lane.b32.xlu0 %v496, 127
    %v504 = vpop.permute.xlu0 %503
    %v509 = vadd.f32 %v470, %v498
    %v510 = vadd.f32 %v471, %v500
    %v511 = vadd.f32 %v472, %v502
    %v512 = vadd.f32 %v473, %v504
    %v513 = vstv %s188
    %v514 = vmul.f32 %v513, %v277
    %v515 = vmul.f32 %v513, %v278
    %v516 = vmul.f32 %v513, %v279
    %v517 = vmul.f32 %v513, %v280
    %v518 = vmul.f32 %v513, %v281
    %v519 = vmul.f32 %v513, %v282
    %v526 = vrot.slane %v514, 1
    %v527 = vrot.slane %v515, 1
    %v528 = vsel %vm455, %v526, %v527
    %v529 = vrot.slane %v516, 1
    %v530 = vsel %vm455, %v527, %v529
    %v531 = vrot.slane %v517, 1
    %v532 = vrot.slane %v518, 1
    %v533 = vsel %vm455, %v531, %v532
    %v534 = vrot.slane %v519, 1
    %v535 = vsel %vm455, %v532, %v534
    %536 = vrot.lane.b32.xlu0 %v528, 126
    %v537 = vpop.permute.xlu0 %536
    %538 = vrot.lane.b32.xlu0 %v530, 126
    %v539 = vpop.permute.xlu0 %538
    %540 = vrot.lane.b32.xlu0 %v533, 126
    %v541 = vpop.permute.xlu0 %540
    %542 = vrot.lane.b32.xlu0 %v535, 126
    %v543 = vpop.permute.xlu0 %542
    %v548 = vadd.f32 %v509, %v537
    %v549 = vadd.f32 %v510, %v539
    %v550 = vadd.f32 %v511, %v541
    %v551 = vadd.f32 %v512, %v543
    %v552 = vstv %s189
    %v553 = vmul.f32 %v552, %v277
    %v554 = vmul.f32 %v552, %v278
    %v555 = vmul.f32 %v552, %v279
    %v556 = vmul.f32 %v552, %v280
    %v557 = vmul.f32 %v552, %v281
    %v558 = vmul.f32 %v552, %v282
    %v565 = vrot.slane %v553, 1
    %v566 = vrot.slane %v554, 1
    %v567 = vsel %vm455, %v565, %v566
    %v568 = vrot.slane %v555, 1
    %v569 = vsel %vm455, %v566, %v568
    %v570 = vrot.slane %v556, 1
    %v571 = vrot.slane %v557, 1
    %v572 = vsel %vm455, %v570, %v571
    %v573 = vrot.slane %v558, 1
    %v574 = vsel %vm455, %v571, %v573
    %575 = vrot.lane.b32.xlu0 %v567, 125
    %v576 = vpop.permute.xlu0 %575
    %577 = vrot.lane.b32.xlu0 %v569, 125
    %v578 = vpop.permute.xlu0 %577
    %579 = vrot.lane.b32.xlu0 %v572, 125
    %v580 = vpop.permute.xlu0 %579
    %581 = vrot.lane.b32.xlu0 %v574, 125
    %v582 = vpop.permute.xlu0 %581
    %v587 = vadd.f32 %v548, %v576
    %v588 = vadd.f32 %v549, %v578
    %v589 = vadd.f32 %v550, %v580
    %v590 = vadd.f32 %v551, %v582
    %v591 = vstv %s190
    %v592 = vmul.f32 %v591, %v277
    %v593 = vmul.f32 %v591, %v278
    %v594 = vmul.f32 %v591, %v279
    %v595 = vmul.f32 %v591, %v280
    %v596 = vmul.f32 %v591, %v281
    %v597 = vmul.f32 %v591, %v282
    %v604 = vrot.slane %v592, 1
    %v605 = vrot.slane %v593, 1
    %v606 = vsel %vm455, %v604, %v605
    %v607 = vrot.slane %v594, 1
    %v608 = vsel %vm455, %v605, %v607
    %v609 = vrot.slane %v595, 1
    %v610 = vrot.slane %v596, 1
    %v611 = vsel %vm455, %v609, %v610
    %v612 = vrot.slane %v597, 1
    %v613 = vsel %vm455, %v610, %v612
    %614 = vrot.lane.b32.xlu0 %v606, 124
    %v615 = vpop.permute.xlu0 %614
    %616 = vrot.lane.b32.xlu0 %v608, 124
    %v617 = vpop.permute.xlu0 %616
    %618 = vrot.lane.b32.xlu0 %v611, 124
    %v619 = vpop.permute.xlu0 %618
    %620 = vrot.lane.b32.xlu0 %v613, 124
    %v621 = vpop.permute.xlu0 %620
    %v626 = vadd.f32 %v587, %v615
    %v627 = vadd.f32 %v588, %v617
    %v628 = vadd.f32 %v589, %v619
    %v629 = vadd.f32 %v590, %v621
    %v630 = vstv %s191
    %v631 = vmul.f32 %v630, %v277
    %v632 = vmul.f32 %v630, %v278
    %v633 = vmul.f32 %v630, %v279
    %v634 = vmul.f32 %v630, %v280
    %v635 = vmul.f32 %v630, %v281
    %v636 = vmul.f32 %v630, %v282
    %v643 = vrot.slane %v631, 1
    %v644 = vrot.slane %v632, 1
    %v645 = vsel %vm455, %v643, %v644
    %v646 = vrot.slane %v633, 1
    %v647 = vsel %vm455, %v644, %v646
    %v648 = vrot.slane %v634, 1
    %v649 = vrot.slane %v635, 1
    %v650 = vsel %vm455, %v648, %v649
    %v651 = vrot.slane %v636, 1
    %v652 = vsel %vm455, %v649, %v651
    %653 = vrot.lane.b32.xlu0 %v645, 123
    %v654 = vpop.permute.xlu0 %653
    %655 = vrot.lane.b32.xlu0 %v647, 123
    %v656 = vpop.permute.xlu0 %655
    %657 = vrot.lane.b32.xlu0 %v650, 123
    %v658 = vpop.permute.xlu0 %657
    %659 = vrot.lane.b32.xlu0 %v652, 123
    %v660 = vpop.permute.xlu0 %659
    %v665 = vadd.f32 %v626, %v654
    %v666 = vadd.f32 %v627, %v656
    %v667 = vadd.f32 %v628, %v658
    %v668 = vadd.f32 %v629, %v660
    %v669 = vstv %s192
    %v670 = vmul.f32 %v669, %v277
    %v671 = vmul.f32 %v669, %v278
    %v672 = vmul.f32 %v669, %v279
    %v673 = vmul.f32 %v669, %v280
    %v674 = vmul.f32 %v669, %v281
    %v675 = vmul.f32 %v669, %v282
    %v682 = vrot.slane %v670, 1
    %v683 = vrot.slane %v671, 1
    %v684 = vsel %vm455, %v682, %v683
    %v685 = vrot.slane %v672, 1
    %v686 = vsel %vm455, %v683, %v685
    %v687 = vrot.slane %v673, 1
    %v688 = vrot.slane %v674, 1
    %v689 = vsel %vm455, %v687, %v688
    %v690 = vrot.slane %v675, 1
    %v691 = vsel %vm455, %v688, %v690
    %692 = vrot.lane.b32.xlu0 %v684, 122
    %v693 = vpop.permute.xlu0 %692
    %694 = vrot.lane.b32.xlu0 %v686, 122
    %v695 = vpop.permute.xlu0 %694
    %696 = vrot.lane.b32.xlu0 %v689, 122
    %v697 = vpop.permute.xlu0 %696
    %698 = vrot.lane.b32.xlu0 %v691, 122
    %v699 = vpop.permute.xlu0 %698
    %v704 = vadd.f32 %v665, %v693
    %v705 = vadd.f32 %v666, %v695
    %v706 = vadd.f32 %v667, %v697
    %v707 = vadd.f32 %v668, %v699
    %v708 = vstv %s193
    %v709 = vmul.f32 %v708, %v277
    %v710 = vmul.f32 %v708, %v278
    %v711 = vmul.f32 %v708, %v279
    %v712 = vmul.f32 %v708, %v280
    %v713 = vmul.f32 %v708, %v281
    %v714 = vmul.f32 %v708, %v282
    %vm721 = vcmask 1045504
    %v722 = vrot.slane %v709, 2
    %v723 = vrot.slane %v710, 2
    %v724 = vsel %vm721, %v722, %v723
    %v725 = vrot.slane %v711, 2
    %v726 = vsel %vm721, %v723, %v725
    %v727 = vrot.slane %v712, 2
    %v728 = vrot.slane %v713, 2
    %v729 = vsel %vm721, %v727, %v728
    %v730 = vrot.slane %v714, 2
    %v731 = vsel %vm721, %v728, %v730
    %v736 = vadd.f32 %v704, %v724
    %v737 = vadd.f32 %v705, %v726
    %v738 = vadd.f32 %v706, %v729
    %v739 = vadd.f32 %v707, %v731
    %v740 = vstv %s194
    %v741 = vmul.f32 %v740, %v277
    %v742 = vmul.f32 %v740, %v278
    %v743 = vmul.f32 %v740, %v279
    %v744 = vmul.f32 %v740, %v280
    %v745 = vmul.f32 %v740, %v281
    %v746 = vmul.f32 %v740, %v282
    %v753 = vrot.slane %v741, 2
    %v754 = vrot.slane %v742, 2
    %v755 = vsel %vm721, %v753, %v754
    %v756 = vrot.slane %v743, 2
    %v757 = vsel %vm721, %v754, %v756
    %v758 = vrot.slane %v744, 2
    %v759 = vrot.slane %v745, 2
    %v760 = vsel %vm721, %v758, %v759
    %v761 = vrot.slane %v746, 2
    %v762 = vsel %vm721, %v759, %v761
    %763 = vrot.lane.b32.xlu0 %v755, 127
    %v764 = vpop.permute.xlu0 %763
    %765 = vrot.lane.b32.xlu0 %v757, 127
    %v766 = vpop.permute.xlu0 %765
    %767 = vrot.lane.b32.xlu0 %v760, 127
    %v768 = vpop.permute.xlu0 %767
    %769 = vrot.lane.b32.xlu0 %v762, 127
    %v770 = vpop.permute.xlu0 %769
    %v775 = vadd.f32 %v736, %v764
    %v776 = vadd.f32 %v737, %v766
    %v777 = vadd.f32 %v738, %v768
    %v778 = vadd.f32 %v739, %v770
    %v779 = vstv %s195
    %v780 = vmul.f32 %v779, %v277
    %v781 = vmul.f32 %v779, %v278
    %v782 = vmul.f32 %v779, %v279
    %v783 = vmul.f32 %v779, %v280
    %v784 = vmul.f32 %v779, %v281
    %v785 = vmul.f32 %v779, %v282
    %v792 = vrot.slane %v780, 2
    %v793 = vrot.slane %v781, 2
    %v794 = vsel %vm721, %v792, %v793
    %v795 = vrot.slane %v782, 2
    %v796 = vsel %vm721, %v793, %v795
    %v797 = vrot.slane %v783, 2
    %v798 = vrot.slane %v784, 2
    %v799 = vsel %vm721, %v797, %v798
    %v800 = vrot.slane %v785, 2
    %v801 = vsel %vm721, %v798, %v800
    %802 = vrot.lane.b32.xlu0 %v794, 126
    %v803 = vpop.permute.xlu0 %802
    %804 = vrot.lane.b32.xlu0 %v796, 126
    %v805 = vpop.permute.xlu0 %804
    %806 = vrot.lane.b32.xlu0 %v799, 126
    %v807 = vpop.permute.xlu0 %806
    %808 = vrot.lane.b32.xlu0 %v801, 126
    %v809 = vpop.permute.xlu0 %808
    %v814 = vadd.f32 %v775, %v803
    %v815 = vadd.f32 %v776, %v805
    %v816 = vadd.f32 %v777, %v807
    %v817 = vadd.f32 %v778, %v809
    %v818 = vstv %s196
    %v819 = vmul.f32 %v818, %v277
    %v820 = vmul.f32 %v818, %v278
    %v821 = vmul.f32 %v818, %v279
    %v822 = vmul.f32 %v818, %v280
    %v823 = vmul.f32 %v818, %v281
    %v824 = vmul.f32 %v818, %v282
    %v831 = vrot.slane %v819, 2
    %v832 = vrot.slane %v820, 2
    %v833 = vsel %vm721, %v831, %v832
    %v834 = vrot.slane %v821, 2
    %v835 = vsel %vm721, %v832, %v834
    %v836 = vrot.slane %v822, 2
    %v837 = vrot.slane %v823, 2
    %v838 = vsel %vm721, %v836, %v837
    %v839 = vrot.slane %v824, 2
    %v840 = vsel %vm721, %v837, %v839
    %841 = vrot.lane.b32.xlu0 %v833, 125
    %v842 = vpop.permute.xlu0 %841
    %843 = vrot.lane.b32.xlu0 %v835, 125
    %v844 = vpop.permute.xlu0 %843
    %845 = vrot.lane.b32.xlu0 %v838, 125
    %v846 = vpop.permute.xlu0 %845
    %847 = vrot.lane.b32.xlu0 %v840, 125
    %v848 = vpop.permute.xlu0 %847
    %v853 = vadd.f32 %v814, %v842
    %v854 = vadd.f32 %v815, %v844
    %v855 = vadd.f32 %v816, %v846
    %v856 = vadd.f32 %v817, %v848
    %v857 = vstv %s197
    %v858 = vmul.f32 %v857, %v277
    %v859 = vmul.f32 %v857, %v278
    %v860 = vmul.f32 %v857, %v279
    %v861 = vmul.f32 %v857, %v280
    %v862 = vmul.f32 %v857, %v281
    %v863 = vmul.f32 %v857, %v282
    %v870 = vrot.slane %v858, 2
    %v871 = vrot.slane %v859, 2
    %v872 = vsel %vm721, %v870, %v871
    %v873 = vrot.slane %v860, 2
    %v874 = vsel %vm721, %v871, %v873
    %v875 = vrot.slane %v861, 2
    %v876 = vrot.slane %v862, 2
    %v877 = vsel %vm721, %v875, %v876
    %v878 = vrot.slane %v863, 2
    %v879 = vsel %vm721, %v876, %v878
    %880 = vrot.lane.b32.xlu0 %v872, 124
    %v881 = vpop.permute.xlu0 %880
    %882 = vrot.lane.b32.xlu0 %v874, 124
    %v883 = vpop.permute.xlu0 %882
    %884 = vrot.lane.b32.xlu0 %v877, 124
    %v885 = vpop.permute.xlu0 %884
    %886 = vrot.lane.b32.xlu0 %v879, 124
    %v887 = vpop.permute.xlu0 %886
    %v892 = vadd.f32 %v853, %v881
    %v893 = vadd.f32 %v854, %v883
    %v894 = vadd.f32 %v855, %v885
    %v895 = vadd.f32 %v856, %v887
    %v896 = vstv %s198
    %v897 = vmul.f32 %v896, %v277
    %v898 = vmul.f32 %v896, %v278
    %v899 = vmul.f32 %v896, %v279
    %v900 = vmul.f32 %v896, %v280
    %v901 = vmul.f32 %v896, %v281
    %v902 = vmul.f32 %v896, %v282
    %v909 = vrot.slane %v897, 2
    %v910 = vrot.slane %v898, 2
    %v911 = vsel %vm721, %v909, %v910
    %v912 = vrot.slane %v899, 2
    %v913 = vsel %vm721, %v910, %v912
    %v914 = vrot.slane %v900, 2
    %v915 = vrot.slane %v901, 2
    %v916 = vsel %vm721, %v914, %v915
    %v917 = vrot.slane %v902, 2
    %v918 = vsel %vm721, %v915, %v917
    %919 = vrot.lane.b32.xlu0 %v911, 123
    %v920 = vpop.permute.xlu0 %919
    %921 = vrot.lane.b32.xlu0 %v913, 123
    %v922 = vpop.permute.xlu0 %921
    %923 = vrot.lane.b32.xlu0 %v916, 123
    %v924 = vpop.permute.xlu0 %923
    %925 = vrot.lane.b32.xlu0 %v918, 123
    %v926 = vpop.permute.xlu0 %925
    %v931 = vadd.f32 %v892, %v920
    %v932 = vadd.f32 %v893, %v922
    %v933 = vadd.f32 %v894, %v924
    %v934 = vadd.f32 %v895, %v926
    %v935 = vstv %s199
    %v936 = vmul.f32 %v935, %v277
    %v937 = vmul.f32 %v935, %v278
    %v938 = vmul.f32 %v935, %v279
    %v939 = vmul.f32 %v935, %v280
    %v940 = vmul.f32 %v935, %v281
    %v941 = vmul.f32 %v935, %v282
    %v948 = vrot.slane %v936, 2
    %v949 = vrot.slane %v937, 2
    %v950 = vsel %vm721, %v948, %v949
    %v951 = vrot.slane %v938, 2
    %v952 = vsel %vm721, %v949, %v951
    %v953 = vrot.slane %v939, 2
    %v954 = vrot.slane %v940, 2
    %v955 = vsel %vm721, %v953, %v954
    %v956 = vrot.slane %v941, 2
    %v957 = vsel %vm721, %v954, %v956
    %958 = vrot.lane.b32.xlu0 %v950, 122
    %v959 = vpop.permute.xlu0 %958
    %960 = vrot.lane.b32.xlu0 %v952, 122
    %v961 = vpop.permute.xlu0 %960
    %962 = vrot.lane.b32.xlu0 %v955, 122
    %v963 = vpop.permute.xlu0 %962
    %964 = vrot.lane.b32.xlu0 %v957, 122
    %v965 = vpop.permute.xlu0 %964
    %v970 = vadd.f32 %v931, %v959
    %v971 = vadd.f32 %v932, %v961
    %v972 = vadd.f32 %v933, %v963
    %v973 = vadd.f32 %v934, %v965
    %v974 = vstv %s200
    %v975 = vmul.f32 %v974, %v277
    %v976 = vmul.f32 %v974, %v278
    %v977 = vmul.f32 %v974, %v279
    %v978 = vmul.f32 %v974, %v280
    %v979 = vmul.f32 %v974, %v281
    %v980 = vmul.f32 %v974, %v282
    %vm987 = vcmask 1044480
    %v988 = vrot.slane %v975, 3
    %v989 = vrot.slane %v976, 3
    %v990 = vsel %vm987, %v988, %v989
    %v991 = vrot.slane %v977, 3
    %v992 = vsel %vm987, %v989, %v991
    %v993 = vrot.slane %v978, 3
    %v994 = vrot.slane %v979, 3
    %v995 = vsel %vm987, %v993, %v994
    %v996 = vrot.slane %v980, 3
    %v997 = vsel %vm987, %v994, %v996
    %v1002 = vadd.f32 %v970, %v990
    %v1003 = vadd.f32 %v971, %v992
    %v1004 = vadd.f32 %v972, %v995
    %v1005 = vadd.f32 %v973, %v997
    %v1006 = vstv %s201
    %v1007 = vmul.f32 %v1006, %v277
    %v1008 = vmul.f32 %v1006, %v278
    %v1009 = vmul.f32 %v1006, %v279
    %v1010 = vmul.f32 %v1006, %v280
    %v1011 = vmul.f32 %v1006, %v281
    %v1012 = vmul.f32 %v1006, %v282
    %v1019 = vrot.slane %v1007, 3
    %v1020 = vrot.slane %v1008, 3
    %v1021 = vsel %vm987, %v1019, %v1020
    %v1022 = vrot.slane %v1009, 3
    %v1023 = vsel %vm987, %v1020, %v1022
    %v1024 = vrot.slane %v1010, 3
    %v1025 = vrot.slane %v1011, 3
    %v1026 = vsel %vm987, %v1024, %v1025
    %v1027 = vrot.slane %v1012, 3
    %v1028 = vsel %vm987, %v1025, %v1027
    %1029 = vrot.lane.b32.xlu0 %v1021, 127
    %v1030 = vpop.permute.xlu0 %1029
    %1031 = vrot.lane.b32.xlu0 %v1023, 127
    %v1032 = vpop.permute.xlu0 %1031
    %1033 = vrot.lane.b32.xlu0 %v1026, 127
    %v1034 = vpop.permute.xlu0 %1033
    %1035 = vrot.lane.b32.xlu0 %v1028, 127
    %v1036 = vpop.permute.xlu0 %1035
    %v1041 = vadd.f32 %v1002, %v1030
    %v1042 = vadd.f32 %v1003, %v1032
    %v1043 = vadd.f32 %v1004, %v1034
    %v1044 = vadd.f32 %v1005, %v1036
    %v1045 = vstv %s202
    %v1046 = vmul.f32 %v1045, %v277
    %v1047 = vmul.f32 %v1045, %v278
    %v1048 = vmul.f32 %v1045, %v279
    %v1049 = vmul.f32 %v1045, %v280
    %v1050 = vmul.f32 %v1045, %v281
    %v1051 = vmul.f32 %v1045, %v282
    %v1058 = vrot.slane %v1046, 3
    %v1059 = vrot.slane %v1047, 3
    %v1060 = vsel %vm987, %v1058, %v1059
    %v1061 = vrot.slane %v1048, 3
    %v1062 = vsel %vm987, %v1059, %v1061
    %v1063 = vrot.slane %v1049, 3
    %v1064 = vrot.slane %v1050, 3
    %v1065 = vsel %vm987, %v1063, %v1064
    %v1066 = vrot.slane %v1051, 3
    %v1067 = vsel %vm987, %v1064, %v1066
    %1068 = vrot.lane.b32.xlu0 %v1060, 126
    %v1069 = vpop.permute.xlu0 %1068
    %1070 = vrot.lane.b32.xlu0 %v1062, 126
    %v1071 = vpop.permute.xlu0 %1070
    %1072 = vrot.lane.b32.xlu0 %v1065, 126
    %v1073 = vpop.permute.xlu0 %1072
    %1074 = vrot.lane.b32.xlu0 %v1067, 126
    %v1075 = vpop.permute.xlu0 %1074
    %v1080 = vadd.f32 %v1041, %v1069
    %v1081 = vadd.f32 %v1042, %v1071
    %v1082 = vadd.f32 %v1043, %v1073
    %v1083 = vadd.f32 %v1044, %v1075
    %v1084 = vstv %s203
    %v1085 = vmul.f32 %v1084, %v277
    %v1086 = vmul.f32 %v1084, %v278
    %v1087 = vmul.f32 %v1084, %v279
    %v1088 = vmul.f32 %v1084, %v280
    %v1089 = vmul.f32 %v1084, %v281
    %v1090 = vmul.f32 %v1084, %v282
    %v1097 = vrot.slane %v1085, 3
    %v1098 = vrot.slane %v1086, 3
    %v1099 = vsel %vm987, %v1097, %v1098
    %v1100 = vrot.slane %v1087, 3
    %v1101 = vsel %vm987, %v1098, %v1100
    %v1102 = vrot.slane %v1088, 3
    %v1103 = vrot.slane %v1089, 3
    %v1104 = vsel %vm987, %v1102, %v1103
    %v1105 = vrot.slane %v1090, 3
    %v1106 = vsel %vm987, %v1103, %v1105
    %1107 = vrot.lane.b32.xlu0 %v1099, 125
    %v1108 = vpop.permute.xlu0 %1107
    %1109 = vrot.lane.b32.xlu0 %v1101, 125
    %v1110 = vpop.permute.xlu0 %1109
    %1111 = vrot.lane.b32.xlu0 %v1104, 125
    %v1112 = vpop.permute.xlu0 %1111
    %1113 = vrot.lane.b32.xlu0 %v1106, 125
    %v1114 = vpop.permute.xlu0 %1113
    %v1119 = vadd.f32 %v1080, %v1108
    %v1120 = vadd.f32 %v1081, %v1110
    %v1121 = vadd.f32 %v1082, %v1112
    %v1122 = vadd.f32 %v1083, %v1114
    %v1123 = vstv %s204
    %v1124 = vmul.f32 %v1123, %v277
    %v1125 = vmul.f32 %v1123, %v278
    %v1126 = vmul.f32 %v1123, %v279
    %v1127 = vmul.f32 %v1123, %v280
    %v1128 = vmul.f32 %v1123, %v281
    %v1129 = vmul.f32 %v1123, %v282
    %v1136 = vrot.slane %v1124, 3
    %v1137 = vrot.slane %v1125, 3
    %v1138 = vsel %vm987, %v1136, %v1137
    %v1139 = vrot.slane %v1126, 3
    %v1140 = vsel %vm987, %v1137, %v1139
    %v1141 = vrot.slane %v1127, 3
    %v1142 = vrot.slane %v1128, 3
    %v1143 = vsel %vm987, %v1141, %v1142
    %v1144 = vrot.slane %v1129, 3
    %v1145 = vsel %vm987, %v1142, %v1144
    %1146 = vrot.lane.b32.xlu0 %v1138, 124
    %v1147 = vpop.permute.xlu0 %1146
    %1148 = vrot.lane.b32.xlu0 %v1140, 124
    %v1149 = vpop.permute.xlu0 %1148
    %1150 = vrot.lane.b32.xlu0 %v1143, 124
    %v1151 = vpop.permute.xlu0 %1150
    %1152 = vrot.lane.b32.xlu0 %v1145, 124
    %v1153 = vpop.permute.xlu0 %1152
    %v1158 = vadd.f32 %v1119, %v1147
    %v1159 = vadd.f32 %v1120, %v1149
    %v1160 = vadd.f32 %v1121, %v1151
    %v1161 = vadd.f32 %v1122, %v1153
    %v1162 = vstv %s205
    %v1163 = vmul.f32 %v1162, %v277
    %v1164 = vmul.f32 %v1162, %v278
    %v1165 = vmul.f32 %v1162, %v279
    %v1166 = vmul.f32 %v1162, %v280
    %v1167 = vmul.f32 %v1162, %v281
    %v1168 = vmul.f32 %v1162, %v282
    %v1175 = vrot.slane %v1163, 3
    %v1176 = vrot.slane %v1164, 3
    %v1177 = vsel %vm987, %v1175, %v1176
    %v1178 = vrot.slane %v1165, 3
    %v1179 = vsel %vm987, %v1176, %v1178
    %v1180 = vrot.slane %v1166, 3
    %v1181 = vrot.slane %v1167, 3
    %v1182 = vsel %vm987, %v1180, %v1181
    %v1183 = vrot.slane %v1168, 3
    %v1184 = vsel %vm987, %v1181, %v1183
    %1185 = vrot.lane.b32.xlu0 %v1177, 123
    %v1186 = vpop.permute.xlu0 %1185
    %1187 = vrot.lane.b32.xlu0 %v1179, 123
    %v1188 = vpop.permute.xlu0 %1187
    %1189 = vrot.lane.b32.xlu0 %v1182, 123
    %v1190 = vpop.permute.xlu0 %1189
    %1191 = vrot.lane.b32.xlu0 %v1184, 123
    %v1192 = vpop.permute.xlu0 %1191
    %v1197 = vadd.f32 %v1158, %v1186
    %v1198 = vadd.f32 %v1159, %v1188
    %v1199 = vadd.f32 %v1160, %v1190
    %v1200 = vadd.f32 %v1161, %v1192
    %v1201 = vstv %s206
    %v1202 = vmul.f32 %v1201, %v277
    %v1203 = vmul.f32 %v1201, %v278
    %v1204 = vmul.f32 %v1201, %v279
    %v1205 = vmul.f32 %v1201, %v280
    %v1206 = vmul.f32 %v1201, %v281
    %v1207 = vmul.f32 %v1201, %v282
    %v1214 = vrot.slane %v1202, 3
    %v1215 = vrot.slane %v1203, 3
    %v1216 = vsel %vm987, %v1214, %v1215
    %v1217 = vrot.slane %v1204, 3
    %v1218 = vsel %vm987, %v1215, %v1217
    %v1219 = vrot.slane %v1205, 3
    %v1220 = vrot.slane %v1206, 3
    %v1221 = vsel %vm987, %v1219, %v1220
    %v1222 = vrot.slane %v1207, 3
    %v1223 = vsel %vm987, %v1220, %v1222
    %1224 = vrot.lane.b32.xlu0 %v1216, 122
    %v1225 = vpop.permute.xlu0 %1224
    %1226 = vrot.lane.b32.xlu0 %v1218, 122
    %v1227 = vpop.permute.xlu0 %1226
    %1228 = vrot.lane.b32.xlu0 %v1221, 122
    %v1229 = vpop.permute.xlu0 %1228
    %1230 = vrot.lane.b32.xlu0 %v1223, 122
    %v1231 = vpop.permute.xlu0 %1230
    %v1236 = vadd.f32 %v1197, %v1225
    %v1237 = vadd.f32 %v1198, %v1227
    %v1238 = vadd.f32 %v1199, %v1229
    %v1239 = vadd.f32 %v1200, %v1231
    %v1240 = vstv %s207
    %v1241 = vmul.f32 %v1240, %v277
    %v1242 = vmul.f32 %v1240, %v278
    %v1243 = vmul.f32 %v1240, %v279
    %v1244 = vmul.f32 %v1240, %v280
    %v1245 = vmul.f32 %v1240, %v281
    %v1246 = vmul.f32 %v1240, %v282
    %vm1253 = vcmask 1043456
    %v1254 = vrot.slane %v1241, 4
    %v1255 = vrot.slane %v1242, 4
    %v1256 = vsel %vm1253, %v1254, %v1255
    %v1257 = vrot.slane %v1243, 4
    %v1258 = vsel %vm1253, %v1255, %v1257
    %v1259 = vrot.slane %v1244, 4
    %v1260 = vrot.slane %v1245, 4
    %v1261 = vsel %vm1253, %v1259, %v1260
    %v1262 = vrot.slane %v1246, 4
    %v1263 = vsel %vm1253, %v1260, %v1262
    %v1268 = vadd.f32 %v1236, %v1256
    %v1269 = vadd.f32 %v1237, %v1258
    %v1270 = vadd.f32 %v1238, %v1261
    %v1271 = vadd.f32 %v1239, %v1263
    %v1272 = vstv %s208
    %v1273 = vmul.f32 %v1272, %v277
    %v1274 = vmul.f32 %v1272, %v278
    %v1275 = vmul.f32 %v1272, %v279
    %v1276 = vmul.f32 %v1272, %v280
    %v1277 = vmul.f32 %v1272, %v281
    %v1278 = vmul.f32 %v1272, %v282
    %v1285 = vrot.slane %v1273, 4
    %v1286 = vrot.slane %v1274, 4
    %v1287 = vsel %vm1253, %v1285, %v1286
    %v1288 = vrot.slane %v1275, 4
    %v1289 = vsel %vm1253, %v1286, %v1288
    %v1290 = vrot.slane %v1276, 4
    %v1291 = vrot.slane %v1277, 4
    %v1292 = vsel %vm1253, %v1290, %v1291
    %v1293 = vrot.slane %v1278, 4
    %v1294 = vsel %vm1253, %v1291, %v1293
    %1295 = vrot.lane.b32.xlu0 %v1287, 127
    %v1296 = vpop.permute.xlu0 %1295
    %1297 = vrot.lane.b32.xlu0 %v1289, 127
    %v1298 = vpop.permute.xlu0 %1297
    %1299 = vrot.lane.b32.xlu0 %v1292, 127
    %v1300 = vpop.permute.xlu0 %1299
    %1301 = vrot.lane.b32.xlu0 %v1294, 127
    %v1302 = vpop.permute.xlu0 %1301
    %v1307 = vadd.f32 %v1268, %v1296
    %v1308 = vadd.f32 %v1269, %v1298
    %v1309 = vadd.f32 %v1270, %v1300
    %v1310 = vadd.f32 %v1271, %v1302
    %v1311 = vstv %s209
    %v1312 = vmul.f32 %v1311, %v277
    %v1313 = vmul.f32 %v1311, %v278
    %v1314 = vmul.f32 %v1311, %v279
    %v1315 = vmul.f32 %v1311, %v280
    %v1316 = vmul.f32 %v1311, %v281
    %v1317 = vmul.f32 %v1311, %v282
    %v1324 = vrot.slane %v1312, 4
    %v1325 = vrot.slane %v1313, 4
    %v1326 = vsel %vm1253, %v1324, %v1325
    %v1327 = vrot.slane %v1314, 4
    %v1328 = vsel %vm1253, %v1325, %v1327
    %v1329 = vrot.slane %v1315, 4
    %v1330 = vrot.slane %v1316, 4
    %v1331 = vsel %vm1253, %v1329, %v1330
    %v1332 = vrot.slane %v1317, 4
    %v1333 = vsel %vm1253, %v1330, %v1332
    %1334 = vrot.lane.b32.xlu0 %v1326, 126
    %v1335 = vpop.permute.xlu0 %1334
    %1336 = vrot.lane.b32.xlu0 %v1328, 126
    %v1337 = vpop.permute.xlu0 %1336
    %1338 = vrot.lane.b32.xlu0 %v1331, 126
    %v1339 = vpop.permute.xlu0 %1338
    %1340 = vrot.lane.b32.xlu0 %v1333, 126
    %v1341 = vpop.permute.xlu0 %1340
    %v1346 = vadd.f32 %v1307, %v1335
    %v1347 = vadd.f32 %v1308, %v1337
    %v1348 = vadd.f32 %v1309, %v1339
    %v1349 = vadd.f32 %v1310, %v1341
    %v1350 = vstv %s210
    %v1351 = vmul.f32 %v1350, %v277
    %v1352 = vmul.f32 %v1350, %v278
    %v1353 = vmul.f32 %v1350, %v279
    %v1354 = vmul.f32 %v1350, %v280
    %v1355 = vmul.f32 %v1350, %v281
    %v1356 = vmul.f32 %v1350, %v282
    %v1363 = vrot.slane %v1351, 4
    %v1364 = vrot.slane %v1352, 4
    %v1365 = vsel %vm1253, %v1363, %v1364
    %v1366 = vrot.slane %v1353, 4
    %v1367 = vsel %vm1253, %v1364, %v1366
    %v1368 = vrot.slane %v1354, 4
    %v1369 = vrot.slane %v1355, 4
    %v1370 = vsel %vm1253, %v1368, %v1369
    %v1371 = vrot.slane %v1356, 4
    %v1372 = vsel %vm1253, %v1369, %v1371
    %1373 = vrot.lane.b32.xlu0 %v1365, 125
    %v1374 = vpop.permute.xlu0 %1373
    %1375 = vrot.lane.b32.xlu0 %v1367, 125
    %v1376 = vpop.permute.xlu0 %1375
    %1377 = vrot.lane.b32.xlu0 %v1370, 125
    %v1378 = vpop.permute.xlu0 %1377
    %1379 = vrot.lane.b32.xlu0 %v1372, 125
    %v1380 = vpop.permute.xlu0 %1379
    %v1385 = vadd.f32 %v1346, %v1374
    %v1386 = vadd.f32 %v1347, %v1376
    %v1387 = vadd.f32 %v1348, %v1378
    %v1388 = vadd.f32 %v1349, %v1380
    %v1389 = vstv %s211
    %v1390 = vmul.f32 %v1389, %v277
    %v1391 = vmul.f32 %v1389, %v278
    %v1392 = vmul.f32 %v1389, %v279
    %v1393 = vmul.f32 %v1389, %v280
    %v1394 = vmul.f32 %v1389, %v281
    %v1395 = vmul.f32 %v1389, %v282
    %v1402 = vrot.slane %v1390, 4
    %v1403 = vrot.slane %v1391, 4
    %v1404 = vsel %vm1253, %v1402, %v1403
    %v1405 = vrot.slane %v1392, 4
    %v1406 = vsel %vm1253, %v1403, %v1405
    %v1407 = vrot.slane %v1393, 4
    %v1408 = vrot.slane %v1394, 4
    %v1409 = vsel %vm1253, %v1407, %v1408
    %v1410 = vrot.slane %v1395, 4
    %v1411 = vsel %vm1253, %v1408, %v1410
    %1412 = vrot.lane.b32.xlu0 %v1404, 124
    %v1413 = vpop.permute.xlu0 %1412
    %1414 = vrot.lane.b32.xlu0 %v1406, 124
    %v1415 = vpop.permute.xlu0 %1414
    %1416 = vrot.lane.b32.xlu0 %v1409, 124
    %v1417 = vpop.permute.xlu0 %1416
    %1418 = vrot.lane.b32.xlu0 %v1411, 124
    %v1419 = vpop.permute.xlu0 %1418
    %v1424 = vadd.f32 %v1385, %v1413
    %v1425 = vadd.f32 %v1386, %v1415
    %v1426 = vadd.f32 %v1387, %v1417
    %v1427 = vadd.f32 %v1388, %v1419
    %v1428 = vstv %s212
    %v1429 = vmul.f32 %v1428, %v277
    %v1430 = vmul.f32 %v1428, %v278
    %v1431 = vmul.f32 %v1428, %v279
    %v1432 = vmul.f32 %v1428, %v280
    %v1433 = vmul.f32 %v1428, %v281
    %v1434 = vmul.f32 %v1428, %v282
    %v1441 = vrot.slane %v1429, 4
    %v1442 = vrot.slane %v1430, 4
    %v1443 = vsel %vm1253, %v1441, %v1442
    %v1444 = vrot.slane %v1431, 4
    %v1445 = vsel %vm1253, %v1442, %v1444
    %v1446 = vrot.slane %v1432, 4
    %v1447 = vrot.slane %v1433, 4
    %v1448 = vsel %vm1253, %v1446, %v1447
    %v1449 = vrot.slane %v1434, 4
    %v1450 = vsel %vm1253, %v1447, %v1449
    %1451 = vrot.lane.b32.xlu0 %v1443, 123
    %v1452 = vpop.permute.xlu0 %1451
    %1453 = vrot.lane.b32.xlu0 %v1445, 123
    %v1454 = vpop.permute.xlu0 %1453
    %1455 = vrot.lane.b32.xlu0 %v1448, 123
    %v1456 = vpop.permute.xlu0 %1455
    %1457 = vrot.lane.b32.xlu0 %v1450, 123
    %v1458 = vpop.permute.xlu0 %1457
    %v1463 = vadd.f32 %v1424, %v1452
    %v1464 = vadd.f32 %v1425, %v1454
    %v1465 = vadd.f32 %v1426, %v1456
    %v1466 = vadd.f32 %v1427, %v1458
    %v1467 = vstv %s213
    %v1468 = vmul.f32 %v1467, %v277
    %v1469 = vmul.f32 %v1467, %v278
    %v1470 = vmul.f32 %v1467, %v279
    %v1471 = vmul.f32 %v1467, %v280
    %v1472 = vmul.f32 %v1467, %v281
    %v1473 = vmul.f32 %v1467, %v282
    %v1480 = vrot.slane %v1468, 4
    %v1481 = vrot.slane %v1469, 4
    %v1482 = vsel %vm1253, %v1480, %v1481
    %v1483 = vrot.slane %v1470, 4
    %v1484 = vsel %vm1253, %v1481, %v1483
    %v1485 = vrot.slane %v1471, 4
    %v1486 = vrot.slane %v1472, 4
    %v1487 = vsel %vm1253, %v1485, %v1486
    %v1488 = vrot.slane %v1473, 4
    %v1489 = vsel %vm1253, %v1486, %v1488
    %1490 = vrot.lane.b32.xlu0 %v1482, 122
    %v1491 = vpop.permute.xlu0 %1490
    %1492 = vrot.lane.b32.xlu0 %v1484, 122
    %v1493 = vpop.permute.xlu0 %1492
    %1494 = vrot.lane.b32.xlu0 %v1487, 122
    %v1495 = vpop.permute.xlu0 %1494
    %1496 = vrot.lane.b32.xlu0 %v1489, 122
    %v1497 = vpop.permute.xlu0 %1496
    %v1502 = vadd.f32 %v1463, %v1491
    %v1503 = vadd.f32 %v1464, %v1493
    %v1504 = vadd.f32 %v1465, %v1495
    %v1505 = vadd.f32 %v1466, %v1497
    %v1506 = vstv %s214
    %v1507 = vmul.f32 %v1506, %v277
    %v1508 = vmul.f32 %v1506, %v278
    %v1509 = vmul.f32 %v1506, %v279
    %v1510 = vmul.f32 %v1506, %v280
    %v1511 = vmul.f32 %v1506, %v281
    %v1512 = vmul.f32 %v1506, %v282
    %vm1519 = vcmask 1042432
    %v1520 = vrot.slane %v1507, 5
    %v1521 = vrot.slane %v1508, 5
    %v1522 = vsel %vm1519, %v1520, %v1521
    %v1523 = vrot.slane %v1509, 5
    %v1524 = vsel %vm1519, %v1521, %v1523
    %v1525 = vrot.slane %v1510, 5
    %v1526 = vrot.slane %v1511, 5
    %v1527 = vsel %vm1519, %v1525, %v1526
    %v1528 = vrot.slane %v1512, 5
    %v1529 = vsel %vm1519, %v1526, %v1528
    %v1534 = vadd.f32 %v1502, %v1522
    %v1535 = vadd.f32 %v1503, %v1524
    %v1536 = vadd.f32 %v1504, %v1527
    %v1537 = vadd.f32 %v1505, %v1529
    %v1538 = vstv %s215
    %v1539 = vmul.f32 %v1538, %v277
    %v1540 = vmul.f32 %v1538, %v278
    %v1541 = vmul.f32 %v1538, %v279
    %v1542 = vmul.f32 %v1538, %v280
    %v1543 = vmul.f32 %v1538, %v281
    %v1544 = vmul.f32 %v1538, %v282
    %v1551 = vrot.slane %v1539, 5
    %v1552 = vrot.slane %v1540, 5
    %v1553 = vsel %vm1519, %v1551, %v1552
    %v1554 = vrot.slane %v1541, 5
    %v1555 = vsel %vm1519, %v1552, %v1554
    %v1556 = vrot.slane %v1542, 5
    %v1557 = vrot.slane %v1543, 5
    %v1558 = vsel %vm1519, %v1556, %v1557
    %v1559 = vrot.slane %v1544, 5
    %v1560 = vsel %vm1519, %v1557, %v1559
    %1561 = vrot.lane.b32.xlu0 %v1553, 127
    %v1562 = vpop.permute.xlu0 %1561
    %1563 = vrot.lane.b32.xlu0 %v1555, 127
    %v1564 = vpop.permute.xlu0 %1563
    %1565 = vrot.lane.b32.xlu0 %v1558, 127
    %v1566 = vpop.permute.xlu0 %1565
    %1567 = vrot.lane.b32.xlu0 %v1560, 127
    %v1568 = vpop.permute.xlu0 %1567
    %v1573 = vadd.f32 %v1534, %v1562
    %v1574 = vadd.f32 %v1535, %v1564
    %v1575 = vadd.f32 %v1536, %v1566
    %v1576 = vadd.f32 %v1537, %v1568
    %v1577 = vstv %s216
    %v1578 = vmul.f32 %v1577, %v277
    %v1579 = vmul.f32 %v1577, %v278
    %v1580 = vmul.f32 %v1577, %v279
    %v1581 = vmul.f32 %v1577, %v280
    %v1582 = vmul.f32 %v1577, %v281
    %v1583 = vmul.f32 %v1577, %v282
    %v1590 = vrot.slane %v1578, 5
    %v1591 = vrot.slane %v1579, 5
    %v1592 = vsel %vm1519, %v1590, %v1591
    %v1593 = vrot.slane %v1580, 5
    %v1594 = vsel %vm1519, %v1591, %v1593
    %v1595 = vrot.slane %v1581, 5
    %v1596 = vrot.slane %v1582, 5
    %v1597 = vsel %vm1519, %v1595, %v1596
    %v1598 = vrot.slane %v1583, 5
    %v1599 = vsel %vm1519, %v1596, %v1598
    %1600 = vrot.lane.b32.xlu0 %v1592, 126
    %v1601 = vpop.permute.xlu0 %1600
    %1602 = vrot.lane.b32.xlu0 %v1594, 126
    %v1603 = vpop.permute.xlu0 %1602
    %1604 = vrot.lane.b32.xlu0 %v1597, 126
    %v1605 = vpop.permute.xlu0 %1604
    %1606 = vrot.lane.b32.xlu0 %v1599, 126
    %v1607 = vpop.permute.xlu0 %1606
    %v1612 = vadd.f32 %v1573, %v1601
    %v1613 = vadd.f32 %v1574, %v1603
    %v1614 = vadd.f32 %v1575, %v1605
    %v1615 = vadd.f32 %v1576, %v1607
    %v1616 = vstv %s217
    %v1617 = vmul.f32 %v1616, %v277
    %v1618 = vmul.f32 %v1616, %v278
    %v1619 = vmul.f32 %v1616, %v279
    %v1620 = vmul.f32 %v1616, %v280
    %v1621 = vmul.f32 %v1616, %v281
    %v1622 = vmul.f32 %v1616, %v282
    %v1629 = vrot.slane %v1617, 5
    %v1630 = vrot.slane %v1618, 5
    %v1631 = vsel %vm1519, %v1629, %v1630
    %v1632 = vrot.slane %v1619, 5
    %v1633 = vsel %vm1519, %v1630, %v1632
    %v1634 = vrot.slane %v1620, 5
    %v1635 = vrot.slane %v1621, 5
    %v1636 = vsel %vm1519, %v1634, %v1635
    %v1637 = vrot.slane %v1622, 5
    %v1638 = vsel %vm1519, %v1635, %v1637
    %1639 = vrot.lane.b32.xlu0 %v1631, 125
    %v1640 = vpop.permute.xlu0 %1639
    %1641 = vrot.lane.b32.xlu0 %v1633, 125
    %v1642 = vpop.permute.xlu0 %1641
    %1643 = vrot.lane.b32.xlu0 %v1636, 125
    %v1644 = vpop.permute.xlu0 %1643
    %1645 = vrot.lane.b32.xlu0 %v1638, 125
    %v1646 = vpop.permute.xlu0 %1645
    %v1651 = vadd.f32 %v1612, %v1640
    %v1652 = vadd.f32 %v1613, %v1642
    %v1653 = vadd.f32 %v1614, %v1644
    %v1654 = vadd.f32 %v1615, %v1646
    %v1655 = vstv %s218
    %v1656 = vmul.f32 %v1655, %v277
    %v1657 = vmul.f32 %v1655, %v278
    %v1658 = vmul.f32 %v1655, %v279
    %v1659 = vmul.f32 %v1655, %v280
    %v1660 = vmul.f32 %v1655, %v281
    %v1661 = vmul.f32 %v1655, %v282
    %v1668 = vrot.slane %v1656, 5
    %v1669 = vrot.slane %v1657, 5
    %v1670 = vsel %vm1519, %v1668, %v1669
    %v1671 = vrot.slane %v1658, 5
    %v1672 = vsel %vm1519, %v1669, %v1671
    %v1673 = vrot.slane %v1659, 5
    %v1674 = vrot.slane %v1660, 5
    %v1675 = vsel %vm1519, %v1673, %v1674
    %v1676 = vrot.slane %v1661, 5
    %v1677 = vsel %vm1519, %v1674, %v1676
    %1678 = vrot.lane.b32.xlu0 %v1670, 124
    %v1679 = vpop.permute.xlu0 %1678
    %1680 = vrot.lane.b32.xlu0 %v1672, 124
    %v1681 = vpop.permute.xlu0 %1680
    %1682 = vrot.lane.b32.xlu0 %v1675, 124
    %v1683 = vpop.permute.xlu0 %1682
    %1684 = vrot.lane.b32.xlu0 %v1677, 124
    %v1685 = vpop.permute.xlu0 %1684
    %v1690 = vadd.f32 %v1651, %v1679
    %v1691 = vadd.f32 %v1652, %v1681
    %v1692 = vadd.f32 %v1653, %v1683
    %v1693 = vadd.f32 %v1654, %v1685
    %v1694 = vstv %s219
    %v1695 = vmul.f32 %v1694, %v277
    %v1696 = vmul.f32 %v1694, %v278
    %v1697 = vmul.f32 %v1694, %v279
    %v1698 = vmul.f32 %v1694, %v280
    %v1699 = vmul.f32 %v1694, %v281
    %v1700 = vmul.f32 %v1694, %v282
    %v1707 = vrot.slane %v1695, 5
    %v1708 = vrot.slane %v1696, 5
    %v1709 = vsel %vm1519, %v1707, %v1708
    %v1710 = vrot.slane %v1697, 5
    %v1711 = vsel %vm1519, %v1708, %v1710
    %v1712 = vrot.slane %v1698, 5
    %v1713 = vrot.slane %v1699, 5
    %v1714 = vsel %vm1519, %v1712, %v1713
    %v1715 = vrot.slane %v1700, 5
    %v1716 = vsel %vm1519, %v1713, %v1715
    %1717 = vrot.lane.b32.xlu0 %v1709, 123
    %v1718 = vpop.permute.xlu0 %1717
    %1719 = vrot.lane.b32.xlu0 %v1711, 123
    %v1720 = vpop.permute.xlu0 %1719
    %1721 = vrot.lane.b32.xlu0 %v1714, 123
    %v1722 = vpop.permute.xlu0 %1721
    %1723 = vrot.lane.b32.xlu0 %v1716, 123
    %v1724 = vpop.permute.xlu0 %1723
    %v1729 = vadd.f32 %v1690, %v1718
    %v1730 = vadd.f32 %v1691, %v1720
    %v1731 = vadd.f32 %v1692, %v1722
    %v1732 = vadd.f32 %v1693, %v1724
    %v1733 = vstv %s220
    %v1734 = vmul.f32 %v1733, %v277
    %v1735 = vmul.f32 %v1733, %v278
    %v1736 = vmul.f32 %v1733, %v279
    %v1737 = vmul.f32 %v1733, %v280
    %v1738 = vmul.f32 %v1733, %v281
    %v1739 = vmul.f32 %v1733, %v282
    %v1746 = vrot.slane %v1734, 5
    %v1747 = vrot.slane %v1735, 5
    %v1748 = vsel %vm1519, %v1746, %v1747
    %v1749 = vrot.slane %v1736, 5
    %v1750 = vsel %vm1519, %v1747, %v1749
    %v1751 = vrot.slane %v1737, 5
    %v1752 = vrot.slane %v1738, 5
    %v1753 = vsel %vm1519, %v1751, %v1752
    %v1754 = vrot.slane %v1739, 5
    %v1755 = vsel %vm1519, %v1752, %v1754
    %1756 = vrot.lane.b32.xlu0 %v1748, 122
    %v1757 = vpop.permute.xlu0 %1756
    %1758 = vrot.lane.b32.xlu0 %v1750, 122
    %v1759 = vpop.permute.xlu0 %1758
    %1760 = vrot.lane.b32.xlu0 %v1753, 122
    %v1761 = vpop.permute.xlu0 %1760
    %1762 = vrot.lane.b32.xlu0 %v1755, 122
    %v1763 = vpop.permute.xlu0 %1762
    %v1768 = vadd.f32 %v1729, %v1757
    %v1769 = vadd.f32 %v1730, %v1759
    %v1770 = vadd.f32 %v1731, %v1761
    %v1771 = vadd.f32 %v1732, %v1763
    %v1772 = vstv %s221
    %v1773 = vmul.f32 %v1772, %v277
    %v1774 = vmul.f32 %v1772, %v278
    %v1775 = vmul.f32 %v1772, %v279
    %v1776 = vmul.f32 %v1772, %v280
    %v1777 = vmul.f32 %v1772, %v281
    %v1778 = vmul.f32 %v1772, %v282
    %vm1785 = vcmask 1041408
    %v1786 = vrot.slane %v1773, 6
    %v1787 = vrot.slane %v1774, 6
    %v1788 = vsel %vm1785, %v1786, %v1787
    %v1789 = vrot.slane %v1775, 6
    %v1790 = vsel %vm1785, %v1787, %v1789
    %v1791 = vrot.slane %v1776, 6
    %v1792 = vrot.slane %v1777, 6
    %v1793 = vsel %vm1785, %v1791, %v1792
    %v1794 = vrot.slane %v1778, 6
    %v1795 = vsel %vm1785, %v1792, %v1794
    %v1800 = vadd.f32 %v1768, %v1788
    %v1801 = vadd.f32 %v1769, %v1790
    %v1802 = vadd.f32 %v1770, %v1793
    %v1803 = vadd.f32 %v1771, %v1795
    %v1804 = vstv %s222
    %v1805 = vmul.f32 %v1804, %v277
    %v1806 = vmul.f32 %v1804, %v278
    %v1807 = vmul.f32 %v1804, %v279
    %v1808 = vmul.f32 %v1804, %v280
    %v1809 = vmul.f32 %v1804, %v281
    %v1810 = vmul.f32 %v1804, %v282
    %v1817 = vrot.slane %v1805, 6
    %v1818 = vrot.slane %v1806, 6
    %v1819 = vsel %vm1785, %v1817, %v1818
    %v1820 = vrot.slane %v1807, 6
    %v1821 = vsel %vm1785, %v1818, %v1820
    %v1822 = vrot.slane %v1808, 6
    %v1823 = vrot.slane %v1809, 6
    %v1824 = vsel %vm1785, %v1822, %v1823
    %v1825 = vrot.slane %v1810, 6
    %v1826 = vsel %vm1785, %v1823, %v1825
    %1827 = vrot.lane.b32.xlu0 %v1819, 127
    %v1828 = vpop.permute.xlu0 %1827
    %1829 = vrot.lane.b32.xlu0 %v1821, 127
    %v1830 = vpop.permute.xlu0 %1829
    %1831 = vrot.lane.b32.xlu0 %v1824, 127
    %v1832 = vpop.permute.xlu0 %1831
    %1833 = vrot.lane.b32.xlu0 %v1826, 127
    %v1834 = vpop.permute.xlu0 %1833
    %v1839 = vadd.f32 %v1800, %v1828
    %v1840 = vadd.f32 %v1801, %v1830
    %v1841 = vadd.f32 %v1802, %v1832
    %v1842 = vadd.f32 %v1803, %v1834
    %v1843 = vstv %s223
    %v1844 = vmul.f32 %v1843, %v277
    %v1845 = vmul.f32 %v1843, %v278
    %v1846 = vmul.f32 %v1843, %v279
    %v1847 = vmul.f32 %v1843, %v280
    %v1848 = vmul.f32 %v1843, %v281
    %v1849 = vmul.f32 %v1843, %v282
    %v1856 = vrot.slane %v1844, 6
    %v1857 = vrot.slane %v1845, 6
    %v1858 = vsel %vm1785, %v1856, %v1857
    %v1859 = vrot.slane %v1846, 6
    %v1860 = vsel %vm1785, %v1857, %v1859
    %v1861 = vrot.slane %v1847, 6
    %v1862 = vrot.slane %v1848, 6
    %v1863 = vsel %vm1785, %v1861, %v1862
    %v1864 = vrot.slane %v1849, 6
    %v1865 = vsel %vm1785, %v1862, %v1864
    %1866 = vrot.lane.b32.xlu0 %v1858, 126
    %v1867 = vpop.permute.xlu0 %1866
    %1868 = vrot.lane.b32.xlu0 %v1860, 126
    %v1869 = vpop.permute.xlu0 %1868
    %1870 = vrot.lane.b32.xlu0 %v1863, 126
    %v1871 = vpop.permute.xlu0 %1870
    %1872 = vrot.lane.b32.xlu0 %v1865, 126
    %v1873 = vpop.permute.xlu0 %1872
    %v1878 = vadd.f32 %v1839, %v1867
    %v1879 = vadd.f32 %v1840, %v1869
    %v1880 = vadd.f32 %v1841, %v1871
    %v1881 = vadd.f32 %v1842, %v1873
    %v1882 = vstv %s224
    %v1883 = vmul.f32 %v1882, %v277
    %v1884 = vmul.f32 %v1882, %v278
    %v1885 = vmul.f32 %v1882, %v279
    %v1886 = vmul.f32 %v1882, %v280
    %v1887 = vmul.f32 %v1882, %v281
    %v1888 = vmul.f32 %v1882, %v282
    %v1895 = vrot.slane %v1883, 6
    %v1896 = vrot.slane %v1884, 6
    %v1897 = vsel %vm1785, %v1895, %v1896
    %v1898 = vrot.slane %v1885, 6
    %v1899 = vsel %vm1785, %v1896, %v1898
    %v1900 = vrot.slane %v1886, 6
    %v1901 = vrot.slane %v1887, 6
    %v1902 = vsel %vm1785, %v1900, %v1901
    %v1903 = vrot.slane %v1888, 6
    %v1904 = vsel %vm1785, %v1901, %v1903
    %1905 = vrot.lane.b32.xlu0 %v1897, 125
    %v1906 = vpop.permute.xlu0 %1905
    %1907 = vrot.lane.b32.xlu0 %v1899, 125
    %v1908 = vpop.permute.xlu0 %1907
    %1909 = vrot.lane.b32.xlu0 %v1902, 125
    %v1910 = vpop.permute.xlu0 %1909
    %1911 = vrot.lane.b32.xlu0 %v1904, 125
    %v1912 = vpop.permute.xlu0 %1911
    %v1917 = vadd.f32 %v1878, %v1906
    %v1918 = vadd.f32 %v1879, %v1908
    %v1919 = vadd.f32 %v1880, %v1910
    %v1920 = vadd.f32 %v1881, %v1912
    %v1921 = vstv %s225
    %v1922 = vmul.f32 %v1921, %v277
    %v1923 = vmul.f32 %v1921, %v278
    %v1924 = vmul.f32 %v1921, %v279
    %v1925 = vmul.f32 %v1921, %v280
    %v1926 = vmul.f32 %v1921, %v281
    %v1927 = vmul.f32 %v1921, %v282
    %v1934 = vrot.slane %v1922, 6
    %v1935 = vrot.slane %v1923, 6
    %v1936 = vsel %vm1785, %v1934, %v1935
    %v1937 = vrot.slane %v1924, 6
    %v1938 = vsel %vm1785, %v1935, %v1937
    %v1939 = vrot.slane %v1925, 6
    %v1940 = vrot.slane %v1926, 6
    %v1941 = vsel %vm1785, %v1939, %v1940
    %v1942 = vrot.slane %v1927, 6
    %v1943 = vsel %vm1785, %v1940, %v1942
    %1944 = vrot.lane.b32.xlu0 %v1936, 124
    %v1945 = vpop.permute.xlu0 %1944
    %1946 = vrot.lane.b32.xlu0 %v1938, 124
    %v1947 = vpop.permute.xlu0 %1946
    %1948 = vrot.lane.b32.xlu0 %v1941, 124
    %v1949 = vpop.permute.xlu0 %1948
    %1950 = vrot.lane.b32.xlu0 %v1943, 124
    %v1951 = vpop.permute.xlu0 %1950
    %v1956 = vadd.f32 %v1917, %v1945
    %v1957 = vadd.f32 %v1918, %v1947
    %v1958 = vadd.f32 %v1919, %v1949
    %v1959 = vadd.f32 %v1920, %v1951
    %v1960 = vstv %s226
    %v1961 = vmul.f32 %v1960, %v277
    %v1962 = vmul.f32 %v1960, %v278
    %v1963 = vmul.f32 %v1960, %v279
    %v1964 = vmul.f32 %v1960, %v280
    %v1965 = vmul.f32 %v1960, %v281
    %v1966 = vmul.f32 %v1960, %v282
    %v1973 = vrot.slane %v1961, 6
    %v1974 = vrot.slane %v1962, 6
    %v1975 = vsel %vm1785, %v1973, %v1974
    %v1976 = vrot.slane %v1963, 6
    %v1977 = vsel %vm1785, %v1974, %v1976
    %v1978 = vrot.slane %v1964, 6
    %v1979 = vrot.slane %v1965, 6
    %v1980 = vsel %vm1785, %v1978, %v1979
    %v1981 = vrot.slane %v1966, 6
    %v1982 = vsel %vm1785, %v1979, %v1981
    %1983 = vrot.lane.b32.xlu0 %v1975, 123
    %v1984 = vpop.permute.xlu0 %1983
    %1985 = vrot.lane.b32.xlu0 %v1977, 123
    %v1986 = vpop.permute.xlu0 %1985
    %1987 = vrot.lane.b32.xlu0 %v1980, 123
    %v1988 = vpop.permute.xlu0 %1987
    %1989 = vrot.lane.b32.xlu0 %v1982, 123
    %v1990 = vpop.permute.xlu0 %1989
    %v1995 = vadd.f32 %v1956, %v1984
    %v1996 = vadd.f32 %v1957, %v1986
    %v1997 = vadd.f32 %v1958, %v1988
    %v1998 = vadd.f32 %v1959, %v1990
    %v1999 = vstv %s227
    %v2000 = vmul.f32 %v1999, %v277
    %v2001 = vmul.f32 %v1999, %v278
    %v2002 = vmul.f32 %v1999, %v279
    %v2003 = vmul.f32 %v1999, %v280
    %v2004 = vmul.f32 %v1999, %v281
    %v2005 = vmul.f32 %v1999, %v282
    %v2012 = vrot.slane %v2000, 6
    %v2013 = vrot.slane %v2001, 6
    %v2014 = vsel %vm1785, %v2012, %v2013
    %v2015 = vrot.slane %v2002, 6
    %v2016 = vsel %vm1785, %v2013, %v2015
    %v2017 = vrot.slane %v2003, 6
    %v2018 = vrot.slane %v2004, 6
    %v2019 = vsel %vm1785, %v2017, %v2018
    %v2020 = vrot.slane %v2005, 6
    %v2021 = vsel %vm1785, %v2018, %v2020
    %2022 = vrot.lane.b32.xlu0 %v2014, 122
    %v2023 = vpop.permute.xlu0 %2022
    %2024 = vrot.lane.b32.xlu0 %v2016, 122
    %v2025 = vpop.permute.xlu0 %2024
    %2026 = vrot.lane.b32.xlu0 %v2019, 122
    %v2027 = vpop.permute.xlu0 %2026
    %2028 = vrot.lane.b32.xlu0 %v2021, 122
    %v2029 = vpop.permute.xlu0 %2028
    %v2034 = vadd.f32 %v1995, %v2023
    %v2035 = vadd.f32 %v1996, %v2025
    %v2036 = vadd.f32 %v1997, %v2027
    %v2037 = vadd.f32 %v1998, %v2029
    %v2038 = vld [vmem:[%s174] sm:$0xff]
    %v2039 = vld [vmem:[%s174 + $0x8] sm:$0xff]
    %v2040 = vld [vmem:[%s174 + $0x10] sm:$0x3f]
    %v2041 = vld [vmem:[%s174 + $0x30] sm:$0xff]
    %v2042 = vld [vmem:[%s174 + $0x38] sm:$0xff]
    %v2043 = vld [vmem:[%s174 + $0x40] sm:$0x3f]
    %v2044 = vstv %s228
    %v2045 = vmul.f32 %v2044, %v2038
    %v2046 = vmul.f32 %v2044, %v2039
    %v2047 = vmul.f32 %v2044, %v2041
    %v2048 = vmul.f32 %v2044, %v2042
    %v2049 = vadd.f32 %v2034, %v2045
    %v2050 = vadd.f32 %v2035, %v2046
    %v2051 = vadd.f32 %v2036, %v2047
    %v2052 = vadd.f32 %v2037, %v2048
    %v2053 = vstv %s229
    %v2054 = vmul.f32 %v2053, %v2038
    %v2055 = vmul.f32 %v2053, %v2039
    %v2056 = vmul.f32 %v2053, %v2041
    %v2057 = vmul.f32 %v2053, %v2042
    %2062 = vrot.lane.b32.xlu0 %v2054, 127
    %v2063 = vpop.permute.xlu0 %2062
    %2064 = vrot.lane.b32.xlu0 %v2055, 127
    %v2065 = vpop.permute.xlu0 %2064
    %2066 = vrot.lane.b32.xlu0 %v2056, 127
    %v2067 = vpop.permute.xlu0 %2066
    %2068 = vrot.lane.b32.xlu0 %v2057, 127
    %v2069 = vpop.permute.xlu0 %2068
    %v2074 = vadd.f32 %v2049, %v2063
    %v2075 = vadd.f32 %v2050, %v2065
    %v2076 = vadd.f32 %v2051, %v2067
    %v2077 = vadd.f32 %v2052, %v2069
    %v2078 = vstv %s230
    %v2079 = vmul.f32 %v2078, %v2038
    %v2080 = vmul.f32 %v2078, %v2039
    %v2081 = vmul.f32 %v2078, %v2041
    %v2082 = vmul.f32 %v2078, %v2042
    %2087 = vrot.lane.b32.xlu0 %v2079, 126
    %v2088 = vpop.permute.xlu0 %2087
    %2089 = vrot.lane.b32.xlu0 %v2080, 126
    %v2090 = vpop.permute.xlu0 %2089
    %2091 = vrot.lane.b32.xlu0 %v2081, 126
    %v2092 = vpop.permute.xlu0 %2091
    %2093 = vrot.lane.b32.xlu0 %v2082, 126
    %v2094 = vpop.permute.xlu0 %2093
    %v2099 = vadd.f32 %v2074, %v2088
    %v2100 = vadd.f32 %v2075, %v2090
    %v2101 = vadd.f32 %v2076, %v2092
    %v2102 = vadd.f32 %v2077, %v2094
    %v2103 = vstv %s231
    %v2104 = vmul.f32 %v2103, %v2038
    %v2105 = vmul.f32 %v2103, %v2039
    %v2106 = vmul.f32 %v2103, %v2041
    %v2107 = vmul.f32 %v2103, %v2042
    %2112 = vrot.lane.b32.xlu0 %v2104, 125
    %v2113 = vpop.permute.xlu0 %2112
    %2114 = vrot.lane.b32.xlu0 %v2105, 125
    %v2115 = vpop.permute.xlu0 %2114
    %2116 = vrot.lane.b32.xlu0 %v2106, 125
    %v2117 = vpop.permute.xlu0 %2116
    %2118 = vrot.lane.b32.xlu0 %v2107, 125
    %v2119 = vpop.permute.xlu0 %2118
    %v2124 = vadd.f32 %v2099, %v2113
    %v2125 = vadd.f32 %v2100, %v2115
    %v2126 = vadd.f32 %v2101, %v2117
    %v2127 = vadd.f32 %v2102, %v2119
    %v2128 = vstv %s232
    %v2129 = vmul.f32 %v2128, %v2038
    %v2130 = vmul.f32 %v2128, %v2039
    %v2131 = vmul.f32 %v2128, %v2041
    %v2132 = vmul.f32 %v2128, %v2042
    %2137 = vrot.lane.b32.xlu0 %v2129, 124
    %v2138 = vpop.permute.xlu0 %2137
    %2139 = vrot.lane.b32.xlu0 %v2130, 124
    %v2140 = vpop.permute.xlu0 %2139
    %2141 = vrot.lane.b32.xlu0 %v2131, 124
    %v2142 = vpop.permute.xlu0 %2141
    %2143 = vrot.lane.b32.xlu0 %v2132, 124
    %v2144 = vpop.permute.xlu0 %2143
    %v2149 = vadd.f32 %v2124, %v2138
    %v2150 = vadd.f32 %v2125, %v2140
    %v2151 = vadd.f32 %v2126, %v2142
    %v2152 = vadd.f32 %v2127, %v2144
    %v2153 = vstv %s233
    %v2154 = vmul.f32 %v2153, %v2038
    %v2155 = vmul.f32 %v2153, %v2039
    %v2156 = vmul.f32 %v2153, %v2041
    %v2157 = vmul.f32 %v2153, %v2042
    %2162 = vrot.lane.b32.xlu0 %v2154, 123
    %v2163 = vpop.permute.xlu0 %2162
    %2164 = vrot.lane.b32.xlu0 %v2155, 123
    %v2165 = vpop.permute.xlu0 %2164
    %2166 = vrot.lane.b32.xlu0 %v2156, 123
    %v2167 = vpop.permute.xlu0 %2166
    %2168 = vrot.lane.b32.xlu0 %v2157, 123
    %v2169 = vpop.permute.xlu0 %2168
    %v2174 = vadd.f32 %v2149, %v2163
    %v2175 = vadd.f32 %v2150, %v2165
    %v2176 = vadd.f32 %v2151, %v2167
    %v2177 = vadd.f32 %v2152, %v2169
    %v2178 = vstv %s234
    %v2179 = vmul.f32 %v2178, %v2038
    %v2180 = vmul.f32 %v2178, %v2039
    %v2181 = vmul.f32 %v2178, %v2041
    %v2182 = vmul.f32 %v2178, %v2042
    %2187 = vrot.lane.b32.xlu0 %v2179, 122
    %v2188 = vpop.permute.xlu0 %2187
    %2189 = vrot.lane.b32.xlu0 %v2180, 122
    %v2190 = vpop.permute.xlu0 %2189
    %2191 = vrot.lane.b32.xlu0 %v2181, 122
    %v2192 = vpop.permute.xlu0 %2191
    %2193 = vrot.lane.b32.xlu0 %v2182, 122
    %v2194 = vpop.permute.xlu0 %2193
    %v2199 = vadd.f32 %v2174, %v2188
    %v2200 = vadd.f32 %v2175, %v2190
    %v2201 = vadd.f32 %v2176, %v2192
    %v2202 = vadd.f32 %v2177, %v2194
    %v2203 = vstv %s235
    %v2204 = vmul.f32 %v2203, %v2038
    %v2205 = vmul.f32 %v2203, %v2039
    %v2206 = vmul.f32 %v2203, %v2040
    %v2207 = vmul.f32 %v2203, %v2041
    %v2208 = vmul.f32 %v2203, %v2042
    %v2209 = vmul.f32 %v2203, %v2043
    %v2216 = vrot.slane %v2204, 1
    %v2217 = vrot.slane %v2205, 1
    %v2218 = vsel %vm455, %v2216, %v2217
    %v2219 = vrot.slane %v2206, 1
    %v2220 = vsel %vm455, %v2217, %v2219
    %v2221 = vrot.slane %v2207, 1
    %v2222 = vrot.slane %v2208, 1
    %v2223 = vsel %vm455, %v2221, %v2222
    %v2224 = vrot.slane %v2209, 1
    %v2225 = vsel %vm455, %v2222, %v2224
    %v2230 = vadd.f32 %v2199, %v2218
    %v2231 = vadd.f32 %v2200, %v2220
    %v2232 = vadd.f32 %v2201, %v2223
    %v2233 = vadd.f32 %v2202, %v2225
    %v2234 = vstv %s236
    %v2235 = vmul.f32 %v2234, %v2038
    %v2236 = vmul.f32 %v2234, %v2039
    %v2237 = vmul.f32 %v2234, %v2040
    %v2238 = vmul.f32 %v2234, %v2041
    %v2239 = vmul.f32 %v2234, %v2042
    %v2240 = vmul.f32 %v2234, %v2043
    %v2247 = vrot.slane %v2235, 1
    %v2248 = vrot.slane %v2236, 1
    %v2249 = vsel %vm455, %v2247, %v2248
    %v2250 = vrot.slane %v2237, 1
    %v2251 = vsel %vm455, %v2248, %v2250
    %v2252 = vrot.slane %v2238, 1
    %v2253 = vrot.slane %v2239, 1
    %v2254 = vsel %vm455, %v2252, %v2253
    %v2255 = vrot.slane %v2240, 1
    %v2256 = vsel %vm455, %v2253, %v2255
    %2257 = vrot.lane.b32.xlu0 %v2249, 127
    %v2258 = vpop.permute.xlu0 %2257
    %2259 = vrot.lane.b32.xlu0 %v2251, 127
    %v2260 = vpop.permute.xlu0 %2259
    %2261 = vrot.lane.b32.xlu0 %v2254, 127
    %v2262 = vpop.permute.xlu0 %2261
    %2263 = vrot.lane.b32.xlu0 %v2256, 127
    %v2264 = vpop.permute.xlu0 %2263
    %v2269 = vadd.f32 %v2230, %v2258
    %v2270 = vadd.f32 %v2231, %v2260
    %v2271 = vadd.f32 %v2232, %v2262
    %v2272 = vadd.f32 %v2233, %v2264
    %v2273 = vstv %s237
    %v2274 = vmul.f32 %v2273, %v2038
    %v2275 = vmul.f32 %v2273, %v2039
    %v2276 = vmul.f32 %v2273, %v2040
    %v2277 = vmul.f32 %v2273, %v2041
    %v2278 = vmul.f32 %v2273, %v2042
    %v2279 = vmul.f32 %v2273, %v2043
    %v2286 = vrot.slane %v2274, 1
    %v2287 = vrot.slane %v2275, 1
    %v2288 = vsel %vm455, %v2286, %v2287
    %v2289 = vrot.slane %v2276, 1
    %v2290 = vsel %vm455, %v2287, %v2289
    %v2291 = vrot.slane %v2277, 1
    %v2292 = vrot.slane %v2278, 1
    %v2293 = vsel %vm455, %v2291, %v2292
    %v2294 = vrot.slane %v2279, 1
    %v2295 = vsel %vm455, %v2292, %v2294
    %2296 = vrot.lane.b32.xlu0 %v2288, 126
    %v2297 = vpop.permute.xlu0 %2296
    %2298 = vrot.lane.b32.xlu0 %v2290, 126
    %v2299 = vpop.permute.xlu0 %2298
    %2300 = vrot.lane.b32.xlu0 %v2293, 126
    %v2301 = vpop.permute.xlu0 %2300
    %2302 = vrot.lane.b32.xlu0 %v2295, 126
    %v2303 = vpop.permute.xlu0 %2302
    %v2308 = vadd.f32 %v2269, %v2297
    %v2309 = vadd.f32 %v2270, %v2299
    %v2310 = vadd.f32 %v2271, %v2301
    %v2311 = vadd.f32 %v2272, %v2303
    %v2312 = vstv %s238
    %v2313 = vmul.f32 %v2312, %v2038
    %v2314 = vmul.f32 %v2312, %v2039
    %v2315 = vmul.f32 %v2312, %v2040
    %v2316 = vmul.f32 %v2312, %v2041
    %v2317 = vmul.f32 %v2312, %v2042
    %v2318 = vmul.f32 %v2312, %v2043
    %v2325 = vrot.slane %v2313, 1
    %v2326 = vrot.slane %v2314, 1
    %v2327 = vsel %vm455, %v2325, %v2326
    %v2328 = vrot.slane %v2315, 1
    %v2329 = vsel %vm455, %v2326, %v2328
    %v2330 = vrot.slane %v2316, 1
    %v2331 = vrot.slane %v2317, 1
    %v2332 = vsel %vm455, %v2330, %v2331
    %v2333 = vrot.slane %v2318, 1
    %v2334 = vsel %vm455, %v2331, %v2333
    %2335 = vrot.lane.b32.xlu0 %v2327, 125
    %v2336 = vpop.permute.xlu0 %2335
    %2337 = vrot.lane.b32.xlu0 %v2329, 125
    %v2338 = vpop.permute.xlu0 %2337
    %2339 = vrot.lane.b32.xlu0 %v2332, 125
    %v2340 = vpop.permute.xlu0 %2339
    %2341 = vrot.lane.b32.xlu0 %v2334, 125
    %v2342 = vpop.permute.xlu0 %2341
    %v2347 = vadd.f32 %v2308, %v2336
    %v2348 = vadd.f32 %v2309, %v2338
    %v2349 = vadd.f32 %v2310, %v2340
    %v2350 = vadd.f32 %v2311, %v2342
    %v2351 = vstv %s239
    %v2352 = vmul.f32 %v2351, %v2038
    %v2353 = vmul.f32 %v2351, %v2039
    %v2354 = vmul.f32 %v2351, %v2040
    %v2355 = vmul.f32 %v2351, %v2041
    %v2356 = vmul.f32 %v2351, %v2042
    %v2357 = vmul.f32 %v2351, %v2043
    %v2364 = vrot.slane %v2352, 1
    %v2365 = vrot.slane %v2353, 1
    %v2366 = vsel %vm455, %v2364, %v2365
    %v2367 = vrot.slane %v2354, 1
    %v2368 = vsel %vm455, %v2365, %v2367
    %v2369 = vrot.slane %v2355, 1
    %v2370 = vrot.slane %v2356, 1
    %v2371 = vsel %vm455, %v2369, %v2370
    %v2372 = vrot.slane %v2357, 1
    %v2373 = vsel %vm455, %v2370, %v2372
    %2374 = vrot.lane.b32.xlu0 %v2366, 124
    %v2375 = vpop.permute.xlu0 %2374
    %2376 = vrot.lane.b32.xlu0 %v2368, 124
    %v2377 = vpop.permute.xlu0 %2376
    %2378 = vrot.lane.b32.xlu0 %v2371, 124
    %v2379 = vpop.permute.xlu0 %2378
    %2380 = vrot.lane.b32.xlu0 %v2373, 124
    %v2381 = vpop.permute.xlu0 %2380
    %v2386 = vadd.f32 %v2347, %v2375
    %v2387 = vadd.f32 %v2348, %v2377
    %v2388 = vadd.f32 %v2349, %v2379
    %v2389 = vadd.f32 %v2350, %v2381
    %v2390 = vstv %s240
    %v2391 = vmul.f32 %v2390, %v2038
    %v2392 = vmul.f32 %v2390, %v2039
    %v2393 = vmul.f32 %v2390, %v2040
    %v2394 = vmul.f32 %v2390, %v2041
    %v2395 = vmul.f32 %v2390, %v2042
    %v2396 = vmul.f32 %v2390, %v2043
    %v2403 = vrot.slane %v2391, 1
    %v2404 = vrot.slane %v2392, 1
    %v2405 = vsel %vm455, %v2403, %v2404
    %v2406 = vrot.slane %v2393, 1
    %v2407 = vsel %vm455, %v2404, %v2406
    %v2408 = vrot.slane %v2394, 1
    %v2409 = vrot.slane %v2395, 1
    %v2410 = vsel %vm455, %v2408, %v2409
    %v2411 = vrot.slane %v2396, 1
    %v2412 = vsel %vm455, %v2409, %v2411
    %2413 = vrot.lane.b32.xlu0 %v2405, 123
    %v2414 = vpop.permute.xlu0 %2413
    %2415 = vrot.lane.b32.xlu0 %v2407, 123
    %v2416 = vpop.permute.xlu0 %2415
    %2417 = vrot.lane.b32.xlu0 %v2410, 123
    %v2418 = vpop.permute.xlu0 %2417
    %2419 = vrot.lane.b32.xlu0 %v2412, 123
    %v2420 = vpop.permute.xlu0 %2419
    %v2425 = vadd.f32 %v2386, %v2414
    %v2426 = vadd.f32 %v2387, %v2416
    %v2427 = vadd.f32 %v2388, %v2418
    %v2428 = vadd.f32 %v2389, %v2420
    %v2429 = vstv %s241
    %v2430 = vmul.f32 %v2429, %v2038
    %v2431 = vmul.f32 %v2429, %v2039
    %v2432 = vmul.f32 %v2429, %v2040
    %v2433 = vmul.f32 %v2429, %v2041
    %v2434 = vmul.f32 %v2429, %v2042
    %v2435 = vmul.f32 %v2429, %v2043
    %v2442 = vrot.slane %v2430, 1
    %v2443 = vrot.slane %v2431, 1
    %v2444 = vsel %vm455, %v2442, %v2443
    %v2445 = vrot.slane %v2432, 1
    %v2446 = vsel %vm455, %v2443, %v2445
    %v2447 = vrot.slane %v2433, 1
    %v2448 = vrot.slane %v2434, 1
    %v2449 = vsel %vm455, %v2447, %v2448
    %v2450 = vrot.slane %v2435, 1
    %v2451 = vsel %vm455, %v2448, %v2450
    %2452 = vrot.lane.b32.xlu0 %v2444, 122
    %v2453 = vpop.permute.xlu0 %2452
    %2454 = vrot.lane.b32.xlu0 %v2446, 122
    %v2455 = vpop.permute.xlu0 %2454
    %2456 = vrot.lane.b32.xlu0 %v2449, 122
    %v2457 = vpop.permute.xlu0 %2456
    %2458 = vrot.lane.b32.xlu0 %v2451, 122
    %v2459 = vpop.permute.xlu0 %2458
    %v2464 = vadd.f32 %v2425, %v2453
    %v2465 = vadd.f32 %v2426, %v2455
    %v2466 = vadd.f32 %v2427, %v2457
    %v2467 = vadd.f32 %v2428, %v2459
    %v2468 = vstv %s242
    %v2469 = vmul.f32 %v2468, %v2038
    %v2470 = vmul.f32 %v2468, %v2039
    %v2471 = vmul.f32 %v2468, %v2040
    %v2472 = vmul.f32 %v2468, %v2041
    %v2473 = vmul.f32 %v2468, %v2042
    %v2474 = vmul.f32 %v2468, %v2043
    %v2481 = vrot.slane %v2469, 2
    %v2482 = vrot.slane %v2470, 2
    %v2483 = vsel %vm721, %v2481, %v2482
    %v2484 = vrot.slane %v2471, 2
    %v2485 = vsel %vm721, %v2482, %v2484
    %v2486 = vrot.slane %v2472, 2
    %v2487 = vrot.slane %v2473, 2
    %v2488 = vsel %vm721, %v2486, %v2487
    %v2489 = vrot.slane %v2474, 2
    %v2490 = vsel %vm721, %v2487, %v2489
    %v2495 = vadd.f32 %v2464, %v2483
    %v2496 = vadd.f32 %v2465, %v2485
    %v2497 = vadd.f32 %v2466, %v2488
    %v2498 = vadd.f32 %v2467, %v2490
    %v2499 = vstv %s243
    %v2500 = vmul.f32 %v2499, %v2038
    %v2501 = vmul.f32 %v2499, %v2039
    %v2502 = vmul.f32 %v2499, %v2040
    %v2503 = vmul.f32 %v2499, %v2041
    %v2504 = vmul.f32 %v2499, %v2042
    %v2505 = vmul.f32 %v2499, %v2043
    %v2512 = vrot.slane %v2500, 2
    %v2513 = vrot.slane %v2501, 2
    %v2514 = vsel %vm721, %v2512, %v2513
    %v2515 = vrot.slane %v2502, 2
    %v2516 = vsel %vm721, %v2513, %v2515
    %v2517 = vrot.slane %v2503, 2
    %v2518 = vrot.slane %v2504, 2
    %v2519 = vsel %vm721, %v2517, %v2518
    %v2520 = vrot.slane %v2505, 2
    %v2521 = vsel %vm721, %v2518, %v2520
    %2522 = vrot.lane.b32.xlu0 %v2514, 127
    %v2523 = vpop.permute.xlu0 %2522
    %2524 = vrot.lane.b32.xlu0 %v2516, 127
    %v2525 = vpop.permute.xlu0 %2524
    %2526 = vrot.lane.b32.xlu0 %v2519, 127
    %v2527 = vpop.permute.xlu0 %2526
    %2528 = vrot.lane.b32.xlu0 %v2521, 127
    %v2529 = vpop.permute.xlu0 %2528
    %v2534 = vadd.f32 %v2495, %v2523
    %v2535 = vadd.f32 %v2496, %v2525
    %v2536 = vadd.f32 %v2497, %v2527
    %v2537 = vadd.f32 %v2498, %v2529
    %v2538 = vstv %s244
    %v2539 = vmul.f32 %v2538, %v2038
    %v2540 = vmul.f32 %v2538, %v2039
    %v2541 = vmul.f32 %v2538, %v2040
    %v2542 = vmul.f32 %v2538, %v2041
    %v2543 = vmul.f32 %v2538, %v2042
    %v2544 = vmul.f32 %v2538, %v2043
    %v2551 = vrot.slane %v2539, 2
    %v2552 = vrot.slane %v2540, 2
    %v2553 = vsel %vm721, %v2551, %v2552
    %v2554 = vrot.slane %v2541, 2
    %v2555 = vsel %vm721, %v2552, %v2554
    %v2556 = vrot.slane %v2542, 2
    %v2557 = vrot.slane %v2543, 2
    %v2558 = vsel %vm721, %v2556, %v2557
    %v2559 = vrot.slane %v2544, 2
    %v2560 = vsel %vm721, %v2557, %v2559
    %2561 = vrot.lane.b32.xlu0 %v2553, 126
    %v2562 = vpop.permute.xlu0 %2561
    %2563 = vrot.lane.b32.xlu0 %v2555, 126
    %v2564 = vpop.permute.xlu0 %2563
    %2565 = vrot.lane.b32.xlu0 %v2558, 126
    %v2566 = vpop.permute.xlu0 %2565
    %2567 = vrot.lane.b32.xlu0 %v2560, 126
    %v2568 = vpop.permute.xlu0 %2567
    %v2573 = vadd.f32 %v2534, %v2562
    %v2574 = vadd.f32 %v2535, %v2564
    %v2575 = vadd.f32 %v2536, %v2566
    %v2576 = vadd.f32 %v2537, %v2568
    %v2577 = vstv %s245
    %v2578 = vmul.f32 %v2577, %v2038
    %v2579 = vmul.f32 %v2577, %v2039
    %v2580 = vmul.f32 %v2577, %v2040
    %v2581 = vmul.f32 %v2577, %v2041
    %v2582 = vmul.f32 %v2577, %v2042
    %v2583 = vmul.f32 %v2577, %v2043
    %v2590 = vrot.slane %v2578, 2
    %v2591 = vrot.slane %v2579, 2
    %v2592 = vsel %vm721, %v2590, %v2591
    %v2593 = vrot.slane %v2580, 2
    %v2594 = vsel %vm721, %v2591, %v2593
    %v2595 = vrot.slane %v2581, 2
    %v2596 = vrot.slane %v2582, 2
    %v2597 = vsel %vm721, %v2595, %v2596
    %v2598 = vrot.slane %v2583, 2
    %v2599 = vsel %vm721, %v2596, %v2598
    %2600 = vrot.lane.b32.xlu0 %v2592, 125
    %v2601 = vpop.permute.xlu0 %2600
    %2602 = vrot.lane.b32.xlu0 %v2594, 125
    %v2603 = vpop.permute.xlu0 %2602
    %2604 = vrot.lane.b32.xlu0 %v2597, 125
    %v2605 = vpop.permute.xlu0 %2604
    %2606 = vrot.lane.b32.xlu0 %v2599, 125
    %v2607 = vpop.permute.xlu0 %2606
    %v2612 = vadd.f32 %v2573, %v2601
    %v2613 = vadd.f32 %v2574, %v2603
    %v2614 = vadd.f32 %v2575, %v2605
    %v2615 = vadd.f32 %v2576, %v2607
    %v2616 = vstv %s246
    %v2617 = vmul.f32 %v2616, %v2038
    %v2618 = vmul.f32 %v2616, %v2039
    %v2619 = vmul.f32 %v2616, %v2040
    %v2620 = vmul.f32 %v2616, %v2041
    %v2621 = vmul.f32 %v2616, %v2042
    %v2622 = vmul.f32 %v2616, %v2043
    %v2629 = vrot.slane %v2617, 2
    %v2630 = vrot.slane %v2618, 2
    %v2631 = vsel %vm721, %v2629, %v2630
    %v2632 = vrot.slane %v2619, 2
    %v2633 = vsel %vm721, %v2630, %v2632
    %v2634 = vrot.slane %v2620, 2
    %v2635 = vrot.slane %v2621, 2
    %v2636 = vsel %vm721, %v2634, %v2635
    %v2637 = vrot.slane %v2622, 2
    %v2638 = vsel %vm721, %v2635, %v2637
    %2639 = vrot.lane.b32.xlu0 %v2631, 124
    %v2640 = vpop.permute.xlu0 %2639
    %2641 = vrot.lane.b32.xlu0 %v2633, 124
    %v2642 = vpop.permute.xlu0 %2641
    %2643 = vrot.lane.b32.xlu0 %v2636, 124
    %v2644 = vpop.permute.xlu0 %2643
    %2645 = vrot.lane.b32.xlu0 %v2638, 124
    %v2646 = vpop.permute.xlu0 %2645
    %v2651 = vadd.f32 %v2612, %v2640
    %v2652 = vadd.f32 %v2613, %v2642
    %v2653 = vadd.f32 %v2614, %v2644
    %v2654 = vadd.f32 %v2615, %v2646
    %v2655 = vstv %s247
    %v2656 = vmul.f32 %v2655, %v2038
    %v2657 = vmul.f32 %v2655, %v2039
    %v2658 = vmul.f32 %v2655, %v2040
    %v2659 = vmul.f32 %v2655, %v2041
    %v2660 = vmul.f32 %v2655, %v2042
    %v2661 = vmul.f32 %v2655, %v2043
    %v2668 = vrot.slane %v2656, 2
    %v2669 = vrot.slane %v2657, 2
    %v2670 = vsel %vm721, %v2668, %v2669
    %v2671 = vrot.slane %v2658, 2
    %v2672 = vsel %vm721, %v2669, %v2671
    %v2673 = vrot.slane %v2659, 2
    %v2674 = vrot.slane %v2660, 2
    %v2675 = vsel %vm721, %v2673, %v2674
    %v2676 = vrot.slane %v2661, 2
    %v2677 = vsel %vm721, %v2674, %v2676
    %2678 = vrot.lane.b32.xlu0 %v2670, 123
    %v2679 = vpop.permute.xlu0 %2678
    %2680 = vrot.lane.b32.xlu0 %v2672, 123
    %v2681 = vpop.permute.xlu0 %2680
    %2682 = vrot.lane.b32.xlu0 %v2675, 123
    %v2683 = vpop.permute.xlu0 %2682
    %2684 = vrot.lane.b32.xlu0 %v2677, 123
    %v2685 = vpop.permute.xlu0 %2684
    %v2690 = vadd.f32 %v2651, %v2679
    %v2691 = vadd.f32 %v2652, %v2681
    %v2692 = vadd.f32 %v2653, %v2683
    %v2693 = vadd.f32 %v2654, %v2685
    %v2694 = vstv %s248
    %v2695 = vmul.f32 %v2694, %v2038
    %v2696 = vmul.f32 %v2694, %v2039
    %v2697 = vmul.f32 %v2694, %v2040
    %v2698 = vmul.f32 %v2694, %v2041
    %v2699 = vmul.f32 %v2694, %v2042
    %v2700 = vmul.f32 %v2694, %v2043
    %v2707 = vrot.slane %v2695, 2
    %v2708 = vrot.slane %v2696, 2
    %v2709 = vsel %vm721, %v2707, %v2708
    %v2710 = vrot.slane %v2697, 2
    %v2711 = vsel %vm721, %v2708, %v2710
    %v2712 = vrot.slane %v2698, 2
    %v2713 = vrot.slane %v2699, 2
    %v2714 = vsel %vm721, %v2712, %v2713
    %v2715 = vrot.slane %v2700, 2
    %v2716 = vsel %vm721, %v2713, %v2715
    %2717 = vrot.lane.b32.xlu0 %v2709, 122
    %v2718 = vpop.permute.xlu0 %2717
    %2719 = vrot.lane.b32.xlu0 %v2711, 122
    %v2720 = vpop.permute.xlu0 %2719
    %2721 = vrot.lane.b32.xlu0 %v2714, 122
    %v2722 = vpop.permute.xlu0 %2721
    %2723 = vrot.lane.b32.xlu0 %v2716, 122
    %v2724 = vpop.permute.xlu0 %2723
    %v2729 = vadd.f32 %v2690, %v2718
    %v2730 = vadd.f32 %v2691, %v2720
    %v2731 = vadd.f32 %v2692, %v2722
    %v2732 = vadd.f32 %v2693, %v2724
    %v2733 = vstv %s249
    %v2734 = vmul.f32 %v2733, %v2038
    %v2735 = vmul.f32 %v2733, %v2039
    %v2736 = vmul.f32 %v2733, %v2040
    %v2737 = vmul.f32 %v2733, %v2041
    %v2738 = vmul.f32 %v2733, %v2042
    %v2739 = vmul.f32 %v2733, %v2043
    %v2746 = vrot.slane %v2734, 3
    %v2747 = vrot.slane %v2735, 3
    %v2748 = vsel %vm987, %v2746, %v2747
    %v2749 = vrot.slane %v2736, 3
    %v2750 = vsel %vm987, %v2747, %v2749
    %v2751 = vrot.slane %v2737, 3
    %v2752 = vrot.slane %v2738, 3
    %v2753 = vsel %vm987, %v2751, %v2752
    %v2754 = vrot.slane %v2739, 3
    %v2755 = vsel %vm987, %v2752, %v2754
    %v2760 = vadd.f32 %v2729, %v2748
    %v2761 = vadd.f32 %v2730, %v2750
    %v2762 = vadd.f32 %v2731, %v2753
    %v2763 = vadd.f32 %v2732, %v2755
    %v2764 = vstv %s250
    %v2765 = vmul.f32 %v2764, %v2038
    %v2766 = vmul.f32 %v2764, %v2039
    %v2767 = vmul.f32 %v2764, %v2040
    %v2768 = vmul.f32 %v2764, %v2041
    %v2769 = vmul.f32 %v2764, %v2042
    %v2770 = vmul.f32 %v2764, %v2043
    %v2777 = vrot.slane %v2765, 3
    %v2778 = vrot.slane %v2766, 3
    %v2779 = vsel %vm987, %v2777, %v2778
    %v2780 = vrot.slane %v2767, 3
    %v2781 = vsel %vm987, %v2778, %v2780
    %v2782 = vrot.slane %v2768, 3
    %v2783 = vrot.slane %v2769, 3
    %v2784 = vsel %vm987, %v2782, %v2783
    %v2785 = vrot.slane %v2770, 3
    %v2786 = vsel %vm987, %v2783, %v2785
    %2787 = vrot.lane.b32.xlu0 %v2779, 127
    %v2788 = vpop.permute.xlu0 %2787
    %2789 = vrot.lane.b32.xlu0 %v2781, 127
    %v2790 = vpop.permute.xlu0 %2789
    %2791 = vrot.lane.b32.xlu0 %v2784, 127
    %v2792 = vpop.permute.xlu0 %2791
    %2793 = vrot.lane.b32.xlu0 %v2786, 127
    %v2794 = vpop.permute.xlu0 %2793
    %v2799 = vadd.f32 %v2760, %v2788
    %v2800 = vadd.f32 %v2761, %v2790
    %v2801 = vadd.f32 %v2762, %v2792
    %v2802 = vadd.f32 %v2763, %v2794
    %v2803 = vstv %s251
    %v2804 = vmul.f32 %v2803, %v2038
    %v2805 = vmul.f32 %v2803, %v2039
    %v2806 = vmul.f32 %v2803, %v2040
    %v2807 = vmul.f32 %v2803, %v2041
    %v2808 = vmul.f32 %v2803, %v2042
    %v2809 = vmul.f32 %v2803, %v2043
    %v2816 = vrot.slane %v2804, 3
    %v2817 = vrot.slane %v2805, 3
    %v2818 = vsel %vm987, %v2816, %v2817
    %v2819 = vrot.slane %v2806, 3
    %v2820 = vsel %vm987, %v2817, %v2819
    %v2821 = vrot.slane %v2807, 3
    %v2822 = vrot.slane %v2808, 3
    %v2823 = vsel %vm987, %v2821, %v2822
    %v2824 = vrot.slane %v2809, 3
    %v2825 = vsel %vm987, %v2822, %v2824
    %2826 = vrot.lane.b32.xlu0 %v2818, 126
    %v2827 = vpop.permute.xlu0 %2826
    %2828 = vrot.lane.b32.xlu0 %v2820, 126
    %v2829 = vpop.permute.xlu0 %2828
    %2830 = vrot.lane.b32.xlu0 %v2823, 126
    %v2831 = vpop.permute.xlu0 %2830
    %2832 = vrot.lane.b32.xlu0 %v2825, 126
    %v2833 = vpop.permute.xlu0 %2832
    %v2838 = vadd.f32 %v2799, %v2827
    %v2839 = vadd.f32 %v2800, %v2829
    %v2840 = vadd.f32 %v2801, %v2831
    %v2841 = vadd.f32 %v2802, %v2833
    %v2842 = vstv %s252
    %v2843 = vmul.f32 %v2842, %v2038
    %v2844 = vmul.f32 %v2842, %v2039
    %v2845 = vmul.f32 %v2842, %v2040
    %v2846 = vmul.f32 %v2842, %v2041
    %v2847 = vmul.f32 %v2842, %v2042
    %v2848 = vmul.f32 %v2842, %v2043
    %v2855 = vrot.slane %v2843, 3
    %v2856 = vrot.slane %v2844, 3
    %v2857 = vsel %vm987, %v2855, %v2856
    %v2858 = vrot.slane %v2845, 3
    %v2859 = vsel %vm987, %v2856, %v2858
    %v2860 = vrot.slane %v2846, 3
    %v2861 = vrot.slane %v2847, 3
    %v2862 = vsel %vm987, %v2860, %v2861
    %v2863 = vrot.slane %v2848, 3
    %v2864 = vsel %vm987, %v2861, %v2863
    %2865 = vrot.lane.b32.xlu0 %v2857, 125
    %v2866 = vpop.permute.xlu0 %2865
    %2867 = vrot.lane.b32.xlu0 %v2859, 125
    %v2868 = vpop.permute.xlu0 %2867
    %2869 = vrot.lane.b32.xlu0 %v2862, 125
    %v2870 = vpop.permute.xlu0 %2869
    %2871 = vrot.lane.b32.xlu0 %v2864, 125
    %v2872 = vpop.permute.xlu0 %2871
    %v2877 = vadd.f32 %v2838, %v2866
    %v2878 = vadd.f32 %v2839, %v2868
    %v2879 = vadd.f32 %v2840, %v2870
    %v2880 = vadd.f32 %v2841, %v2872
    %v2881 = vstv %s253
    %v2882 = vmul.f32 %v2881, %v2038
    %v2883 = vmul.f32 %v2881, %v2039
    %v2884 = vmul.f32 %v2881, %v2040
    %v2885 = vmul.f32 %v2881, %v2041
    %v2886 = vmul.f32 %v2881, %v2042
    %v2887 = vmul.f32 %v2881, %v2043
    %v2894 = vrot.slane %v2882, 3
    %v2895 = vrot.slane %v2883, 3
    %v2896 = vsel %vm987, %v2894, %v2895
    %v2897 = vrot.slane %v2884, 3
    %v2898 = vsel %vm987, %v2895, %v2897
    %v2899 = vrot.slane %v2885, 3
    %v2900 = vrot.slane %v2886, 3
    %v2901 = vsel %vm987, %v2899, %v2900
    %v2902 = vrot.slane %v2887, 3
    %v2903 = vsel %vm987, %v2900, %v2902
    %2904 = vrot.lane.b32.xlu0 %v2896, 124
    %v2905 = vpop.permute.xlu0 %2904
    %2906 = vrot.lane.b32.xlu0 %v2898, 124
    %v2907 = vpop.permute.xlu0 %2906
    %2908 = vrot.lane.b32.xlu0 %v2901, 124
    %v2909 = vpop.permute.xlu0 %2908
    %2910 = vrot.lane.b32.xlu0 %v2903, 124
    %v2911 = vpop.permute.xlu0 %2910
    %v2916 = vadd.f32 %v2877, %v2905
    %v2917 = vadd.f32 %v2878, %v2907
    %v2918 = vadd.f32 %v2879, %v2909
    %v2919 = vadd.f32 %v2880, %v2911
    %v2920 = vstv %s254
    %v2921 = vmul.f32 %v2920, %v2038
    %v2922 = vmul.f32 %v2920, %v2039
    %v2923 = vmul.f32 %v2920, %v2040
    %v2924 = vmul.f32 %v2920, %v2041
    %v2925 = vmul.f32 %v2920, %v2042
    %v2926 = vmul.f32 %v2920, %v2043
    %v2933 = vrot.slane %v2921, 3
    %v2934 = vrot.slane %v2922, 3
    %v2935 = vsel %vm987, %v2933, %v2934
    %v2936 = vrot.slane %v2923, 3
    %v2937 = vsel %vm987, %v2934, %v2936
    %v2938 = vrot.slane %v2924, 3
    %v2939 = vrot.slane %v2925, 3
    %v2940 = vsel %vm987, %v2938, %v2939
    %v2941 = vrot.slane %v2926, 3
    %v2942 = vsel %vm987, %v2939, %v2941
    %2943 = vrot.lane.b32.xlu0 %v2935, 123
    %v2944 = vpop.permute.xlu0 %2943
    %2945 = vrot.lane.b32.xlu0 %v2937, 123
    %v2946 = vpop.permute.xlu0 %2945
    %2947 = vrot.lane.b32.xlu0 %v2940, 123
    %v2948 = vpop.permute.xlu0 %2947
    %2949 = vrot.lane.b32.xlu0 %v2942, 123
    %v2950 = vpop.permute.xlu0 %2949
    %v2955 = vadd.f32 %v2916, %v2944
    %v2956 = vadd.f32 %v2917, %v2946
    %v2957 = vadd.f32 %v2918, %v2948
    %v2958 = vadd.f32 %v2919, %v2950
    %v2959 = vstv %s255
    %v2960 = vmul.f32 %v2959, %v2038
    %v2961 = vmul.f32 %v2959, %v2039
    %v2962 = vmul.f32 %v2959, %v2040
    %v2963 = vmul.f32 %v2959, %v2041
    %v2964 = vmul.f32 %v2959, %v2042
    %v2965 = vmul.f32 %v2959, %v2043
    %v2972 = vrot.slane %v2960, 3
    %v2973 = vrot.slane %v2961, 3
    %v2974 = vsel %vm987, %v2972, %v2973
    %v2975 = vrot.slane %v2962, 3
    %v2976 = vsel %vm987, %v2973, %v2975
    %v2977 = vrot.slane %v2963, 3
    %v2978 = vrot.slane %v2964, 3
    %v2979 = vsel %vm987, %v2977, %v2978
    %v2980 = vrot.slane %v2965, 3
    %v2981 = vsel %vm987, %v2978, %v2980
    %2982 = vrot.lane.b32.xlu0 %v2974, 122
    %v2983 = vpop.permute.xlu0 %2982
    %2984 = vrot.lane.b32.xlu0 %v2976, 122
    %v2985 = vpop.permute.xlu0 %2984
    %2986 = vrot.lane.b32.xlu0 %v2979, 122
    %v2987 = vpop.permute.xlu0 %2986
    %2988 = vrot.lane.b32.xlu0 %v2981, 122
    %v2989 = vpop.permute.xlu0 %2988
    %v2994 = vadd.f32 %v2955, %v2983
    %v2995 = vadd.f32 %v2956, %v2985
    %v2996 = vadd.f32 %v2957, %v2987
    %v2997 = vadd.f32 %v2958, %v2989
    %v2998 = vstv %s256
    %v2999 = vmul.f32 %v2998, %v2038
    %v3000 = vmul.f32 %v2998, %v2039
    %v3001 = vmul.f32 %v2998, %v2040
    %v3002 = vmul.f32 %v2998, %v2041
    %v3003 = vmul.f32 %v2998, %v2042
    %v3004 = vmul.f32 %v2998, %v2043
    %v3011 = vrot.slane %v2999, 4
    %v3012 = vrot.slane %v3000, 4
    %v3013 = vsel %vm1253, %v3011, %v3012
    %v3014 = vrot.slane %v3001, 4
    %v3015 = vsel %vm1253, %v3012, %v3014
    %v3016 = vrot.slane %v3002, 4
    %v3017 = vrot.slane %v3003, 4
    %v3018 = vsel %vm1253, %v3016, %v3017
    %v3019 = vrot.slane %v3004, 4
    %v3020 = vsel %vm1253, %v3017, %v3019
    %v3025 = vadd.f32 %v2994, %v3013
    %v3026 = vadd.f32 %v2995, %v3015
    %v3027 = vadd.f32 %v2996, %v3018
    %v3028 = vadd.f32 %v2997, %v3020
    %v3029 = vstv %s257
    %v3030 = vmul.f32 %v3029, %v2038
    %v3031 = vmul.f32 %v3029, %v2039
    %v3032 = vmul.f32 %v3029, %v2040
    %v3033 = vmul.f32 %v3029, %v2041
    %v3034 = vmul.f32 %v3029, %v2042
    %v3035 = vmul.f32 %v3029, %v2043
    %v3042 = vrot.slane %v3030, 4
    %v3043 = vrot.slane %v3031, 4
    %v3044 = vsel %vm1253, %v3042, %v3043
    %v3045 = vrot.slane %v3032, 4
    %v3046 = vsel %vm1253, %v3043, %v3045
    %v3047 = vrot.slane %v3033, 4
    %v3048 = vrot.slane %v3034, 4
    %v3049 = vsel %vm1253, %v3047, %v3048
    %v3050 = vrot.slane %v3035, 4
    %v3051 = vsel %vm1253, %v3048, %v3050
    %3052 = vrot.lane.b32.xlu0 %v3044, 127
    %v3053 = vpop.permute.xlu0 %3052
    %3054 = vrot.lane.b32.xlu0 %v3046, 127
    %v3055 = vpop.permute.xlu0 %3054
    %3056 = vrot.lane.b32.xlu0 %v3049, 127
    %v3057 = vpop.permute.xlu0 %3056
    %3058 = vrot.lane.b32.xlu0 %v3051, 127
    %v3059 = vpop.permute.xlu0 %3058
    %v3064 = vadd.f32 %v3025, %v3053
    %v3065 = vadd.f32 %v3026, %v3055
    %v3066 = vadd.f32 %v3027, %v3057
    %v3067 = vadd.f32 %v3028, %v3059
    %v3068 = vstv %s258
    %v3069 = vmul.f32 %v3068, %v2038
    %v3070 = vmul.f32 %v3068, %v2039
    %v3071 = vmul.f32 %v3068, %v2040
    %v3072 = vmul.f32 %v3068, %v2041
    %v3073 = vmul.f32 %v3068, %v2042
    %v3074 = vmul.f32 %v3068, %v2043
    %v3081 = vrot.slane %v3069, 4
    %v3082 = vrot.slane %v3070, 4
    %v3083 = vsel %vm1253, %v3081, %v3082
    %v3084 = vrot.slane %v3071, 4
    %v3085 = vsel %vm1253, %v3082, %v3084
    %v3086 = vrot.slane %v3072, 4
    %v3087 = vrot.slane %v3073, 4
    %v3088 = vsel %vm1253, %v3086, %v3087
    %v3089 = vrot.slane %v3074, 4
    %v3090 = vsel %vm1253, %v3087, %v3089
    %3091 = vrot.lane.b32.xlu0 %v3083, 126
    %v3092 = vpop.permute.xlu0 %3091
    %3093 = vrot.lane.b32.xlu0 %v3085, 126
    %v3094 = vpop.permute.xlu0 %3093
    %3095 = vrot.lane.b32.xlu0 %v3088, 126
    %v3096 = vpop.permute.xlu0 %3095
    %3097 = vrot.lane.b32.xlu0 %v3090, 126
    %v3098 = vpop.permute.xlu0 %3097
    %v3103 = vadd.f32 %v3064, %v3092
    %v3104 = vadd.f32 %v3065, %v3094
    %v3105 = vadd.f32 %v3066, %v3096
    %v3106 = vadd.f32 %v3067, %v3098
    %v3107 = vstv %s259
    %v3108 = vmul.f32 %v3107, %v2038
    %v3109 = vmul.f32 %v3107, %v2039
    %v3110 = vmul.f32 %v3107, %v2040
    %v3111 = vmul.f32 %v3107, %v2041
    %v3112 = vmul.f32 %v3107, %v2042
    %v3113 = vmul.f32 %v3107, %v2043
    %v3120 = vrot.slane %v3108, 4
    %v3121 = vrot.slane %v3109, 4
    %v3122 = vsel %vm1253, %v3120, %v3121
    %v3123 = vrot.slane %v3110, 4
    %v3124 = vsel %vm1253, %v3121, %v3123
    %v3125 = vrot.slane %v3111, 4
    %v3126 = vrot.slane %v3112, 4
    %v3127 = vsel %vm1253, %v3125, %v3126
    %v3128 = vrot.slane %v3113, 4
    %v3129 = vsel %vm1253, %v3126, %v3128
    %3130 = vrot.lane.b32.xlu0 %v3122, 125
    %v3131 = vpop.permute.xlu0 %3130
    %3132 = vrot.lane.b32.xlu0 %v3124, 125
    %v3133 = vpop.permute.xlu0 %3132
    %3134 = vrot.lane.b32.xlu0 %v3127, 125
    %v3135 = vpop.permute.xlu0 %3134
    %3136 = vrot.lane.b32.xlu0 %v3129, 125
    %v3137 = vpop.permute.xlu0 %3136
    %v3142 = vadd.f32 %v3103, %v3131
    %v3143 = vadd.f32 %v3104, %v3133
    %v3144 = vadd.f32 %v3105, %v3135
    %v3145 = vadd.f32 %v3106, %v3137
    %v3146 = vstv %s260
    %v3147 = vmul.f32 %v3146, %v2038
    %v3148 = vmul.f32 %v3146, %v2039
    %v3149 = vmul.f32 %v3146, %v2040
    %v3150 = vmul.f32 %v3146, %v2041
    %v3151 = vmul.f32 %v3146, %v2042
    %v3152 = vmul.f32 %v3146, %v2043
    %v3159 = vrot.slane %v3147, 4
    %v3160 = vrot.slane %v3148, 4
    %v3161 = vsel %vm1253, %v3159, %v3160
    %v3162 = vrot.slane %v3149, 4
    %v3163 = vsel %vm1253, %v3160, %v3162
    %v3164 = vrot.slane %v3150, 4
    %v3165 = vrot.slane %v3151, 4
    %v3166 = vsel %vm1253, %v3164, %v3165
    %v3167 = vrot.slane %v3152, 4
    %v3168 = vsel %vm1253, %v3165, %v3167
    %3169 = vrot.lane.b32.xlu0 %v3161, 124
    %v3170 = vpop.permute.xlu0 %3169
    %3171 = vrot.lane.b32.xlu0 %v3163, 124
    %v3172 = vpop.permute.xlu0 %3171
    %3173 = vrot.lane.b32.xlu0 %v3166, 124
    %v3174 = vpop.permute.xlu0 %3173
    %3175 = vrot.lane.b32.xlu0 %v3168, 124
    %v3176 = vpop.permute.xlu0 %3175
    %v3181 = vadd.f32 %v3142, %v3170
    %v3182 = vadd.f32 %v3143, %v3172
    %v3183 = vadd.f32 %v3144, %v3174
    %v3184 = vadd.f32 %v3145, %v3176
    %v3185 = vstv %s261
    %v3186 = vmul.f32 %v3185, %v2038
    %v3187 = vmul.f32 %v3185, %v2039
    %v3188 = vmul.f32 %v3185, %v2040
    %v3189 = vmul.f32 %v3185, %v2041
    %v3190 = vmul.f32 %v3185, %v2042
    %v3191 = vmul.f32 %v3185, %v2043
    %v3198 = vrot.slane %v3186, 4
    %v3199 = vrot.slane %v3187, 4
    %v3200 = vsel %vm1253, %v3198, %v3199
    %v3201 = vrot.slane %v3188, 4
    %v3202 = vsel %vm1253, %v3199, %v3201
    %v3203 = vrot.slane %v3189, 4
    %v3204 = vrot.slane %v3190, 4
    %v3205 = vsel %vm1253, %v3203, %v3204
    %v3206 = vrot.slane %v3191, 4
    %v3207 = vsel %vm1253, %v3204, %v3206
    %3208 = vrot.lane.b32.xlu0 %v3200, 123
    %v3209 = vpop.permute.xlu0 %3208
    %3210 = vrot.lane.b32.xlu0 %v3202, 123
    %v3211 = vpop.permute.xlu0 %3210
    %3212 = vrot.lane.b32.xlu0 %v3205, 123
    %v3213 = vpop.permute.xlu0 %3212
    %3214 = vrot.lane.b32.xlu0 %v3207, 123
    %v3215 = vpop.permute.xlu0 %3214
    %v3220 = vadd.f32 %v3181, %v3209
    %v3221 = vadd.f32 %v3182, %v3211
    %v3222 = vadd.f32 %v3183, %v3213
    %v3223 = vadd.f32 %v3184, %v3215
    %v3224 = vstv %s262
    %v3225 = vmul.f32 %v3224, %v2038
    %v3226 = vmul.f32 %v3224, %v2039
    %v3227 = vmul.f32 %v3224, %v2040
    %v3228 = vmul.f32 %v3224, %v2041
    %v3229 = vmul.f32 %v3224, %v2042
    %v3230 = vmul.f32 %v3224, %v2043
    %v3237 = vrot.slane %v3225, 4
    %v3238 = vrot.slane %v3226, 4
    %v3239 = vsel %vm1253, %v3237, %v3238
    %v3240 = vrot.slane %v3227, 4
    %v3241 = vsel %vm1253, %v3238, %v3240
    %v3242 = vrot.slane %v3228, 4
    %v3243 = vrot.slane %v3229, 4
    %v3244 = vsel %vm1253, %v3242, %v3243
    %v3245 = vrot.slane %v3230, 4
    %v3246 = vsel %vm1253, %v3243, %v3245
    %3247 = vrot.lane.b32.xlu0 %v3239, 122
    %v3248 = vpop.permute.xlu0 %3247
    %3249 = vrot.lane.b32.xlu0 %v3241, 122
    %v3250 = vpop.permute.xlu0 %3249
    %3251 = vrot.lane.b32.xlu0 %v3244, 122
    %v3252 = vpop.permute.xlu0 %3251
    %3253 = vrot.lane.b32.xlu0 %v3246, 122
    %v3254 = vpop.permute.xlu0 %3253
    %v3259 = vadd.f32 %v3220, %v3248
    %v3260 = vadd.f32 %v3221, %v3250
    %v3261 = vadd.f32 %v3222, %v3252
    %v3262 = vadd.f32 %v3223, %v3254
    %v3263 = vstv %s263
    %v3264 = vmul.f32 %v3263, %v2038
    %v3265 = vmul.f32 %v3263, %v2039
    %v3266 = vmul.f32 %v3263, %v2040
    %v3267 = vmul.f32 %v3263, %v2041
    %v3268 = vmul.f32 %v3263, %v2042
    %v3269 = vmul.f32 %v3263, %v2043
    %v3276 = vrot.slane %v3264, 5
    %v3277 = vrot.slane %v3265, 5
    %v3278 = vsel %vm1519, %v3276, %v3277
    %v3279 = vrot.slane %v3266, 5
    %v3280 = vsel %vm1519, %v3277, %v3279
    %v3281 = vrot.slane %v3267, 5
    %v3282 = vrot.slane %v3268, 5
    %v3283 = vsel %vm1519, %v3281, %v3282
    %v3284 = vrot.slane %v3269, 5
    %v3285 = vsel %vm1519, %v3282, %v3284
    %v3290 = vadd.f32 %v3259, %v3278
    %v3291 = vadd.f32 %v3260, %v3280
    %v3292 = vadd.f32 %v3261, %v3283
    %v3293 = vadd.f32 %v3262, %v3285
    %v3294 = vstv %s264
    %v3295 = vmul.f32 %v3294, %v2038
    %v3296 = vmul.f32 %v3294, %v2039
    %v3297 = vmul.f32 %v3294, %v2040
    %v3298 = vmul.f32 %v3294, %v2041
    %v3299 = vmul.f32 %v3294, %v2042
    %v3300 = vmul.f32 %v3294, %v2043
    %v3307 = vrot.slane %v3295, 5
    %v3308 = vrot.slane %v3296, 5
    %v3309 = vsel %vm1519, %v3307, %v3308
    %v3310 = vrot.slane %v3297, 5
    %v3311 = vsel %vm1519, %v3308, %v3310
    %v3312 = vrot.slane %v3298, 5
    %v3313 = vrot.slane %v3299, 5
    %v3314 = vsel %vm1519, %v3312, %v3313
    %v3315 = vrot.slane %v3300, 5
    %v3316 = vsel %vm1519, %v3313, %v3315
    %3317 = vrot.lane.b32.xlu0 %v3309, 127
    %v3318 = vpop.permute.xlu0 %3317
    %3319 = vrot.lane.b32.xlu0 %v3311, 127
    %v3320 = vpop.permute.xlu0 %3319
    %3321 = vrot.lane.b32.xlu0 %v3314, 127
    %v3322 = vpop.permute.xlu0 %3321
    %3323 = vrot.lane.b32.xlu0 %v3316, 127
    %v3324 = vpop.permute.xlu0 %3323
    %v3329 = vadd.f32 %v3290, %v3318
    %v3330 = vadd.f32 %v3291, %v3320
    %v3331 = vadd.f32 %v3292, %v3322
    %v3332 = vadd.f32 %v3293, %v3324
    %v3333 = vstv %s265
    %v3334 = vmul.f32 %v3333, %v2038
    %v3335 = vmul.f32 %v3333, %v2039
    %v3336 = vmul.f32 %v3333, %v2040
    %v3337 = vmul.f32 %v3333, %v2041
    %v3338 = vmul.f32 %v3333, %v2042
    %v3339 = vmul.f32 %v3333, %v2043
    %v3346 = vrot.slane %v3334, 5
    %v3347 = vrot.slane %v3335, 5
    %v3348 = vsel %vm1519, %v3346, %v3347
    %v3349 = vrot.slane %v3336, 5
    %v3350 = vsel %vm1519, %v3347, %v3349
    %v3351 = vrot.slane %v3337, 5
    %v3352 = vrot.slane %v3338, 5
    %v3353 = vsel %vm1519, %v3351, %v3352
    %v3354 = vrot.slane %v3339, 5
    %v3355 = vsel %vm1519, %v3352, %v3354
    %3356 = vrot.lane.b32.xlu0 %v3348, 126
    %v3357 = vpop.permute.xlu0 %3356
    %3358 = vrot.lane.b32.xlu0 %v3350, 126
    %v3359 = vpop.permute.xlu0 %3358
    %3360 = vrot.lane.b32.xlu0 %v3353, 126
    %v3361 = vpop.permute.xlu0 %3360
    %3362 = vrot.lane.b32.xlu0 %v3355, 126
    %v3363 = vpop.permute.xlu0 %3362
    %v3368 = vadd.f32 %v3329, %v3357
    %v3369 = vadd.f32 %v3330, %v3359
    %v3370 = vadd.f32 %v3331, %v3361
    %v3371 = vadd.f32 %v3332, %v3363
    %v3372 = vstv %s266
    %v3373 = vmul.f32 %v3372, %v2038
    %v3374 = vmul.f32 %v3372, %v2039
    %v3375 = vmul.f32 %v3372, %v2040
    %v3376 = vmul.f32 %v3372, %v2041
    %v3377 = vmul.f32 %v3372, %v2042
    %v3378 = vmul.f32 %v3372, %v2043
    %v3385 = vrot.slane %v3373, 5
    %v3386 = vrot.slane %v3374, 5
    %v3387 = vsel %vm1519, %v3385, %v3386
    %v3388 = vrot.slane %v3375, 5
    %v3389 = vsel %vm1519, %v3386, %v3388
    %v3390 = vrot.slane %v3376, 5
    %v3391 = vrot.slane %v3377, 5
    %v3392 = vsel %vm1519, %v3390, %v3391
    %v3393 = vrot.slane %v3378, 5
    %v3394 = vsel %vm1519, %v3391, %v3393
    %3395 = vrot.lane.b32.xlu0 %v3387, 125
    %v3396 = vpop.permute.xlu0 %3395
    %3397 = vrot.lane.b32.xlu0 %v3389, 125
    %v3398 = vpop.permute.xlu0 %3397
    %3399 = vrot.lane.b32.xlu0 %v3392, 125
    %v3400 = vpop.permute.xlu0 %3399
    %3401 = vrot.lane.b32.xlu0 %v3394, 125
    %v3402 = vpop.permute.xlu0 %3401
    %v3407 = vadd.f32 %v3368, %v3396
    %v3408 = vadd.f32 %v3369, %v3398
    %v3409 = vadd.f32 %v3370, %v3400
    %v3410 = vadd.f32 %v3371, %v3402
    %v3411 = vstv %s267
    %v3412 = vmul.f32 %v3411, %v2038
    %v3413 = vmul.f32 %v3411, %v2039
    %v3414 = vmul.f32 %v3411, %v2040
    %v3415 = vmul.f32 %v3411, %v2041
    %v3416 = vmul.f32 %v3411, %v2042
    %v3417 = vmul.f32 %v3411, %v2043
    %v3424 = vrot.slane %v3412, 5
    %v3425 = vrot.slane %v3413, 5
    %v3426 = vsel %vm1519, %v3424, %v3425
    %v3427 = vrot.slane %v3414, 5
    %v3428 = vsel %vm1519, %v3425, %v3427
    %v3429 = vrot.slane %v3415, 5
    %v3430 = vrot.slane %v3416, 5
    %v3431 = vsel %vm1519, %v3429, %v3430
    %v3432 = vrot.slane %v3417, 5
    %v3433 = vsel %vm1519, %v3430, %v3432
    %3434 = vrot.lane.b32.xlu0 %v3426, 124
    %v3435 = vpop.permute.xlu0 %3434
    %3436 = vrot.lane.b32.xlu0 %v3428, 124
    %v3437 = vpop.permute.xlu0 %3436
    %3438 = vrot.lane.b32.xlu0 %v3431, 124
    %v3439 = vpop.permute.xlu0 %3438
    %3440 = vrot.lane.b32.xlu0 %v3433, 124
    %v3441 = vpop.permute.xlu0 %3440
    %v3446 = vadd.f32 %v3407, %v3435
    %v3447 = vadd.f32 %v3408, %v3437
    %v3448 = vadd.f32 %v3409, %v3439
    %v3449 = vadd.f32 %v3410, %v3441
    %v3450 = vstv %s268
    %v3451 = vmul.f32 %v3450, %v2038
    %v3452 = vmul.f32 %v3450, %v2039
    %v3453 = vmul.f32 %v3450, %v2040
    %v3454 = vmul.f32 %v3450, %v2041
    %v3455 = vmul.f32 %v3450, %v2042
    %v3456 = vmul.f32 %v3450, %v2043
    %v3463 = vrot.slane %v3451, 5
    %v3464 = vrot.slane %v3452, 5
    %v3465 = vsel %vm1519, %v3463, %v3464
    %v3466 = vrot.slane %v3453, 5
    %v3467 = vsel %vm1519, %v3464, %v3466
    %v3468 = vrot.slane %v3454, 5
    %v3469 = vrot.slane %v3455, 5
    %v3470 = vsel %vm1519, %v3468, %v3469
    %v3471 = vrot.slane %v3456, 5
    %v3472 = vsel %vm1519, %v3469, %v3471
    %3473 = vrot.lane.b32.xlu0 %v3465, 123
    %v3474 = vpop.permute.xlu0 %3473
    %3475 = vrot.lane.b32.xlu0 %v3467, 123
    %v3476 = vpop.permute.xlu0 %3475
    %3477 = vrot.lane.b32.xlu0 %v3470, 123
    %v3478 = vpop.permute.xlu0 %3477
    %3479 = vrot.lane.b32.xlu0 %v3472, 123
    %v3480 = vpop.permute.xlu0 %3479
    %v3485 = vadd.f32 %v3446, %v3474
    %v3486 = vadd.f32 %v3447, %v3476
    %v3487 = vadd.f32 %v3448, %v3478
    %v3488 = vadd.f32 %v3449, %v3480
    %v3489 = vstv %s269
    %v3490 = vmul.f32 %v3489, %v2038
    %v3491 = vmul.f32 %v3489, %v2039
    %v3492 = vmul.f32 %v3489, %v2040
    %v3493 = vmul.f32 %v3489, %v2041
    %v3494 = vmul.f32 %v3489, %v2042
    %v3495 = vmul.f32 %v3489, %v2043
    %v3502 = vrot.slane %v3490, 5
    %v3503 = vrot.slane %v3491, 5
    %v3504 = vsel %vm1519, %v3502, %v3503
    %v3505 = vrot.slane %v3492, 5
    %v3506 = vsel %vm1519, %v3503, %v3505
    %v3507 = vrot.slane %v3493, 5
    %v3508 = vrot.slane %v3494, 5
    %v3509 = vsel %vm1519, %v3507, %v3508
    %v3510 = vrot.slane %v3495, 5
    %v3511 = vsel %vm1519, %v3508, %v3510
    %3512 = vrot.lane.b32.xlu0 %v3504, 122
    %v3513 = vpop.permute.xlu0 %3512
    %3514 = vrot.lane.b32.xlu0 %v3506, 122
    %v3515 = vpop.permute.xlu0 %3514
    %3516 = vrot.lane.b32.xlu0 %v3509, 122
    %v3517 = vpop.permute.xlu0 %3516
    %3518 = vrot.lane.b32.xlu0 %v3511, 122
    %v3519 = vpop.permute.xlu0 %3518
    %v3524 = vadd.f32 %v3485, %v3513
    %v3525 = vadd.f32 %v3486, %v3515
    %v3526 = vadd.f32 %v3487, %v3517
    %v3527 = vadd.f32 %v3488, %v3519
    %v3528 = vstv %s270
    %v3529 = vmul.f32 %v3528, %v2038
    %v3530 = vmul.f32 %v3528, %v2039
    %v3531 = vmul.f32 %v3528, %v2040
    %v3532 = vmul.f32 %v3528, %v2041
    %v3533 = vmul.f32 %v3528, %v2042
    %v3534 = vmul.f32 %v3528, %v2043
    %v3541 = vrot.slane %v3529, 6
    %v3542 = vrot.slane %v3530, 6
    %v3543 = vsel %vm1785, %v3541, %v3542
    %v3544 = vrot.slane %v3531, 6
    %v3545 = vsel %vm1785, %v3542, %v3544
    %v3546 = vrot.slane %v3532, 6
    %v3547 = vrot.slane %v3533, 6
    %v3548 = vsel %vm1785, %v3546, %v3547
    %v3549 = vrot.slane %v3534, 6
    %v3550 = vsel %vm1785, %v3547, %v3549
    %v3555 = vadd.f32 %v3524, %v3543
    %v3556 = vadd.f32 %v3525, %v3545
    %v3557 = vadd.f32 %v3526, %v3548
    %v3558 = vadd.f32 %v3527, %v3550
    %v3559 = vstv %s271
    %v3560 = vmul.f32 %v3559, %v2038
    %v3561 = vmul.f32 %v3559, %v2039
    %v3562 = vmul.f32 %v3559, %v2040
    %v3563 = vmul.f32 %v3559, %v2041
    %v3564 = vmul.f32 %v3559, %v2042
    %v3565 = vmul.f32 %v3559, %v2043
    %v3572 = vrot.slane %v3560, 6
    %v3573 = vrot.slane %v3561, 6
    %v3574 = vsel %vm1785, %v3572, %v3573
    %v3575 = vrot.slane %v3562, 6
    %v3576 = vsel %vm1785, %v3573, %v3575
    %v3577 = vrot.slane %v3563, 6
    %v3578 = vrot.slane %v3564, 6
    %v3579 = vsel %vm1785, %v3577, %v3578
    %v3580 = vrot.slane %v3565, 6
    %v3581 = vsel %vm1785, %v3578, %v3580
    %3582 = vrot.lane.b32.xlu0 %v3574, 127
    %v3583 = vpop.permute.xlu0 %3582
    %3584 = vrot.lane.b32.xlu0 %v3576, 127
    %v3585 = vpop.permute.xlu0 %3584
    %3586 = vrot.lane.b32.xlu0 %v3579, 127
    %v3587 = vpop.permute.xlu0 %3586
    %3588 = vrot.lane.b32.xlu0 %v3581, 127
    %v3589 = vpop.permute.xlu0 %3588
    %v3594 = vadd.f32 %v3555, %v3583
    %v3595 = vadd.f32 %v3556, %v3585
    %v3596 = vadd.f32 %v3557, %v3587
    %v3597 = vadd.f32 %v3558, %v3589
    %v3598 = vstv %s272
    %v3599 = vmul.f32 %v3598, %v2038
    %v3600 = vmul.f32 %v3598, %v2039
    %v3601 = vmul.f32 %v3598, %v2040
    %v3602 = vmul.f32 %v3598, %v2041
    %v3603 = vmul.f32 %v3598, %v2042
    %v3604 = vmul.f32 %v3598, %v2043
    %v3611 = vrot.slane %v3599, 6
    %v3612 = vrot.slane %v3600, 6
    %v3613 = vsel %vm1785, %v3611, %v3612
    %v3614 = vrot.slane %v3601, 6
    %v3615 = vsel %vm1785, %v3612, %v3614
    %v3616 = vrot.slane %v3602, 6
    %v3617 = vrot.slane %v3603, 6
    %v3618 = vsel %vm1785, %v3616, %v3617
    %v3619 = vrot.slane %v3604, 6
    %v3620 = vsel %vm1785, %v3617, %v3619
    %3621 = vrot.lane.b32.xlu0 %v3613, 126
    %v3622 = vpop.permute.xlu0 %3621
    %3623 = vrot.lane.b32.xlu0 %v3615, 126
    %v3624 = vpop.permute.xlu0 %3623
    %3625 = vrot.lane.b32.xlu0 %v3618, 126
    %v3626 = vpop.permute.xlu0 %3625
    %3627 = vrot.lane.b32.xlu0 %v3620, 126
    %v3628 = vpop.permute.xlu0 %3627
    %v3633 = vadd.f32 %v3594, %v3622
    %v3634 = vadd.f32 %v3595, %v3624
    %v3635 = vadd.f32 %v3596, %v3626
    %v3636 = vadd.f32 %v3597, %v3628
    %v3637 = vstv %s273
    %v3638 = vmul.f32 %v3637, %v2038
    %v3639 = vmul.f32 %v3637, %v2039
    %v3640 = vmul.f32 %v3637, %v2040
    %v3641 = vmul.f32 %v3637, %v2041
    %v3642 = vmul.f32 %v3637, %v2042
    %v3643 = vmul.f32 %v3637, %v2043
    %v3650 = vrot.slane %v3638, 6
    %v3651 = vrot.slane %v3639, 6
    %v3652 = vsel %vm1785, %v3650, %v3651
    %v3653 = vrot.slane %v3640, 6
    %v3654 = vsel %vm1785, %v3651, %v3653
    %v3655 = vrot.slane %v3641, 6
    %v3656 = vrot.slane %v3642, 6
    %v3657 = vsel %vm1785, %v3655, %v3656
    %v3658 = vrot.slane %v3643, 6
    %v3659 = vsel %vm1785, %v3656, %v3658
    %3660 = vrot.lane.b32.xlu0 %v3652, 125
    %v3661 = vpop.permute.xlu0 %3660
    %3662 = vrot.lane.b32.xlu0 %v3654, 125
    %v3663 = vpop.permute.xlu0 %3662
    %3664 = vrot.lane.b32.xlu0 %v3657, 125
    %v3665 = vpop.permute.xlu0 %3664
    %3666 = vrot.lane.b32.xlu0 %v3659, 125
    %v3667 = vpop.permute.xlu0 %3666
    %v3672 = vadd.f32 %v3633, %v3661
    %v3673 = vadd.f32 %v3634, %v3663
    %v3674 = vadd.f32 %v3635, %v3665
    %v3675 = vadd.f32 %v3636, %v3667
    %v3676 = vstv %s274
    %v3677 = vmul.f32 %v3676, %v2038
    %v3678 = vmul.f32 %v3676, %v2039
    %v3679 = vmul.f32 %v3676, %v2040
    %v3680 = vmul.f32 %v3676, %v2041
    %v3681 = vmul.f32 %v3676, %v2042
    %v3682 = vmul.f32 %v3676, %v2043
    %v3689 = vrot.slane %v3677, 6
    %v3690 = vrot.slane %v3678, 6
    %v3691 = vsel %vm1785, %v3689, %v3690
    %v3692 = vrot.slane %v3679, 6
    %v3693 = vsel %vm1785, %v3690, %v3692
    %v3694 = vrot.slane %v3680, 6
    %v3695 = vrot.slane %v3681, 6
    %v3696 = vsel %vm1785, %v3694, %v3695
    %v3697 = vrot.slane %v3682, 6
    %v3698 = vsel %vm1785, %v3695, %v3697
    %3699 = vrot.lane.b32.xlu0 %v3691, 124
    %v3700 = vpop.permute.xlu0 %3699
    %3701 = vrot.lane.b32.xlu0 %v3693, 124
    %v3702 = vpop.permute.xlu0 %3701
    %3703 = vrot.lane.b32.xlu0 %v3696, 124
    %v3704 = vpop.permute.xlu0 %3703
    %3705 = vrot.lane.b32.xlu0 %v3698, 124
    %v3706 = vpop.permute.xlu0 %3705
    %v3711 = vadd.f32 %v3672, %v3700
    %v3712 = vadd.f32 %v3673, %v3702
    %v3713 = vadd.f32 %v3674, %v3704
    %v3714 = vadd.f32 %v3675, %v3706
    %v3715 = vstv %s275
    %v3716 = vmul.f32 %v3715, %v2038
    %v3717 = vmul.f32 %v3715, %v2039
    %v3718 = vmul.f32 %v3715, %v2040
    %v3719 = vmul.f32 %v3715, %v2041
    %v3720 = vmul.f32 %v3715, %v2042
    %v3721 = vmul.f32 %v3715, %v2043
    %v3728 = vrot.slane %v3716, 6
    %v3729 = vrot.slane %v3717, 6
    %v3730 = vsel %vm1785, %v3728, %v3729
    %v3731 = vrot.slane %v3718, 6
    %v3732 = vsel %vm1785, %v3729, %v3731
    %v3733 = vrot.slane %v3719, 6
    %v3734 = vrot.slane %v3720, 6
    %v3735 = vsel %vm1785, %v3733, %v3734
    %v3736 = vrot.slane %v3721, 6
    %v3737 = vsel %vm1785, %v3734, %v3736
    %3738 = vrot.lane.b32.xlu0 %v3730, 123
    %v3739 = vpop.permute.xlu0 %3738
    %3740 = vrot.lane.b32.xlu0 %v3732, 123
    %v3741 = vpop.permute.xlu0 %3740
    %3742 = vrot.lane.b32.xlu0 %v3735, 123
    %v3743 = vpop.permute.xlu0 %3742
    %3744 = vrot.lane.b32.xlu0 %v3737, 123
    %v3745 = vpop.permute.xlu0 %3744
    %v3750 = vadd.f32 %v3711, %v3739
    %v3751 = vadd.f32 %v3712, %v3741
    %v3752 = vadd.f32 %v3713, %v3743
    %v3753 = vadd.f32 %v3714, %v3745
    %v3754 = vstv %s276
    %v3755 = vmul.f32 %v3754, %v2038
    %v3756 = vmul.f32 %v3754, %v2039
    %v3757 = vmul.f32 %v3754, %v2040
    %v3758 = vmul.f32 %v3754, %v2041
    %v3759 = vmul.f32 %v3754, %v2042
    %v3760 = vmul.f32 %v3754, %v2043
    %v3767 = vrot.slane %v3755, 6
    %v3768 = vrot.slane %v3756, 6
    %v3769 = vsel %vm1785, %v3767, %v3768
    %v3770 = vrot.slane %v3757, 6
    %v3771 = vsel %vm1785, %v3768, %v3770
    %v3772 = vrot.slane %v3758, 6
    %v3773 = vrot.slane %v3759, 6
    %v3774 = vsel %vm1785, %v3772, %v3773
    %v3775 = vrot.slane %v3760, 6
    %v3776 = vsel %vm1785, %v3773, %v3775
    %3777 = vrot.lane.b32.xlu0 %v3769, 122
    %v3778 = vpop.permute.xlu0 %3777
    %3779 = vrot.lane.b32.xlu0 %v3771, 122
    %v3780 = vpop.permute.xlu0 %3779
    %3781 = vrot.lane.b32.xlu0 %v3774, 122
    %v3782 = vpop.permute.xlu0 %3781
    %3783 = vrot.lane.b32.xlu0 %v3776, 122
    %v3784 = vpop.permute.xlu0 %3783
    %v3789 = vadd.f32 %v3750, %v3778
    %v3790 = vadd.f32 %v3751, %v3780
    %v3791 = vadd.f32 %v3752, %v3782
    %v3792 = vadd.f32 %v3753, %v3784
    %v3793 = vxor.u32 %v3789, 2147483648
    %v3794 = vxor.u32 %v3790, 2147483648
    %v3795 = vxor.u32 %v3791, 2147483648
    %v3796 = vxor.u32 %v3792, 2147483648
    %v3797 = vmul.f32 %v3793, 1.442695
    %v3798 = vpow.pop %v3797
    %v3799 = vmul.f32 %v3794, 1.442695
    %v3800 = vpow.pop %v3799
    %v3801 = vmul.f32 %v3795, 1.442695
    %v3802 = vpow.pop %v3801
    %v3803 = vmul.f32 %v3796, 1.442695
    %v3804 = vpow.pop %v3803
    %v3805 = vadd.f32 %v3798, 1.0
    %v3806 = vadd.f32 %v3800, 1.0
    %v3807 = vadd.f32 %v3802, 1.0
    %v3808 = vadd.f32 %v3804, 1.0
    %v3809 = vrcp.pop %v3805
    %v3810 = vmul.f32 1.0, %v3809
    %v3811 = vrcp.pop %v3806
    %v3812 = vmul.f32 1.0, %v3811
    %v3813 = vrcp.pop %v3807
    %v3814 = vmul.f32 1.0, %v3813
    %v3815 = vrcp.pop %v3808
    %v3816 = vmul.f32 1.0, %v3815
    %3817 = vst.msk [vmem:[#allocation8] sm:$0xff] %vm53, %v3810
    %3818 = vst.msk [vmem:[#allocation8 + $0x8] sm:$0xff] %vm53, %v3812
    %3819 = vst.msk [vmem:[#allocation8 + $0x10] sm:$0xff] %vm53, %v3814
    %3820 = vst.msk [vmem:[#allocation8 + $0x18] sm:$0xff] %vm53, %v3816
    // Predicated region
    $region18: #{tpu_custom_call.1} parent=1 // pred_check
      _
    $region19: #{tpu_custom_call.1} parent=1 // pred_check_branch
      %3822 = sbr.rel (0) target = $region21
    $region20: #{tpu_custom_call.1} parent=1 // pred_region
      %s3824 = ssub.s32 512, 512
      %3825 = vsyncadd [#allocation5], %s3824
      %s3826 = sshll.u32 [#allocation8], 4
      %s3827 = int_to_ptr.vmem [resolvable:$true] %s3826
      %3832 = dma.vmem_to_hbm [thread:$0]  %s3827, 512, %s2, [#allocation5], 128, 128, 8
    $region21: #{tpu_custom_call.1} parent=1 // pred_fallthru
      _
    // Predicated region
    $region22: #{tpu_custom_call.1} parent=1 // pred_check
      _
    $region23: #{tpu_custom_call.1} parent=1 // pred_check_branch
      %3834 = sbr.rel (0) target = $region25
    $region24: #{tpu_custom_call.1} parent=1 // pred_region
      %3835 = dma.done [#allocation5], 512
    $region25: #{tpu_custom_call.1} parent=1 // pred_fallthru
      _
    %3836 = vsyncpa [#allocation4], 1
    %3837 = vsyncpa [#allocation5], 1
    %3838 = vsyncpa [#allocation6], 1

</llo_original>
